<compile_context>
chip_gen: v7x
topology: tpu7x:2x2x1
jax: 0.10.0
libtpu: 0.0.40
codegen_flags: <defaults>
</compile_context>

<pallas_src>
import math
import functools

import jax
import jax.numpy as jnp
from jax import lax
from jax.experimental import pallas as pl
from jax.experimental.pallas import tpu as pltpu


# -----------------------------------------------------------------------------
# Kernel
# -----------------------------------------------------------------------------
def _layer_norm(x, g, b, eps=1e-5):
    """LayerNorm over the last (feature) axis; g/b are (1, E); all f32."""
    mu = jnp.mean(x, axis=-1, keepdims=True)
    var = jnp.mean((x - mu) ** 2, axis=-1, keepdims=True)
    return (x - mu) * lax.rsqrt(var + eps) * g + b


def fused_encoder_kernel(num_heads, seq_len,
                         x_ref, pw_ref, peb_ref,
                         wqkv_ref, bqkv_ref, wo_ref,
                         w1_ref, b1_ref, w2_ref, vec_ref,
                         o_ref,
                         h_ref):
    """Grid = (batch_split, layer).  h_ref is the resident activation (R, E)."""
    layer = pl.program_id(1)
    last_layer = pl.num_programs(1) - 1

    R, E = h_ref.shape                # R = (B / P) * S rows resident in VMEM
    S = seq_len
    Bloc = R // S
    H = num_heads
    hd = E // H

    # ---- first layer step: input projection + (pe + proj_b) -----------------
    @pl.when(layer == 0)
    def _():
        xb = x_ref[...].astype(jnp.bfloat16)                        # (R, Dpad)
        y = jnp.dot(xb, pw_ref[...],
                    preferred_element_type=jnp.float32)             # (R, E)
        h_ref[...] = y + peb_ref[...]

    x2 = h_ref[...]                                                 # (R, E) f32

    vec = vec_ref[...]                                              # (8, E) f32
    bo, ln1_g, ln1_b = vec[0:1, :], vec[1:2, :], vec[2:3, :]
    b2, ln2_g, ln2_b = vec[3:4, :], vec[4:5, :], vec[5:6, :]

    # ---- fused QKV projection (M = R, N = 3E) --------------------------------
    xb = x2.astype(jnp.bfloat16)
    qkv = jnp.dot(xb, wqkv_ref[...],
                  preferred_element_type=jnp.float32) + bqkv_ref[...]  # (R, 3E)
    q2 = qkv[:, 0 * E:1 * E]          # softmax scale already folded into Wq/bq
    k2 = qkv[:, 1 * E:2 * E]
    v2 = qkv[:, 2 * E:3 * E]

    # ---- attention, per batch element (no cross-batch attention) ------------
    ctx_rows = []
    for b in range(Bloc):             # Bloc is small & static
        sl = slice(b * S, (b + 1) * S)
        q = jnp.swapaxes(q2[sl].reshape(S, H, hd), 0, 1)             # (H, S, hd)
        k = jnp.swapaxes(k2[sl].reshape(S, H, hd), 0, 1)
        v = jnp.swapaxes(v2[sl].reshape(S, H, hd), 0, 1)

        s = jnp.einsum('hqd,hkd->hqk',
                       q.astype(jnp.bfloat16), k.astype(jnp.bfloat16),
                       preferred_element_type=jnp.float32)           # (H, S, S)
        s = s - jnp.max(s, axis=-1, keepdims=True)
        p = jnp.exp(s)
        p = p * pl.reciprocal(jnp.sum(p, axis=-1, keepdims=True), approx=True)

        ctx = jnp.einsum('hqk,hkd->hqd',
                         p.astype(jnp.bfloat16), v.astype(jnp.bfloat16),
                         preferred_element_type=jnp.float32)          # (H, S, hd)
        ctx_rows.append(jnp.swapaxes(ctx, 0, 1).reshape(S, E))        # (S, E)
    ctx2 = ctx_rows[0] if Bloc == 1 else jnp.concatenate(ctx_rows, axis=0)

    # ---- output projection (single K=E matmul) + residual + LayerNorm 1 -----
    attn = jnp.dot(ctx2.astype(jnp.bfloat16), wo_ref[...],
                   preferred_element_type=jnp.float32) + bo
    y = _layer_norm(x2 + attn, ln1_g, ln1_b)

    # ---- position-wise FFN ---------------------------------------------------
    h1 = jnp.dot(y.astype(jnp.bfloat16), w1_ref[...],
                 preferred_element_type=jnp.float32) + b1_ref[...]
    h1 = jnp.maximum(h1, 0.0)
    f = jnp.dot(h1.astype(jnp.bfloat16), w2_ref[...],
                preferred_element_type=jnp.float32) + b2

    # ---- residual + LayerNorm 2 ----------------------------------------------
    z = _layer_norm(y + f, ln2_g, ln2_b)

    h_ref[...] = z                    # resident activation for next layer step

    @pl.when(layer == last_layer)
    def _():
        o_ref[...] = z                # only the final layer writes the output


# -----------------------------------------------------------------------------
# Wrapper (pallas_call plumbing)
# -----------------------------------------------------------------------------
def stock_encoder_forward(x, params, pe, num_heads, batch_splits=None):
    B, S, Din = x.shape
    Dpad, E = params['proj_w'].shape
    F = params['w1'].shape[2]
    L = params['wqkv'].shape[0]

    # 2-way parallel batch split (both v7x TensorCores get work); near-free
    # loop on single-core chips.
    if batch_splits is None:
        P = 2 if (B % 2 == 0 and B >= 2) else 1
    else:
        P = batch_splits
    assert B % P == 0
    Bloc = B // P
    R = Bloc * S

    # Zero-pad the feature axis to the padded projection K dim (lane aligned).
    if Din < Dpad:
        x = jnp.pad(x, ((0, 0), (0, 0), (0, Dpad - Din)))
    xr = x.reshape(P, R, Dpad)

    # Positional encoding + projection bias folded into one (R, E) array.
    pe_bias = pe[:S] + params['proj_b']                 # (S, E)
    pe_bias = jnp.tile(pe_bias, (Bloc, 1))              # (R, E)

    kernel = functools.partial(fused_encoder_kernel, num_heads, S)

    out = pl.pallas_call(
        kernel,
        out_shape=jax.ShapeDtypeStruct((P, R, E), jnp.float32),
        grid_spec=pltpu.PrefetchScalarGridSpec(
            num_scalar_prefetch=0,
            grid=(P, L),
            in_specs=[
                pl.BlockSpec((None, R, Dpad),  lambda p, l: (p, 0, 0)),   # x (padded)
                pl.BlockSpec((Dpad, E),        lambda p, l: (0, 0)),      # proj_w (bf16)
                pl.BlockSpec((R, E),           lambda p, l: (0, 0)),      # pe + proj_b
                pl.BlockSpec((None, E, 3 * E), lambda p, l: (l, 0, 0)),   # wqkv (bf16)
                pl.BlockSpec((None, 1, 3 * E), lambda p, l: (l, 0, 0)),   # bqkv
                pl.BlockSpec((None, E, E),     lambda p, l: (l, 0, 0)),   # wo   (bf16)
                pl.BlockSpec((None, E, F),     lambda p, l: (l, 0, 0)),   # w1   (bf16)
                pl.BlockSpec((None, 1, F),     lambda p, l: (l, 0, 0)),   # b1
                pl.BlockSpec((None, F, E),     lambda p, l: (l, 0, 0)),   # w2   (bf16)
                pl.BlockSpec((None, 8, E),     lambda p, l: (l, 0, 0)),   # [bo,ln1g,ln1b,b2,ln2g,ln2b,0,0]
            ],
            out_specs=pl.BlockSpec((None, R, E), lambda p, l: (p, 0, 0)),
            scratch_shapes=[pltpu.VMEM((R, E), jnp.float32)],
        ),
        compiler_params=pltpu.CompilerParams(
            dimension_semantics=("parallel", "arbitrary"),
        ),
    )(xr, params['proj_w'], pe_bias,
      params['wqkv'], params['bqkv'], params['wo'],
      params['w1'], params['b1'], params['w2'], params['vec_e'])

    return out.reshape(B, S, E)


# -----------------------------------------------------------------------------
# Deterministic parameter / positional-encoding construction (glue, plain JAX)
# -----------------------------------------------------------------------------
def sinusoidal_pe(max_len, embed_dim):
    position = jnp.arange(max_len, dtype=jnp.float32)[:, None]
    div_term = jnp.exp(jnp.arange(0, embed_dim, 2, dtype=jnp.float32)
                       * (-math.log(10000.0) / embed_dim))
    pe = jnp.zeros((max_len, embed_dim), jnp.float32)
    pe = pe.at[:, 0::2].set(jnp.sin(position * div_term))
    pe = pe.at[:, 1::2].set(jnp.cos(position * div_term))
    return pe


def init_params(key, input_dim, embed_dim, ff_hidden_dim, num_layers, num_heads):
    w_scale, b_scale = 0.05, 0.01
    head_dim = embed_dim // num_heads
    q_scale = 1.0 / math.sqrt(head_dim)
    din_pad = ((input_dim + 127) // 128) * 128

    def dense(k, fan_in, fan_out):
        kw, kb = jax.random.split(k)
        w = jax.random.normal(kw, (fan_in, fan_out), jnp.float32) * w_scale
        b = jax.random.normal(kb, (1, fan_out), jnp.float32) * b_scale
        return w, b

    keys = jax.random.split(key, num_layers + 1)
    proj_w, proj_b = dense(keys[0], input_dim, embed_dim)
    proj_w = jnp.pad(proj_w, ((0, din_pad - input_dim), (0, 0)))   # zero-pad K

    wqkv_l, bqkv_l, wo_l, w1_l, b1_l, w2_l, vec_l = [], [], [], [], [], [], []
    ones = jnp.ones((embed_dim,), jnp.float32)
    zeros = jnp.zeros((embed_dim,), jnp.float32)
    for li in range(num_layers):
        ks = jax.random.split(keys[li + 1], 6)
        wq, bq = dense(ks[0], embed_dim, embed_dim)
        wk, bk = dense(ks[1], embed_dim, embed_dim)
        wv, bv = dense(ks[2], embed_dim, embed_dim)
        wo, bo = dense(ks[3], embed_dim, embed_dim)
        w1, b1 = dense(ks[4], embed_dim, ff_hidden_dim)
        w2, b2 = dense(ks[5], ff_hidden_dim, embed_dim)

        # Fold the 1/sqrt(head_dim) softmax scale into the Q projection.
        wq = wq * q_scale
        bq = bq * q_scale

        wqkv_l.append(jnp.concatenate([wq, wk, wv], axis=1))     # (E, 3E)
        bqkv_l.append(jnp.concatenate([bq, bk, bv], axis=1))     # (1, 3E)
        wo_l.append(wo)
        w1_l.append(w1)
        b1_l.append(b1)
        w2_l.append(w2)
        # rows: 0=bo 1=ln1_g 2=ln1_b 3=b2 4=ln2_g 5=ln2_b (+2 pad rows)
        vec_l.append(jnp.stack([bo[0], ones, zeros, b2[0], ones, zeros,
                                zeros, zeros], axis=0))          # (8, E)

    stack_bf16 = lambda xs: jnp.stack(xs, axis=0).astype(jnp.bfloat16)
    stack_f32 = lambda xs: jnp.stack(xs, axis=0)

    return dict(
        proj_w=proj_w.astype(jnp.bfloat16),   # (Dpad, E)
        proj_b=proj_b,                        # (1, E)    f32
        wqkv=stack_bf16(wqkv_l),              # (L, E, 3E)
        bqkv=stack_f32(bqkv_l),               # (L, 1, 3E)
        wo=stack_bf16(wo_l),                  # (L, E, E)
        w1=stack_bf16(w1_l),                  # (L, E, F)
        b1=stack_f32(b1_l),                   # (L, 1, F)
        w2=stack_bf16(w2_l),                  # (L, F, E)
        vec_e=stack_f32(vec_l),               # (L, 8, E)
    )


# -----------------------------------------------------------------------------
if __name__ == "__main__":
    # Small shapes consistent with StockEncoder defaults.
    B, S = 2, 8
    INPUT_DIM, EMBED_DIM = 22, 128
    NUM_HEADS, FF_HIDDEN, NUM_LAYERS = 8, 256, 3

    key = jax.random.PRNGKey(0)
    kx, kp = jax.random.split(key)
    x = jax.random.normal(kx, (B, S, INPUT_DIM), jnp.float32)

    params = init_params(kp, INPUT_DIM, EMBED_DIM, FF_HIDDEN, NUM_LAYERS, NUM_HEADS)
    pe = sinusoidal_pe(max_len=5000, embed_dim=EMBED_DIM)[:S]   # (S, E)

    fwd = jax.jit(functools.partial(stock_encoder_forward, num_heads=NUM_HEADS))
    out = fwd(x, params, pe)
    out = jax.block_until_ready(out)

    assert out.shape == (B, S, EMBED_DIM)
    assert bool(jnp.all(jnp.isfinite(out)))
    print("KERNEL_OK")
</pallas_src>

<mosaic_0001>
module attributes {stable_mosaic.version = 11 : i64} {
  func.func @fused_encoder_kernel(%arg0: i32, %arg1: i32, %arg2: memref<1x8x128xf32, #tpu.memory_space<vmem>>, %arg3: memref<128x128xbf16, #tpu.memory_space<vmem>>, %arg4: memref<8x128xf32, #tpu.memory_space<vmem>>, %arg5: memref<1x128x384xbf16, #tpu.memory_space<vmem>>, %arg6: memref<1x1x384xf32, #tpu.memory_space<vmem>>, %arg7: memref<1x128x128xbf16, #tpu.memory_space<vmem>>, %arg8: memref<1x128x256xbf16, #tpu.memory_space<vmem>>, %arg9: memref<1x1x256xf32, #tpu.memory_space<vmem>>, %arg10: memref<1x256x128xbf16, #tpu.memory_space<vmem>>, %arg11: memref<1x8x128xf32, #tpu.memory_space<vmem>>, %arg12: memref<1x8x128xf32, #tpu.memory_space<vmem>>, %arg13: memref<8x128xf32, #tpu.memory_space<vmem>>) attributes {dimension_semantics = [#tpu.dimension_semantics<parallel>, #tpu.dimension_semantics<arbitrary>], iteration_bounds = array<i64: 2, 3>, scalar_prefetch = 0 : i64, scratch_operands = 1 : i64, tpu.core_type = #tpu.core_type<tc>, window_params = [{transform_indices = @transform_0, window_bounds = array<i64: 1, 8, 128>}, {pipeline_mode = #tpu.pipeline_mode<synchronous>, transform_indices = @transform_1, window_bounds = array<i64: 128, 128>}, {pipeline_mode = #tpu.pipeline_mode<synchronous>, transform_indices = @transform_2, window_bounds = array<i64: 8, 128>}, {transform_indices = @transform_3, window_bounds = array<i64: 1, 128, 384>}, {transform_indices = @transform_4, window_bounds = array<i64: 1, 1, 384>}, {transform_indices = @transform_5, window_bounds = array<i64: 1, 128, 128>}, {transform_indices = @transform_6, window_bounds = array<i64: 1, 128, 256>}, {transform_indices = @transform_7, window_bounds = array<i64: 1, 1, 256>}, {transform_indices = @transform_8, window_bounds = array<i64: 1, 256, 128>}, {transform_indices = @transform_9, window_bounds = array<i64: 1, 8, 128>}, {transform_indices = @transform_10, window_bounds = array<i64: 1, 8, 128>}]} {
    %c0_i32 = arith.constant 0 : i32
    %0 = arith.cmpi eq, %arg1, %c0_i32 : i32
    %1 = arith.extui %0 : i1 to i32
    %c0_i32_0 = arith.constant 0 : i32
    %2 = arith.cmpi ne, %1, %c0_i32_0 : i32
    scf.if %2 {
      %c0_44 = arith.constant 0 : index
      %c0_45 = arith.constant 0 : index
      %c0_46 = arith.constant 0 : index
      %119 = vector.load %arg2[%c0_44, %c0_45, %c0_46] : memref<1x8x128xf32, #tpu.memory_space<vmem>>, vector<1x8x128xf32>
      %120 = vector.shape_cast %119 : vector<1x8x128xf32> to vector<8x128xf32>
      %121 = arith.truncf %120 : vector<8x128xf32> to vector<8x128xbf16>
      %c0_47 = arith.constant 0 : index
      %c0_48 = arith.constant 0 : index
      %122 = vector.load %arg3[%c0_47, %c0_48] : memref<128x128xbf16, #tpu.memory_space<vmem>>, vector<128x128xbf16>
      %cst_49 = arith.constant dense<0.000000e+00> : vector<8x128xf32>
      %123 = tpu.matmul %121, %122, %cst_49 {dimension_numbers = #tpu.dot_dimension_numbers<[1], [0], [0], [1], [0, 0, 1, 1], [], []>} : vector<8x128xbf16>, vector<128x128xbf16>, vector<8x128xf32> -> vector<8x128xf32>
      %c0_50 = arith.constant 0 : index
      %c0_51 = arith.constant 0 : index
      %124 = vector.load %arg4[%c0_50, %c0_51] : memref<8x128xf32, #tpu.memory_space<vmem>>, vector<8x128xf32>
      %125 = arith.addf %123, %124 : vector<8x128xf32>
      %c0_52 = arith.constant 0 : index
      %c0_53 = arith.constant 0 : index
      %126 = vector.load %arg13[%c0_52, %c0_53] : memref<8x128xf32, #tpu.memory_space<vmem>>, vector<8x128xf32>
      tpu.vector_store %arg13[%c0_52, %c0_53], %125 {strides = array<i32>} : memref<8x128xf32, #tpu.memory_space<vmem>>, vector<8x128xf32>,
    } else {
    }
    %c0 = arith.constant 0 : index
    %c0_1 = arith.constant 0 : index
    %3 = vector.load %arg13[%c0, %c0_1] : memref<8x128xf32, #tpu.memory_space<vmem>>, vector<8x128xf32>
    %c0_2 = arith.constant 0 : index
    %c0_3 = arith.constant 0 : index
    %c0_4 = arith.constant 0 : index
    %4 = vector.load %arg11[%c0_2, %c0_3, %c0_4] : memref<1x8x128xf32, #tpu.memory_space<vmem>>, vector<1x8x128xf32>
    %5 = vector.shape_cast %4 : vector<1x8x128xf32> to vector<8x128xf32>
    %6 = vector.extract_strided_slice %5 {offsets = [0, 0], sizes = [1, 128], strides = [1, 1]} : vector<8x128xf32> to vector<1x128xf32>
    %7 = vector.extract_strided_slice %5 {offsets = [1, 0], sizes = [1, 128], strides = [1, 1]} : vector<8x128xf32> to vector<1x128xf32>
    %8 = vector.extract_strided_slice %5 {offsets = [2, 0], sizes = [1, 128], strides = [1, 1]} : vector<8x128xf32> to vector<1x128xf32>
    %9 = vector.extract_strided_slice %5 {offsets = [3, 0], sizes = [1, 128], strides = [1, 1]} : vector<8x128xf32> to vector<1x128xf32>
    %10 = vector.extract_strided_slice %5 {offsets = [4, 0], sizes = [1, 128], strides = [1, 1]} : vector<8x128xf32> to vector<1x128xf32>
    %11 = vector.extract_strided_slice %5 {offsets = [5, 0], sizes = [1, 128], strides = [1, 1]} : vector<8x128xf32> to vector<1x128xf32>
    %12 = arith.truncf %3 : vector<8x128xf32> to vector<8x128xbf16>
    %c0_5 = arith.constant 0 : index
    %c0_6 = arith.constant 0 : index
    %c0_7 = arith.constant 0 : index
    %13 = vector.load %arg5[%c0_5, %c0_6, %c0_7] : memref<1x128x384xbf16, #tpu.memory_space<vmem>>, vector<1x128x384xbf16>
    %14 = vector.shape_cast %13 : vector<1x128x384xbf16> to vector<128x384xbf16>
    %cst = arith.constant dense<0.000000e+00> : vector<8x384xf32>
    %15 = tpu.matmul %12, %14, %cst {dimension_numbers = #tpu.dot_dimension_numbers<[1], [0], [0], [1], [0, 0, 1, 1], [], []>} : vector<8x128xbf16>, vector<128x384xbf16>, vector<8x384xf32> -> vector<8x384xf32>
    %c0_8 = arith.constant 0 : index
    %c0_9 = arith.constant 0 : index
    %c0_10 = arith.constant 0 : index
    %16 = vector.load %arg6[%c0_8, %c0_9, %c0_10] : memref<1x1x384xf32, #tpu.memory_space<vmem>>, vector<1x1x384xf32>
    %17 = vector.shape_cast %16 : vector<1x1x384xf32> to vector<1x384xf32>
    %18 = vector.broadcast %17 : vector<1x384xf32> to vector<8x384xf32>
    %19 = arith.addf %15, %18 : vector<8x384xf32>
    %20 = vector.extract_strided_slice %19 {offsets = [0, 0], sizes = [8, 128], strides = [1, 1]} : vector<8x384xf32> to vector<8x128xf32>
    %21 = vector.extract_strided_slice %19 {offsets = [0, 128], sizes = [8, 128], strides = [1, 1]} : vector<8x384xf32> to vector<8x128xf32>
    %22 = vector.extract_strided_slice %19 {offsets = [0, 256], sizes = [8, 128], strides = [1, 1]} : vector<8x384xf32> to vector<8x128xf32>
    %23 = vector.shape_cast %20 : vector<8x128xf32> to vector<8x8x16xf32>
    %24 = tpu.transpose %23, [1, 0, 2] : vector<8x8x16xf32> -> vector<8x8x16xf32>
    %25 = vector.shape_cast %21 : vector<8x128xf32> to vector<8x8x16xf32>
    %26 = tpu.transpose %25, [1, 0, 2] : vector<8x8x16xf32> -> vector<8x8x16xf32>
    %27 = vector.shape_cast %22 : vector<8x128xf32> to vector<8x8x16xf32>
    %28 = tpu.transpose %27, [1, 0, 2] : vector<8x8x16xf32> -> vector<8x8x16xf32>
    %29 = arith.truncf %24 : vector<8x8x16xf32> to vector<8x8x16xbf16>
    %30 = arith.truncf %26 : vector<8x8x16xf32> to vector<8x8x16xbf16>
    "tpu.trace_start"() <{level = 10 : i32, message = "hqd,hkd->hqk"}> : () -> ()
    %cst_11 = arith.constant dense<0.000000e+00> : vector<8x8x8xf32>
    %31 = tpu.matmul %29, %30, %cst_11 {dimension_numbers = #tpu.dot_dimension_numbers<[2], [2], [1], [1], [0, 0, 0, 1, 1, 1], [0], [0]>} : vector<8x8x16xbf16>, vector<8x8x16xbf16>, vector<8x8x8xf32> -> vector<8x8x8xf32>
    "tpu.trace_stop"() : () -> ()
    %cst_12 = arith.constant dense<0xFF800000> : vector<8x8xf32>
    %32 = vector.multi_reduction <maximumf>, %31, %cst_12 [2] : vector<8x8x8xf32> to vector<8x8xf32>
    %33 = vector.shape_cast %32 : vector<8x8xf32> to vector<8x8x1xf32>
    %34 = vector.broadcast %33 : vector<8x8x1xf32> to vector<8x8x8xf32>
    %35 = arith.subf %31, %34 : vector<8x8x8xf32>
    %36 = math.exp %35 : vector<8x8x8xf32>
    %cst_13 = arith.constant dense<0.000000e+00> : vector<8x8xf32>
    %37 = vector.multi_reduction <add>, %36, %cst_13 [2] : vector<8x8x8xf32> to vector<8x8xf32>
    %38 = vector.shape_cast %37 : vector<8x8xf32> to vector<8x8x1xf32>
    %39 = tpu.reciprocal %38 {approx = true} : vector<8x8x1xf32> -> vector<8x8x1xf32>
    %40 = vector.broadcast %39 : vector<8x8x1xf32> to vector<8x8x8xf32>
    %41 = arith.mulf %36, %40 : vector<8x8x8xf32>
    %42 = arith.truncf %41 : vector<8x8x8xf32> to vector<8x8x8xbf16>
    %43 = arith.truncf %28 : vector<8x8x16xf32> to vector<8x8x16xbf16>
    "tpu.trace_start"() <{level = 10 : i32, message = "hqk,hkd->hqd"}> : () -> ()
    %cst_14 = arith.constant dense<0.000000e+00> : vector<8x8x16xf32>
    %44 = tpu.matmul %42, %43, %cst_14 {dimension_numbers = #tpu.dot_dimension_numbers<[2], [1], [1], [2], [0, 0, 0, 1, 1, 2], [0], [0]>} : vector<8x8x8xbf16>, vector<8x8x16xbf16>, vector<8x8x16xf32> -> vector<8x8x16xf32>
    "tpu.trace_stop"() : () -> ()
    %45 = tpu.transpose %44, [1, 0, 2] : vector<8x8x16xf32> -> vector<8x8x16xf32>
    %46 = vector.shape_cast %45 : vector<8x8x16xf32> to vector<8x128xf32>
    %47 = arith.truncf %46 : vector<8x128xf32> to vector<8x128xbf16>
    %c0_15 = arith.constant 0 : index
    %c0_16 = arith.constant 0 : index
    %c0_17 = arith.constant 0 : index
    %48 = vector.load %arg7[%c0_15, %c0_16, %c0_17] : memref<1x128x128xbf16, #tpu.memory_space<vmem>>, vector<1x128x128xbf16>
    %49 = vector.shape_cast %48 : vector<1x128x128xbf16> to vector<128x128xbf16>
    %cst_18 = arith.constant dense<0.000000e+00> : vector<8x128xf32>
    %50 = tpu.matmul %47, %49, %cst_18 {dimension_numbers = #tpu.dot_dimension_numbers<[1], [0], [0], [1], [0, 0, 1, 1], [], []>} : vector<8x128xbf16>, vector<128x128xbf16>, vector<8x128xf32> -> vector<8x128xf32>
    %51 = vector.broadcast %6 : vector<1x128xf32> to vector<8x128xf32>
    %52 = arith.addf %50, %51 : vector<8x128xf32>
    %53 = arith.addf %3, %52 : vector<8x128xf32>
    %cst_19 = arith.constant dense<0.000000e+00> : vector<8xf32>
    %54 = vector.multi_reduction <add>, %53, %cst_19 [1] : vector<8x128xf32> to vector<8xf32>
    %55 = vector.shape_cast %54 : vector<8xf32> to vector<8x1xf32>
    %cst_20 = arith.constant 1.280000e+02 : f32
    %56 = vector.broadcast %cst_20 : f32 to vector<8x1xf32>
    %57 = arith.divf %55, %56 : vector<8x1xf32>
    %58 = vector.broadcast %57 : vector<8x1xf32> to vector<8x128xf32>
    %59 = arith.subf %53, %58 : vector<8x128xf32>
    %60 = arith.mulf %59, %59 : vector<8x128xf32>
    %cst_21 = arith.constant dense<0.000000e+00> : vector<8xf32>
    %61 = vector.multi_reduction <add>, %60, %cst_21 [1] : vector<8x128xf32> to vector<8xf32>
    %62 = vector.shape_cast %61 : vector<8xf32> to vector<8x1xf32>
    %cst_22 = arith.constant 1.280000e+02 : f32
    %63 = vector.broadcast %cst_22 : f32 to vector<8x1xf32>
    %64 = arith.divf %62, %63 : vector<8x1xf32>
    %65 = vector.broadcast %57 : vector<8x1xf32> to vector<8x128xf32>
    %66 = arith.subf %53, %65 : vector<8x128xf32>
    %cst_23 = arith.constant 9.99999974E-6 : f32
    %67 = vector.broadcast %cst_23 : f32 to vector<8x1xf32>
    %68 = arith.addf %64, %67 : vector<8x1xf32>
    %69 = math.rsqrt %68 : vector<8x1xf32>
    %70 = vector.broadcast %69 : vector<8x1xf32> to vector<8x128xf32>
    %71 = arith.mulf %66, %70 : vector<8x128xf32>
    %72 = vector.broadcast %7 : vector<1x128xf32> to vector<8x128xf32>
    %73 = arith.mulf %71, %72 : vector<8x128xf32>
    %74 = vector.broadcast %8 : vector<1x128xf32> to vector<8x128xf32>
    %75 = arith.addf %73, %74 : vector<8x128xf32>
    %76 = arith.truncf %75 : vector<8x128xf32> to vector<8x128xbf16>
    %c0_24 = arith.constant 0 : index
    %c0_25 = arith.constant 0 : index
    %c0_26 = arith.constant 0 : index
    %77 = vector.load %arg8[%c0_24, %c0_25, %c0_26] : memref<1x128x256xbf16, #tpu.memory_space<vmem>>, vector<1x128x256xbf16>
    %78 = vector.shape_cast %77 : vector<1x128x256xbf16> to vector<128x256xbf16>
    %cst_27 = arith.constant dense<0.000000e+00> : vector<8x256xf32>
    %79 = tpu.matmul %76, %78, %cst_27 {dimension_numbers = #tpu.dot_dimension_numbers<[1], [0], [0], [1], [0, 0, 1, 1], [], []>} : vector<8x128xbf16>, vector<128x256xbf16>, vector<8x256xf32> -> vector<8x256xf32>
    %c0_28 = arith.constant 0 : index
    %c0_29 = arith.constant 0 : index
    %c0_30 = arith.constant 0 : index
    %80 = vector.load %arg9[%c0_28, %c0_29, %c0_30] : memref<1x1x256xf32, #tpu.memory_space<vmem>>, vector<1x1x256xf32>
    %81 = vector.shape_cast %80 : vector<1x1x256xf32> to vector<1x256xf32>
    %82 = vector.broadcast %81 : vector<1x256xf32> to vector<8x256xf32>
    %83 = arith.addf %79, %82 : vector<8x256xf32>
    %cst_31 = arith.constant 0.000000e+00 : f32
    %84 = vector.broadcast %cst_31 : f32 to vector<8x256xf32>
    %85 = arith.maximumf %83, %84 : vector<8x256xf32>
    %86 = arith.truncf %85 : vector<8x256xf32> to vector<8x256xbf16>
    %c0_32 = arith.constant 0 : index
    %c0_33 = arith.constant 0 : index
    %c0_34 = arith.constant 0 : index
    %87 = vector.load %arg10[%c0_32, %c0_33, %c0_34] : memref<1x256x128xbf16, #tpu.memory_space<vmem>>, vector<1x256x128xbf16>
    %88 = vector.shape_cast %87 : vector<1x256x128xbf16> to vector<256x128xbf16>
    %cst_35 = arith.constant dense<0.000000e+00> : vector<8x128xf32>
    %89 = tpu.matmul %86, %88, %cst_35 {dimension_numbers = #tpu.dot_dimension_numbers<[1], [0], [0], [1], [0, 0, 1, 1], [], []>} : vector<8x256xbf16>, vector<256x128xbf16>, vector<8x128xf32> -> vector<8x128xf32>
    %90 = vector.broadcast %9 : vector<1x128xf32> to vector<8x128xf32>
    %91 = arith.addf %89, %90 : vector<8x128xf32>
    %92 = arith.addf %75, %91 : vector<8x128xf32>
    %cst_36 = arith.constant dense<0.000000e+00> : vector<8xf32>
    %93 = vector.multi_reduction <add>, %92, %cst_36 [1] : vector<8x128xf32> to vector<8xf32>
    %94 = vector.shape_cast %93 : vector<8xf32> to vector<8x1xf32>
    %cst_37 = arith.constant 1.280000e+02 : f32
    %95 = vector.broadcast %cst_37 : f32 to vector<8x1xf32>
    %96 = arith.divf %94, %95 : vector<8x1xf32>
    %97 = vector.broadcast %96 : vector<8x1xf32> to vector<8x128xf32>
    %98 = arith.subf %92, %97 : vector<8x128xf32>
    %99 = arith.mulf %98, %98 : vector<8x128xf32>
    %cst_38 = arith.constant dense<0.000000e+00> : vector<8xf32>
    %100 = vector.multi_reduction <add>, %99, %cst_38 [1] : vector<8x128xf32> to vector<8xf32>
    %101 = vector.shape_cast %100 : vector<8xf32> to vector<8x1xf32>
    %cst_39 = arith.constant 1.280000e+02 : f32
    %102 = vector.broadcast %cst_39 : f32 to vector<8x1xf32>
    %103 = arith.divf %101, %102 : vector<8x1xf32>
    %104 = vector.broadcast %96 : vector<8x1xf32> to vector<8x128xf32>
    %105 = arith.subf %92, %104 : vector<8x128xf32>
    %cst_40 = arith.constant 9.99999974E-6 : f32
    %106 = vector.broadcast %cst_40 : f32 to vector<8x1xf32>
    %107 = arith.addf %103, %106 : vector<8x1xf32>
    %108 = math.rsqrt %107 : vector<8x1xf32>
    %109 = vector.broadcast %108 : vector<8x1xf32> to vector<8x128xf32>
    %110 = arith.mulf %105, %109 : vector<8x128xf32>
    %111 = vector.broadcast %10 : vector<1x128xf32> to vector<8x128xf32>
    %112 = arith.mulf %110, %111 : vector<8x128xf32>
    %113 = vector.broadcast %11 : vector<1x128xf32> to vector<8x128xf32>
    %114 = arith.addf %112, %113 : vector<8x128xf32>
    %c0_41 = arith.constant 0 : index
    %c0_42 = arith.constant 0 : index
    %115 = vector.load %arg13[%c0_41, %c0_42] : memref<8x128xf32, #tpu.memory_space<vmem>>, vector<8x128xf32>
    tpu.vector_store %arg13[%c0_41, %c0_42], %114 {strides = array<i32>} : memref<8x128xf32, #tpu.memory_space<vmem>>, vector<8x128xf32>,
    %c2_i32 = arith.constant 2 : i32
    %116 = arith.cmpi eq, %arg1, %c2_i32 : i32
    %117 = arith.extui %116 : i1 to i32
    %c0_i32_43 = arith.constant 0 : i32
    %118 = arith.cmpi ne, %117, %c0_i32_43 : i32
    scf.if %118 {
      %c0_44 = arith.constant 0 : index
      %c0_45 = arith.constant 0 : index
      %c0_46 = arith.constant 0 : index
      %119 = vector.load %arg12[%c0_44, %c0_45, %c0_46] : memref<1x8x128xf32, #tpu.memory_space<vmem>>, vector<1x8x128xf32>
      %120 = vector.shape_cast %119 : vector<1x8x128xf32> to vector<8x128xf32>
      %121 = vector.shape_cast %114 : vector<8x128xf32> to vector<1x8x128xf32>
      tpu.vector_store %arg12[%c0_44, %c0_45, %c0_46], %121 {strides = array<i32>} : memref<1x8x128xf32, #tpu.memory_space<vmem>>, vector<1x8x128xf32>,
    } else {
    }
    return
  }
  func.func @transform_0(%arg0: i32, %arg1: i32) -> (i32, i32, i32) {
    %c0_i32 = arith.constant 0 : i32
    %c0_i32_0 = arith.constant 0 : i32
    %c0_i32_1 = arith.constant 0 : i32
    return %arg0, %c0_i32, %c0_i32_0 : i32, i32, i32
  }
  func.func @transform_1(%arg0: i32, %arg1: i32) -> (i32, i32) {
    %c0_i32 = arith.constant 0 : i32
    %c0_i32_0 = arith.constant 0 : i32
    %c0_i32_1 = arith.constant 0 : i32
    return %c0_i32, %c0_i32_0 : i32, i32
  }
  func.func @transform_2(%arg0: i32, %arg1: i32) -> (i32, i32) {
    %c0_i32 = arith.constant 0 : i32
    %c0_i32_0 = arith.constant 0 : i32
    %c0_i32_1 = arith.constant 0 : i32
    return %c0_i32, %c0_i32_0 : i32, i32
  }
  func.func @transform_3(%arg0: i32, %arg1: i32) -> (i32, i32, i32) {
    %c0_i32 = arith.constant 0 : i32
    %c0_i32_0 = arith.constant 0 : i32
    %c0_i32_1 = arith.constant 0 : i32
    return %arg1, %c0_i32, %c0_i32_0 : i32, i32, i32
  }
  func.func @transform_4(%arg0: i32, %arg1: i32) -> (i32, i32, i32) {
    %c0_i32 = arith.constant 0 : i32
    %c0_i32_0 = arith.constant 0 : i32
    %c0_i32_1 = arith.constant 0 : i32
    return %arg1, %c0_i32, %c0_i32_0 : i32, i32, i32
  }
  func.func @transform_5(%arg0: i32, %arg1: i32) -> (i32, i32, i32) {
    %c0_i32 = arith.constant 0 : i32
    %c0_i32_0 = arith.constant 0 : i32
    %c0_i32_1 = arith.constant 0 : i32
    return %arg1, %c0_i32, %c0_i32_0 : i32, i32, i32
  }
  func.func @transform_6(%arg0: i32, %arg1: i32) -> (i32, i32, i32) {
    %c0_i32 = arith.constant 0 : i32
    %c0_i32_0 = arith.constant 0 : i32
    %c0_i32_1 = arith.constant 0 : i32
    return %arg1, %c0_i32, %c0_i32_0 : i32, i32, i32
  }
  func.func @transform_7(%arg0: i32, %arg1: i32) -> (i32, i32, i32) {
    %c0_i32 = arith.constant 0 : i32
    %c0_i32_0 = arith.constant 0 : i32
    %c0_i32_1 = arith.constant 0 : i32
    return %arg1, %c0_i32, %c0_i32_0 : i32, i32, i32
  }
  func.func @transform_8(%arg0: i32, %arg1: i32) -> (i32, i32, i32) {
    %c0_i32 = arith.constant 0 : i32
    %c0_i32_0 = arith.constant 0 : i32
    %c0_i32_1 = arith.constant 0 : i32
    return %arg1, %c0_i32, %c0_i32_0 : i32, i32, i32
  }
  func.func @transform_9(%arg0: i32, %arg1: i32) -> (i32, i32, i32) {
    %c0_i32 = arith.constant 0 : i32
    %c0_i32_0 = arith.constant 0 : i32
    %c0_i32_1 = arith.constant 0 : i32
    return %arg1, %c0_i32, %c0_i32_0 : i32, i32, i32
  }
  func.func @transform_10(%arg0: i32, %arg1: i32) -> (i32, i32, i32) {
    %c0_i32 = arith.constant 0 : i32
    %c0_i32_0 = arith.constant 0 : i32
    %c0_i32_1 = arith.constant 0 : i32
    return %arg0, %c0_i32, %c0_i32_0 : i32, i32, i32
  }
}

</mosaic_0001>

<llo_original>
// kernel: stock_encoder_forward.1
$region0: #{stock_encoder_forward.1}
  #allocation0 [shape = 'u32[]', space=smem, size = 0x4, offset = 0x4, fixed_abs, tag = 'smem constant byte address 0x4 - core index']
  #allocation1 [shape = 'u32[144,128]{1,0:T(1,128)}', space=vmem, size = 0x12000, scoped, tag = 'internal scratch']
  #allocation2 [shape = 'f32[8,128]{1,0:T(8,128)}', space=vmem, size = 0x1000, scoped, tag = 'scratch operand']
  %s0 = inlined_call_operand.vmem [shape: f32[2,8,128], index: 0, kind: input, shape index: {}]
  %s1 = inlined_call_operand.vmem [shape: bf16[128,128], index: 1, kind: input, shape index: {}]
  %s2 = inlined_call_operand.vmem [shape: f32[8,128], index: 2, kind: input, shape index: {}]
  %s3 = inlined_call_operand.hbm [shape: bf16[3,128,384], index: 3, kind: input, shape index: {}]
  %s4 = inlined_call_operand.hbm [shape: f32[3,1,384], index: 4, kind: input, shape index: {}]
  %s5 = inlined_call_operand.hbm [shape: bf16[3,128,128], index: 5, kind: input, shape index: {}]
  %s6 = inlined_call_operand.hbm [shape: bf16[3,128,256], index: 6, kind: input, shape index: {}]
  %s7 = inlined_call_operand.hbm [shape: f32[3,1,256], index: 7, kind: input, shape index: {}]
  %s8 = inlined_call_operand.hbm [shape: bf16[3,256,128], index: 8, kind: input, shape index: {}]
  %s9 = inlined_call_operand.hbm [shape: f32[3,8,128], index: 9, kind: input, shape index: {}]
  %s10 = inlined_call_operand.hbm [shape: f32[2,8,128], index: 10, kind: output, shape index: {}]
  %s11 = sld [smem:[#allocation0]]
  $region109: #{stock_encoder_forward.1} parent=0
    _
  %s13 = ssub.s32 1, %s11
  %s14 = scalar_select 0, %s13, %s11
  $region1: #{stock_encoder_forward.1} parent=0
    #allocation3 [shape = 'u8[196608]{0}', space=vmem, size = 0x30000, scoped, tag = 'input window, operand 3']
    #allocation4 [shape = 's32[2]{0}', space=sflag, size = 0x8, scoped, tag = 'scoped memory for stock_encoder_forward.1']
    #allocation5 [shape = 's32[2]{0}', space=sflag, size = 0x8, scoped, tag = 'scoped memory for stock_encoder_forward.1']
    #allocation6 [shape = 'u8[3072]{0}', space=vmem, size = 0xc00, scoped, tag = 'input window, operand 4']
    #allocation7 [shape = 's32[2]{0}', space=sflag, size = 0x8, scoped, tag = 'scoped memory for stock_encoder_forward.1']
    #allocation8 [shape = 'u8[65536]{0}', space=vmem, size = 0x10000, scoped, tag = 'input window, operand 5']
    #allocation9 [shape = 'u8[131072]{0}', space=vmem, size = 0x20000, scoped, tag = 'input window, operand 6']
    #allocation10 [shape = 's32[2]{0}', space=sflag, size = 0x8, scoped, tag = 'scoped memory for stock_encoder_forward.1']
    #allocation11 [shape = 'u8[2048]{0}', space=vmem, size = 0x800, scoped, tag = 'input window, operand 7']
    #allocation12 [shape = 'u8[131072]{0}', space=vmem, size = 0x20000, scoped, tag = 'input window, operand 8']
    #allocation13 [shape = 's32[2]{0}', space=sflag, size = 0x8, scoped, tag = 'scoped memory for stock_encoder_forward.1']
    #allocation14 [shape = 'u8[8192]{0}', space=vmem, size = 0x2000, scoped, tag = 'input window, operand 9']
    #allocation15 [shape = 'u8[8192]{0}', space=vmem, size = 0x2000, scoped, tag = 'output window, operand 0']
    %15 = vsyncpa [#allocation4], 0
    %s16 = scalar_lea.sflag [#allocation4], 1
    %17 = vsyncpa %s16, 0
    %18 = vsyncpa [#allocation7], 0
    %s19 = scalar_lea.sflag [#allocation7], 1
    %20 = vsyncpa %s19, 0
    %21 = vsyncpa [#allocation10], 0
    %s22 = scalar_lea.sflag [#allocation10], 1
    %23 = vsyncpa %s22, 0
    %24 = vsyncpa [#allocation13], 0
    %s25 = scalar_lea.sflag [#allocation13], 1
    %26 = vsyncpa %s25, 0
    %27 = vsyncpa [#allocation5], 0
    %s28 = scalar_lea.sflag [#allocation5], 1
    %29 = vsyncpa %s28, 0
    loop: start=0, step=1, limit=8
    $region2: #{stock_encoder_forward.1} parent=1 // loop_pre_header
      _
    $region3: #{stock_encoder_forward.1} parent=1 // loop_header
      %s31 = sphi 0, %s35
      %p32 = scmp.ge.s32.totalorder %s31, 8
      %s38 = sphi 0, %s50
      %s39 = sphi 0, %s46
      %s40 = sphi 0, %s38
      %s41 = sphi 0, %s39
      %s42 = sphi 0, %s40
      %s43 = sphi 0, %s41
      %s53 = sphi 0, %s55
      %s56 = sphi 0, %s53
      %s57 = sphi 0, %s56
      %s73 = sphi 0, %s57
      %s77 = sphi 0, %s77
      %s79 = sphi 0, %s77
      %s80 = sphi 0, %s79
      %s94 = sphi 0, %s80
      %s98 = sphi 0, %s98
      %s100 = sphi 0, %s98
      %s101 = sphi 0, %s100
      %s115 = sphi 0, %s101
      %s121 = sphi 0, %s123
      %s124 = sphi 0, %s121
      %s125 = sphi 0, %s124
      %s141 = sphi 0, %s125
      %s147 = sphi 0, %s149
      %s150 = sphi 0, %s147
      %s151 = sphi 0, %s150
      %s167 = sphi 0, %s151
      %s173 = sphi 0, %s175
      %s176 = sphi 0, %s173
      %s177 = sphi 0, %s176
      %s193 = sphi 0, %s177
      %s199 = sphi 0, %s201
      %s202 = sphi 0, %s199
      %s203 = sphi 0, %s202
      %s219 = sphi 0, %s203
      %s225 = sphi 0, %s227
      %s228 = sphi 0, %s225
      %s229 = sphi 0, %s228
      %s245 = sphi 0, %s229
      %s251 = sphi 0, %s253
      %s254 = sphi 0, %s251
      %s255 = sphi 0, %s254
      %s271 = sphi 0, %s255
      %s277 = sphi 0, %s279
      %s280 = sphi 0, %s277
      %s281 = sphi 0, %s280
      %s297 = sphi 0, %s281
      %s303 = sphi 0, %s305
      %s306 = sphi 0, %s303
      %s307 = sphi 0, %s306
      %s323 = sphi 0, %s307
    $region4: #{stock_encoder_forward.1} parent=1 // loop_header_branch
      %34 = sbr.rel (%p32) target = $region8
    $region5: #{stock_encoder_forward.1} parent=1 // loop_body
      %s36 = ssub.s32 %s31, 1
      %s37 = ssub.s32 %s31, 2
      %s44 = sadd.s32 1, %s39
      %p45 = scmp.ge.s32.totalorder %s44, 3
      %s46 = scalar_select %p45, 0, %s44
      %s47 = sadd.s32 1, %s38
      %s48 = scalar_select %p45, %s47, %s38
      %p49 = scmp.ge.s32.totalorder %s48, 2
      %s50 = scalar_select %p49, 0, %s48
      %s51 = ssub.s32 %s38, %s50
      %p52 = scmp.eq.s32.totalorder %s51, 0
      %s54 = sadd.s32 %s53, 1
      %s55 = scalar_select %p52, %s53, %s54
      %p58 = pneg %p52
      %p59 = scmp.eq.s32.totalorder %s31, 5
      %p60 = por %p58, %p59
      %p61 = scmp.ne.s32.totalorder %s53, %s56
      %p62 = scmp.eq.s32.totalorder %s31, 0
      %p63 = por %p61, %p62
      %p64 = scmp.ne.s32.totalorder %s53, %s56
      %p65 = scmp.eq.s32.totalorder %s36, 5
      %p66 = por %p64, %p65
      %p67 = scmp.ne.s32.totalorder %s56, %s57
      %p68 = scmp.eq.s32.totalorder %s36, 0
      %p69 = por %p67, %p68
      %p70 = scmp.ne.s32.totalorder %s56, %s57
      %p71 = scmp.eq.s32.totalorder %s37, 5
      %p72 = por %p70, %p71
      %p74 = scmp.ne.s32.totalorder %s57, %s73
      %p75 = scmp.eq.s32.totalorder %s37, 0
      %p76 = por %p74, %p75
      %s78 = sadd.s32 %s77, 1
      %p81 = scmp.eq.s32.totalorder %s31, 5
      %p82 = scmp.ne.s32.totalorder %s77, %s79
      %p83 = scmp.eq.s32.totalorder %s31, 0
      %p84 = por %p82, %p83
      %p85 = scmp.ne.s32.totalorder %s77, %s79
      %p86 = scmp.eq.s32.totalorder %s36, 5
      %p87 = por %p85, %p86
      %p88 = scmp.ne.s32.totalorder %s79, %s80
      %p89 = scmp.eq.s32.totalorder %s36, 0
      %p90 = por %p88, %p89
      %p91 = scmp.ne.s32.totalorder %s79, %s80
      %p92 = scmp.eq.s32.totalorder %s37, 5
      %p93 = por %p91, %p92
      %p95 = scmp.ne.s32.totalorder %s80, %s94
      %p96 = scmp.eq.s32.totalorder %s37, 0
      %p97 = por %p95, %p96
      %s99 = sadd.s32 %s98, 1
      %p102 = scmp.eq.s32.totalorder %s31, 5
      %p103 = scmp.ne.s32.totalorder %s98, %s100
      %p104 = scmp.eq.s32.totalorder %s31, 0
      %p105 = por %p103, %p104
      %p106 = scmp.ne.s32.totalorder %s98, %s100
      %p107 = scmp.eq.s32.totalorder %s36, 5
      %p108 = por %p106, %p107
      %p109 = scmp.ne.s32.totalorder %s100, %s101
      %p110 = scmp.eq.s32.totalorder %s36, 0
      %p111 = por %p109, %p110
      %p112 = scmp.ne.s32.totalorder %s100, %s101
      %p113 = scmp.eq.s32.totalorder %s37, 5
      %p114 = por %p112, %p113
      %p116 = scmp.ne.s32.totalorder %s101, %s115
      %p117 = scmp.eq.s32.totalorder %s37, 0
      %p118 = por %p116, %p117
      %s119 = ssub.s32 %s39, %s46
      %p120 = scmp.eq.s32.totalorder %s119, 0
      %s122 = sadd.s32 %s121, 1
      %s123 = scalar_select %p120, %s121, %s122
      %p126 = pneg %p120
      %p127 = scmp.eq.s32.totalorder %s31, 5
      %p128 = por %p126, %p127
      %p129 = scmp.ne.s32.totalorder %s121, %s124
      %p130 = scmp.eq.s32.totalorder %s31, 0
      %p131 = por %p129, %p130
      %p132 = scmp.ne.s32.totalorder %s121, %s124
      %p133 = scmp.eq.s32.totalorder %s36, 5
      %p134 = por %p132, %p133
      %p135 = scmp.ne.s32.totalorder %s124, %s125
      %p136 = scmp.eq.s32.totalorder %s36, 0
      %p137 = por %p135, %p136
      %p138 = scmp.ne.s32.totalorder %s124, %s125
      %p139 = scmp.eq.s32.totalorder %s37, 5
      %p140 = por %p138, %p139
      %p142 = scmp.ne.s32.totalorder %s125, %s141
      %p143 = scmp.eq.s32.totalorder %s37, 0
      %p144 = por %p142, %p143
      %s145 = ssub.s32 %s39, %s46
      %p146 = scmp.eq.s32.totalorder %s145, 0
      %s148 = sadd.s32 %s147, 1
      %s149 = scalar_select %p146, %s147, %s148
      %p152 = pneg %p146
      %p153 = scmp.eq.s32.totalorder %s31, 5
      %p154 = por %p152, %p153
      %p155 = scmp.ne.s32.totalorder %s147, %s150
      %p156 = scmp.eq.s32.totalorder %s31, 0
      %p157 = por %p155, %p156
      %p158 = scmp.ne.s32.totalorder %s147, %s150
      %p159 = scmp.eq.s32.totalorder %s36, 5
      %p160 = por %p158, %p159
      %p161 = scmp.ne.s32.totalorder %s150, %s151
      %p162 = scmp.eq.s32.totalorder %s36, 0
      %p163 = por %p161, %p162
      %p164 = scmp.ne.s32.totalorder %s150, %s151
      %p165 = scmp.eq.s32.totalorder %s37, 5
      %p166 = por %p164, %p165
      %p168 = scmp.ne.s32.totalorder %s151, %s167
      %p169 = scmp.eq.s32.totalorder %s37, 0
      %p170 = por %p168, %p169
      %s171 = ssub.s32 %s39, %s46
      %p172 = scmp.eq.s32.totalorder %s171, 0
      %s174 = sadd.s32 %s173, 1
      %s175 = scalar_select %p172, %s173, %s174
      %p178 = pneg %p172
      %p179 = scmp.eq.s32.totalorder %s31, 5
      %p180 = por %p178, %p179
      %p181 = scmp.ne.s32.totalorder %s173, %s176
      %p182 = scmp.eq.s32.totalorder %s31, 0
      %p183 = por %p181, %p182
      %p184 = scmp.ne.s32.totalorder %s173, %s176
      %p185 = scmp.eq.s32.totalorder %s36, 5
      %p186 = por %p184, %p185
      %p187 = scmp.ne.s32.totalorder %s176, %s177
      %p188 = scmp.eq.s32.totalorder %s36, 0
      %p189 = por %p187, %p188
      %p190 = scmp.ne.s32.totalorder %s176, %s177
      %p191 = scmp.eq.s32.totalorder %s37, 5
      %p192 = por %p190, %p191
      %p194 = scmp.ne.s32.totalorder %s177, %s193
      %p195 = scmp.eq.s32.totalorder %s37, 0
      %p196 = por %p194, %p195
      %s197 = ssub.s32 %s39, %s46
      %p198 = scmp.eq.s32.totalorder %s197, 0
      %s200 = sadd.s32 %s199, 1
      %s201 = scalar_select %p198, %s199, %s200
      %p204 = pneg %p198
      %p205 = scmp.eq.s32.totalorder %s31, 5
      %p206 = por %p204, %p205
      %p207 = scmp.ne.s32.totalorder %s199, %s202
      %p208 = scmp.eq.s32.totalorder %s31, 0
      %p209 = por %p207, %p208
      %p210 = scmp.ne.s32.totalorder %s199, %s202
      %p211 = scmp.eq.s32.totalorder %s36, 5
      %p212 = por %p210, %p211
      %p213 = scmp.ne.s32.totalorder %s202, %s203
      %p214 = scmp.eq.s32.totalorder %s36, 0
      %p215 = por %p213, %p214
      %p216 = scmp.ne.s32.totalorder %s202, %s203
      %p217 = scmp.eq.s32.totalorder %s37, 5
      %p218 = por %p216, %p217
      %p220 = scmp.ne.s32.totalorder %s203, %s219
      %p221 = scmp.eq.s32.totalorder %s37, 0
      %p222 = por %p220, %p221
      %s223 = ssub.s32 %s39, %s46
      %p224 = scmp.eq.s32.totalorder %s223, 0
      %s226 = sadd.s32 %s225, 1
      %s227 = scalar_select %p224, %s225, %s226
      %p230 = pneg %p224
      %p231 = scmp.eq.s32.totalorder %s31, 5
      %p232 = por %p230, %p231
      %p233 = scmp.ne.s32.totalorder %s225, %s228
      %p234 = scmp.eq.s32.totalorder %s31, 0
      %p235 = por %p233, %p234
      %p236 = scmp.ne.s32.totalorder %s225, %s228
      %p237 = scmp.eq.s32.totalorder %s36, 5
      %p238 = por %p236, %p237
      %p239 = scmp.ne.s32.totalorder %s228, %s229
      %p240 = scmp.eq.s32.totalorder %s36, 0
      %p241 = por %p239, %p240
      %p242 = scmp.ne.s32.totalorder %s228, %s229
      %p243 = scmp.eq.s32.totalorder %s37, 5
      %p244 = por %p242, %p243
      %p246 = scmp.ne.s32.totalorder %s229, %s245
      %p247 = scmp.eq.s32.totalorder %s37, 0
      %p248 = por %p246, %p247
      %s249 = ssub.s32 %s39, %s46
      %p250 = scmp.eq.s32.totalorder %s249, 0
      %s252 = sadd.s32 %s251, 1
      %s253 = scalar_select %p250, %s251, %s252
      %p256 = pneg %p250
      %p257 = scmp.eq.s32.totalorder %s31, 5
      %p258 = por %p256, %p257
      %p259 = scmp.ne.s32.totalorder %s251, %s254
      %p260 = scmp.eq.s32.totalorder %s31, 0
      %p261 = por %p259, %p260
      %p262 = scmp.ne.s32.totalorder %s251, %s254
      %p263 = scmp.eq.s32.totalorder %s36, 5
      %p264 = por %p262, %p263
      %p265 = scmp.ne.s32.totalorder %s254, %s255
      %p266 = scmp.eq.s32.totalorder %s36, 0
      %p267 = por %p265, %p266
      %p268 = scmp.ne.s32.totalorder %s254, %s255
      %p269 = scmp.eq.s32.totalorder %s37, 5
      %p270 = por %p268, %p269
      %p272 = scmp.ne.s32.totalorder %s255, %s271
      %p273 = scmp.eq.s32.totalorder %s37, 0
      %p274 = por %p272, %p273
      %s275 = ssub.s32 %s39, %s46
      %p276 = scmp.eq.s32.totalorder %s275, 0
      %s278 = sadd.s32 %s277, 1
      %s279 = scalar_select %p276, %s277, %s278
      %p282 = pneg %p276
      %p283 = scmp.eq.s32.totalorder %s31, 5
      %p284 = por %p282, %p283
      %p285 = scmp.ne.s32.totalorder %s277, %s280
      %p286 = scmp.eq.s32.totalorder %s31, 0
      %p287 = por %p285, %p286
      %p288 = scmp.ne.s32.totalorder %s277, %s280
      %p289 = scmp.eq.s32.totalorder %s36, 5
      %p290 = por %p288, %p289
      %p291 = scmp.ne.s32.totalorder %s280, %s281
      %p292 = scmp.eq.s32.totalorder %s36, 0
      %p293 = por %p291, %p292
      %p294 = scmp.ne.s32.totalorder %s280, %s281
      %p295 = scmp.eq.s32.totalorder %s37, 5
      %p296 = por %p294, %p295
      %p298 = scmp.ne.s32.totalorder %s281, %s297
      %p299 = scmp.eq.s32.totalorder %s37, 0
      %p300 = por %p298, %p299
      %s301 = ssub.s32 %s38, %s50
      %p302 = scmp.eq.s32.totalorder %s301, 0
      %s304 = sadd.s32 %s303, 1
      %s305 = scalar_select %p302, %s303, %s304
      %p308 = pneg %p302
      %p309 = scmp.eq.s32.totalorder %s31, 5
      %p310 = por %p308, %p309
      %p311 = scmp.ne.s32.totalorder %s303, %s306
      %p312 = scmp.eq.s32.totalorder %s31, 0
      %p313 = por %p311, %p312
      %p314 = scmp.ne.s32.totalorder %s303, %s306
      %p315 = scmp.eq.s32.totalorder %s36, 5
      %p316 = por %p314, %p315
      %p317 = scmp.ne.s32.totalorder %s306, %s307
      %p318 = scmp.eq.s32.totalorder %s36, 0
      %p319 = por %p317, %p318
      %p320 = scmp.ne.s32.totalorder %s306, %s307
      %p321 = scmp.eq.s32.totalorder %s37, 5
      %p322 = por %p320, %p321
      %p324 = scmp.ne.s32.totalorder %s307, %s323
      %p325 = scmp.eq.s32.totalorder %s37, 0
      %p326 = por %p324, %p325
      %p327 = scmp.le.s32.totalorder 1, %s31
      %p328 = scmp.lt.s32.totalorder %s31, 7
      %p329 = pnand %p327, %p328
      %p330 = pneg %p329
      // Predicated region
      $region9: #{stock_encoder_forward.1} parent=5 // pred_check
        _
      $region10: #{stock_encoder_forward.1} parent=5 // pred_check_branch
        %332 = sbr.rel (%p329) target = $region12
      $region11: #{stock_encoder_forward.1} parent=5 // pred_region
        %s333 = ssub.s32 %s31, 1
        // Predicated region
        $region13: #{stock_encoder_forward.1} parent=11 // pred_check
          %p334 = pneg %p90
        $region14: #{stock_encoder_forward.1} parent=11 // pred_check_branch
          %336 = sbr.rel (%p334) target = $region16
        $region15: #{stock_encoder_forward.1} parent=11 // pred_region
          _
        $region16: #{stock_encoder_forward.1} parent=11 // pred_fallthru
          _
        // Predicated region
        $region17: #{stock_encoder_forward.1} parent=11 // pred_check
          %p337 = pneg %p111
        $region18: #{stock_encoder_forward.1} parent=11 // pred_check_branch
          %339 = sbr.rel (%p337) target = $region20
        $region19: #{stock_encoder_forward.1} parent=11 // pred_region
          _
        $region20: #{stock_encoder_forward.1} parent=11 // pred_fallthru
          _
      $region12: #{stock_encoder_forward.1} parent=5 // pred_fallthru
        _
      %p340 = scmp.lt.s32.totalorder %s31, 6
      // Predicated region
      $region21: #{stock_encoder_forward.1} parent=5 // pred_check
        %p341 = pneg %p340
      $region22: #{stock_encoder_forward.1} parent=5 // pred_check_branch
        %343 = sbr.rel (%p341) target = $region24
      $region23: #{stock_encoder_forward.1} parent=5 // pred_region
        // Predicated region
        $region25: #{stock_encoder_forward.1} parent=23 // pred_check
          %p344 = pneg %p63
        $region26: #{stock_encoder_forward.1} parent=23 // pred_check_branch
          %346 = sbr.rel (%p344) target = $region28
        $region27: #{stock_encoder_forward.1} parent=23 // pred_region
          %p347 = scmp.lt.s32.totalorder %s38, 1
          %s348 = scalar_select %p347, %s38, 1
          %s349 = smul.addr %s348, 8
          %s350 = scalar_lea.vmem %s0, %s349
        $region28: #{stock_encoder_forward.1} parent=23 // pred_fallthru
          _
        // Predicated region
        $region29: #{stock_encoder_forward.1} parent=23 // pred_check
          %p351 = pneg %p131
        $region30: #{stock_encoder_forward.1} parent=23 // pred_check_branch
          %353 = sbr.rel (%p351) target = $region32
        $region31: #{stock_encoder_forward.1} parent=23 // pred_region
          %s354 = sand.u32 %s121, 1
          %s355 = scalar_lea.sflag [#allocation4], %s354
          %s356 = sand.u32 %s121, 1
          %s357 = smul.addr %s356, 192
          %s358 = scalar_lea.vmem [#allocation3], %s357
          %s360 = ssub.s32 3072, 3072
          %361 = vsyncadd %s355, %s360
          %s362 = smul.addr %s39, 48
          %s363 = smul.addr %s362, 64
          %s364 = scalar_lea.hbm %s3, %s363
          %s365 = sshll.u32 %s358, 4
          %s366 = int_to_ptr.vmem [resolvable:$true] %s365
          %371 = dma.hbm_to_vmem [thread:$0]  %s364, 3072, %s366, %s355, 192, 192, 12
        $region32: #{stock_encoder_forward.1} parent=23 // pred_fallthru
          _
        // Predicated region
        $region33: #{stock_encoder_forward.1} parent=23 // pred_check
          %p372 = pneg %p157
        $region34: #{stock_encoder_forward.1} parent=23 // pred_check_branch
          %374 = sbr.rel (%p372) target = $region36
        $region35: #{stock_encoder_forward.1} parent=23 // pred_region
          %s375 = sand.u32 %s31, 1
          %s376 = scalar_lea.sflag [#allocation7], %s375
          %s377 = sand.u32 %s147, 1
          %s378 = smul.addr %s377, 3
          %s379 = scalar_lea.vmem [#allocation6], %s378
          %s381 = ssub.s32 48, 48
          %382 = vsyncadd %s376, %s381
          %s383 = smul.addr %s39, 3
          %s384 = smul.addr %s383, 16
          %s385 = scalar_lea.hbm %s4, %s384
          %s387 = sshll.u32 %s379, 4
          %s388 = int_to_ptr.vmem [resolvable:$true] %s387
          %390 = dma.hbm_to_vmem [thread:$0]  %s385, 48, %s388, %s376
        $region36: #{stock_encoder_forward.1} parent=23 // pred_fallthru
          _
        // Predicated region
        $region37: #{stock_encoder_forward.1} parent=23 // pred_check
          %p391 = pneg %p183
        $region38: #{stock_encoder_forward.1} parent=23 // pred_check_branch
          %393 = sbr.rel (%p391) target = $region40
        $region39: #{stock_encoder_forward.1} parent=23 // pred_region
          %s394 = sand.u32 %s31, 1
          %s395 = scalar_lea.sflag [#allocation7], %s394
          %s396 = sand.u32 %s173, 1
          %s397 = smul.addr %s396, 64
          %s398 = scalar_lea.vmem [#allocation8], %s397
          %s400 = ssub.s32 1024, 1024
          %401 = vsyncadd %s395, %s400
          %s402 = smul.addr %s39, 16
          %s403 = smul.addr %s402, 64
          %s404 = scalar_lea.hbm %s5, %s403
          %s405 = sshll.u32 %s398, 4
          %s406 = int_to_ptr.vmem [resolvable:$true] %s405
          %411 = dma.hbm_to_vmem [thread:$0]  %s404, 1024, %s406, %s395, 64, 64, 4
        $region40: #{stock_encoder_forward.1} parent=23 // pred_fallthru
          _
        // Predicated region
        $region41: #{stock_encoder_forward.1} parent=23 // pred_check
          %p412 = pneg %p209
        $region42: #{stock_encoder_forward.1} parent=23 // pred_check_branch
          %414 = sbr.rel (%p412) target = $region44
        $region43: #{stock_encoder_forward.1} parent=23 // pred_region
          %s415 = sand.u32 %s31, 1
          %s416 = scalar_lea.sflag [#allocation10], %s415
          %s417 = sand.u32 %s199, 1
          %s418 = smul.addr %s417, 128
          %s419 = scalar_lea.vmem [#allocation9], %s418
          %s421 = ssub.s32 2048, 2048
          %422 = vsyncadd %s416, %s421
          %s423 = smul.addr %s39, 32
          %s424 = smul.addr %s423, 64
          %s425 = scalar_lea.hbm %s6, %s424
          %s426 = sshll.u32 %s419, 4
          %s427 = int_to_ptr.vmem [resolvable:$true] %s426
          %432 = dma.hbm_to_vmem [thread:$0]  %s425, 2048, %s427, %s416, 128, 128, 8
        $region44: #{stock_encoder_forward.1} parent=23 // pred_fallthru
          _
        // Predicated region
        $region45: #{stock_encoder_forward.1} parent=23 // pred_check
          %p433 = pneg %p235
        $region46: #{stock_encoder_forward.1} parent=23 // pred_check_branch
          %435 = sbr.rel (%p433) target = $region48
        $region47: #{stock_encoder_forward.1} parent=23 // pred_region
          %s436 = sand.u32 %s31, 1
          %s437 = scalar_lea.sflag [#allocation10], %s436
          %s438 = sand.u32 %s225, 1
          %s439 = smul.addr %s438, 2
          %s440 = scalar_lea.vmem [#allocation11], %s439
          %s442 = ssub.s32 32, 32
          %443 = vsyncadd %s437, %s442
          %s444 = smul.addr %s39, 2
          %s445 = smul.addr %s444, 16
          %s446 = scalar_lea.hbm %s7, %s445
          %s448 = sshll.u32 %s440, 4
          %s449 = int_to_ptr.vmem [resolvable:$true] %s448
          %451 = dma.hbm_to_vmem [thread:$0]  %s446, 32, %s449, %s437
        $region48: #{stock_encoder_forward.1} parent=23 // pred_fallthru
          _
        // Predicated region
        $region49: #{stock_encoder_forward.1} parent=23 // pred_check
          %p452 = pneg %p261
        $region50: #{stock_encoder_forward.1} parent=23 // pred_check_branch
          %454 = sbr.rel (%p452) target = $region52
        $region51: #{stock_encoder_forward.1} parent=23 // pred_region
          %s455 = sand.u32 %s31, 1
          %s456 = scalar_lea.sflag [#allocation13], %s455
          %s457 = sand.u32 %s251, 1
          %s458 = smul.addr %s457, 128
          %s459 = scalar_lea.vmem [#allocation12], %s458
          %s461 = ssub.s32 2048, 2048
          %462 = vsyncadd %s456, %s461
          %s463 = smul.addr %s39, 32
          %s464 = smul.addr %s463, 64
          %s465 = scalar_lea.hbm %s8, %s464
          %s466 = sshll.u32 %s459, 4
          %s467 = int_to_ptr.vmem [resolvable:$true] %s466
          %472 = dma.hbm_to_vmem [thread:$0]  %s465, 2048, %s467, %s456, 64, 64, 4
        $region52: #{stock_encoder_forward.1} parent=23 // pred_fallthru
          _
        // Predicated region
        $region53: #{stock_encoder_forward.1} parent=23 // pred_check
          %p473 = pneg %p287
        $region54: #{stock_encoder_forward.1} parent=23 // pred_check_branch
          %475 = sbr.rel (%p473) target = $region56
        $region55: #{stock_encoder_forward.1} parent=23 // pred_region
          %s476 = sand.u32 %s31, 1
          %s477 = scalar_lea.sflag [#allocation13], %s476
          %s478 = sand.u32 %s277, 1
          %s479 = smul.addr %s478, 8
          %s480 = scalar_lea.vmem [#allocation14], %s479
          %s482 = ssub.s32 128, 128
          %483 = vsyncadd %s477, %s482
          %s484 = smul.addr %s39, 128
          %s485 = scalar_lea.hbm %s9, %s484
          %s487 = sshll.u32 %s480, 4
          %s488 = int_to_ptr.vmem [resolvable:$true] %s487
          %490 = dma.hbm_to_vmem [thread:$0]  %s485, 128, %s488, %s477
        $region56: #{stock_encoder_forward.1} parent=23 // pred_fallthru
          _
      $region24: #{stock_encoder_forward.1} parent=5 // pred_fallthru
        _
      %p491 = scmp.le.s32.totalorder 1, %s31
      %p492 = scmp.lt.s32.totalorder %s31, 7
      %p493 = pnand %p491, %p492
      %p494 = pneg %p493
      // Predicated region
      $region57: #{stock_encoder_forward.1} parent=5 // pred_check
        _
      $region58: #{stock_encoder_forward.1} parent=5 // pred_check_branch
        %496 = sbr.rel (%p493) target = $region60
      $region59: #{stock_encoder_forward.1} parent=5 // pred_region
        %s497 = ssub.s32 %s31, 1
        %s498 = sand.u32 %s124, 1
        %s499 = scalar_lea.sflag [#allocation4], %s498
        %s500 = sand.u32 %s124, 1
        %s501 = smul.addr %s500, 192
        %s502 = scalar_lea.vmem [#allocation3], %s501
        // Predicated region
        $region61: #{stock_encoder_forward.1} parent=59 // pred_check
          %p503 = pneg %p137
        $region62: #{stock_encoder_forward.1} parent=59 // pred_check_branch
          %505 = sbr.rel (%p503) target = $region64
        $region63: #{stock_encoder_forward.1} parent=59 // pred_region
          %506 = dma.done %s499, 3072
        $region64: #{stock_encoder_forward.1} parent=59 // pred_fallthru
          _
        %s507 = sand.u32 %s36, 1
        %s508 = scalar_lea.sflag [#allocation7], %s507
        %s509 = sand.u32 %s150, 1
        %s510 = smul.addr %s509, 3
        %s511 = scalar_lea.vmem [#allocation6], %s510
        // Predicated region
        $region65: #{stock_encoder_forward.1} parent=59 // pred_check
          %p512 = pneg %p163
        $region66: #{stock_encoder_forward.1} parent=59 // pred_check_branch
          %514 = sbr.rel (%p512) target = $region68
        $region67: #{stock_encoder_forward.1} parent=59 // pred_region
          %515 = dma.done %s508, 48
        $region68: #{stock_encoder_forward.1} parent=59 // pred_fallthru
          _
        %s516 = sand.u32 %s36, 1
        %s517 = scalar_lea.sflag [#allocation7], %s516
        %s518 = sand.u32 %s176, 1
        %s519 = smul.addr %s518, 64
        %s520 = scalar_lea.vmem [#allocation8], %s519
        // Predicated region
        $region69: #{stock_encoder_forward.1} parent=59 // pred_check
          %p521 = pneg %p189
        $region70: #{stock_encoder_forward.1} parent=59 // pred_check_branch
          %523 = sbr.rel (%p521) target = $region72
        $region71: #{stock_encoder_forward.1} parent=59 // pred_region
          %524 = dma.done %s517, 1024
        $region72: #{stock_encoder_forward.1} parent=59 // pred_fallthru
          _
        %s525 = sand.u32 %s36, 1
        %s526 = scalar_lea.sflag [#allocation10], %s525
        %s527 = sand.u32 %s202, 1
        %s528 = smul.addr %s527, 128
        %s529 = scalar_lea.vmem [#allocation9], %s528
        // Predicated region
        $region73: #{stock_encoder_forward.1} parent=59 // pred_check
          %p530 = pneg %p215
        $region74: #{stock_encoder_forward.1} parent=59 // pred_check_branch
          %532 = sbr.rel (%p530) target = $region76
        $region75: #{stock_encoder_forward.1} parent=59 // pred_region
          %533 = dma.done %s526, 2048
        $region76: #{stock_encoder_forward.1} parent=59 // pred_fallthru
          _
        %s534 = sand.u32 %s36, 1
        %s535 = scalar_lea.sflag [#allocation10], %s534
        %s536 = sand.u32 %s228, 1
        %s537 = smul.addr %s536, 2
        %s538 = scalar_lea.vmem [#allocation11], %s537
        // Predicated region
        $region77: #{stock_encoder_forward.1} parent=59 // pred_check
          %p539 = pneg %p241
        $region78: #{stock_encoder_forward.1} parent=59 // pred_check_branch
          %541 = sbr.rel (%p539) target = $region80
        $region79: #{stock_encoder_forward.1} parent=59 // pred_region
          %542 = dma.done %s535, 32
        $region80: #{stock_encoder_forward.1} parent=59 // pred_fallthru
          _
        %s543 = sand.u32 %s36, 1
        %s544 = scalar_lea.sflag [#allocation13], %s543
        %s545 = sand.u32 %s254, 1
        %s546 = smul.addr %s545, 128
        %s547 = scalar_lea.vmem [#allocation12], %s546
        // Predicated region
        $region81: #{stock_encoder_forward.1} parent=59 // pred_check
          %p548 = pneg %p267
        $region82: #{stock_encoder_forward.1} parent=59 // pred_check_branch
          %550 = sbr.rel (%p548) target = $region84
        $region83: #{stock_encoder_forward.1} parent=59 // pred_region
          %551 = dma.done %s544, 2048
        $region84: #{stock_encoder_forward.1} parent=59 // pred_fallthru
          _
        %s552 = sand.u32 %s36, 1
        %s553 = scalar_lea.sflag [#allocation13], %s552
        %s554 = sand.u32 %s280, 1
        %s555 = smul.addr %s554, 8
        %s556 = scalar_lea.vmem [#allocation14], %s555
        // Predicated region
        $region85: #{stock_encoder_forward.1} parent=59 // pred_check
          %p557 = pneg %p293
        $region86: #{stock_encoder_forward.1} parent=59 // pred_check_branch
          %559 = sbr.rel (%p557) target = $region88
        $region87: #{stock_encoder_forward.1} parent=59 // pred_region
          %560 = dma.done %s553, 128
        $region88: #{stock_encoder_forward.1} parent=59 // pred_fallthru
          _
        %p561 = scmp.lt.s32.totalorder %s40, 1
        %s562 = scalar_select %p561, %s40, 1
        %s563 = smul.addr %s562, 8
        %s564 = scalar_lea.vmem %s0, %s563
        %p565 = pneg %p69
        %p566 = pneg %p66
        %p567 = pneg %p90
        %p568 = pneg %p87
        %p569 = pneg %p111
        %p570 = pneg %p108
        %s571 = sand.u32 %s124, 1
        %s572 = scalar_lea.sflag [#allocation4], %s571
        %s573 = sand.u32 %s124, 1
        %s574 = smul.addr %s573, 192
        %s575 = scalar_lea.vmem [#allocation3], %s574
        %p576 = pneg %p137
        %p577 = pneg %p134
        %s578 = sand.u32 %s36, 1
        %s579 = scalar_lea.sflag [#allocation7], %s578
        %s580 = sand.u32 %s150, 1
        %s581 = smul.addr %s580, 3
        %s582 = scalar_lea.vmem [#allocation6], %s581
        %p583 = pneg %p163
        %p584 = pneg %p160
        %s585 = sand.u32 %s36, 1
        %s586 = scalar_lea.sflag [#allocation7], %s585
        %s587 = sand.u32 %s176, 1
        %s588 = smul.addr %s587, 64
        %s589 = scalar_lea.vmem [#allocation8], %s588
        %p590 = pneg %p189
        %p591 = pneg %p186
        %s592 = sand.u32 %s36, 1
        %s593 = scalar_lea.sflag [#allocation10], %s592
        %s594 = sand.u32 %s202, 1
        %s595 = smul.addr %s594, 128
        %s596 = scalar_lea.vmem [#allocation9], %s595
        %p597 = pneg %p215
        %p598 = pneg %p212
        %s599 = sand.u32 %s36, 1
        %s600 = scalar_lea.sflag [#allocation10], %s599
        %s601 = sand.u32 %s228, 1
        %s602 = smul.addr %s601, 2
        %s603 = scalar_lea.vmem [#allocation11], %s602
        %p604 = pneg %p241
        %p605 = pneg %p238
        %s606 = sand.u32 %s36, 1
        %s607 = scalar_lea.sflag [#allocation13], %s606
        %s608 = sand.u32 %s254, 1
        %s609 = smul.addr %s608, 128
        %s610 = scalar_lea.vmem [#allocation12], %s609
        %p611 = pneg %p267
        %p612 = pneg %p264
        %s613 = sand.u32 %s36, 1
        %s614 = scalar_lea.sflag [#allocation13], %s613
        %s615 = sand.u32 %s280, 1
        %s616 = smul.addr %s615, 8
        %s617 = scalar_lea.vmem [#allocation14], %s616
        %p618 = pneg %p293
        %p619 = pneg %p290
        %p620 = pneg %p319
        %p621 = pneg %p316
        %s622 = sand.u32 %s306, 1
        %s623 = scalar_lea.sflag [#allocation5], %s622
        %s624 = sand.u32 %s306, 1
        %s625 = smul.addr %s624, 8
        %s626 = scalar_lea.vmem [#allocation15], %s625
        %p627 = scmp.lt.s32.totalorder %s40, 1
        %s628 = scalar_select %p627, %s40, 1
        %s629 = smul.addr %s628, 8
        %s630 = scalar_lea.vmem %s0, %s629
        %p632 = scmp.eq.s32.totalorder %s41, 0
        // Predicated region
        $region89: #{stock_encoder_forward.1} parent=59 // pred_check
          %p633 = pneg %p632
        $region90: #{stock_encoder_forward.1} parent=59 // pred_check_branch
          %635 = sbr.rel (%p633) target = $region92
        $region91: #{stock_encoder_forward.1} parent=59 // pred_region
          %v636 = vld [vmem:[%s630] sm:$0xff]
          %v637 = vpack.c.bf16 %v636, %v636
          %v638 = vld [vmem:[%s1] sm:$0xf]
          %v639 = vld [vmem:[%s1 + $0x4] sm:$0xf]
          %v640 = vld [vmem:[%s1 + $0x8] sm:$0xf]
          %v641 = vld [vmem:[%s1 + $0xc] sm:$0xf]
          %v642 = vld [vmem:[%s1 + $0x10] sm:$0xf]
          %v643 = vld [vmem:[%s1 + $0x14] sm:$0xf]
          %v644 = vld [vmem:[%s1 + $0x18] sm:$0xf]
          %v645 = vld [vmem:[%s1 + $0x1c] sm:$0xf]
          %v646 = vld [vmem:[%s1 + $0x20] sm:$0xf]
          %v647 = vld [vmem:[%s1 + $0x24] sm:$0xf]
          %v648 = vld [vmem:[%s1 + $0x28] sm:$0xf]
          %v649 = vld [vmem:[%s1 + $0x2c] sm:$0xf]
          %v650 = vld [vmem:[%s1 + $0x30] sm:$0xf]
          %v651 = vld [vmem:[%s1 + $0x34] sm:$0xf]
          %v652 = vld [vmem:[%s1 + $0x38] sm:$0xf]
          %v653 = vld [vmem:[%s1 + $0x3c] sm:$0xf]
          %v654 = vld [vmem:[%s2] sm:$0xff]
          %v671 = vunpack.c.l.b16 %v638
          %v672 = vunpack.c.l.b16 %v639
          %v673 = vunpack.c.l.b16 %v640
          %v674 = vunpack.c.l.b16 %v641
          %v675 = vunpack.c.l.b16 %v642
          %v676 = vunpack.c.l.b16 %v643
          %v677 = vunpack.c.l.b16 %v644
          %v678 = vunpack.c.l.b16 %v645
          %v679 = vunpack.c.l.b16 %v646
          %v680 = vunpack.c.l.b16 %v647
          %v681 = vunpack.c.l.b16 %v648
          %v682 = vunpack.c.l.b16 %v649
          %v683 = vunpack.c.l.b16 %v650
          %v684 = vunpack.c.l.b16 %v651
          %v685 = vunpack.c.l.b16 %v652
          %v686 = vunpack.c.l.b16 %v653
          %v687 = vpack.c.b16 %v672, %v671
          %v688 = vpack.c.b16 %v674, %v673
          %v689 = vpack.c.b16 %v676, %v675
          %v690 = vpack.c.b16 %v678, %v677
          %v691 = vpack.c.b16 %v680, %v679
          %v692 = vpack.c.b16 %v682, %v681
          %v693 = vpack.c.b16 %v684, %v683
          %v694 = vpack.c.b16 %v686, %v685
          %703 = vmatprep.subr.bf16.mxu0 0
          %704 = vmatpush1.bf16.msra.mxu0 %v687
          %705 = vmatprep.subr.bf16.mxu0 0
          %706 = vmatpush1.bf16.msra.mxu0 %v688
          %707 = vmatprep.subr.bf16.mxu0 0
          %708 = vmatpush1.bf16.msra.mxu0 %v689
          %709 = vmatprep.subr.bf16.mxu0 0
          %710 = vmatpush1.bf16.msra.mxu0 %v690
          %711 = vmatprep.subr.bf16.mxu0 0
          %712 = vmatpush1.bf16.msra.mxu0 %v691
          %713 = vmatprep.subr.bf16.mxu0 0
          %714 = vmatpush1.bf16.msra.mxu0 %v692
          %715 = vmatprep.subr.bf16.mxu0 0
          %716 = vmatpush1.bf16.msra.mxu0 %v693
          %717 = vmatprep.subr.bf16.mxu0 0
          %718 = vmatpush1.bf16.msra.mxu0 %v694
          %719 = vmatprep.subr.bf16.mxu0 0
          %720 = vmatpush1.bf16.msra.mxu0 0
          %721 = vmatprep.subr.bf16.mxu0 0
          %722 = vmatpush1.bf16.msra.mxu0 0
          %723 = vmatprep.subr.bf16.mxu0 0
          %724 = vmatpush1.bf16.msra.mxu0 0
          %725 = vmatprep.subr.bf16.mxu0 0
          %726 = vmatpush1.bf16.msra.mxu0 0
          %727 = vmatprep.subr.bf16.mxu0 0
          %728 = vmatpush1.bf16.msra.mxu0 0
          %729 = vmatprep.subr.bf16.mxu0 0
          %730 = vmatpush1.bf16.msra.mxu0 0
          %731 = vmatprep.subr.bf16.mxu0 0
          %732 = vmatpush1.bf16.msra.mxu0 0
          %733 = vmatprep.subr.bf16.mxu0 0
          %734 = vmatpush1.bf16.msra.mxu0 0
          %735 = vmatprep.mubr.bf16.mxu0 0
          %736 = vmatmul.mubr.bf16.gmra.mrb[0].mxu0 %v637
          %v737 = vpop.f32.mrb[0].mxu0
          %v738 = vadd.f32 %v654, %v737
          %v739 = vpop.f32.mrb[0].mxu0
          %v740 = vpop.f32.mrb[0].mxu0
          %v741 = vpop.f32.mrb[0].mxu0
          %742 = vdwg.mxu0
          %743 = vst [vmem:[#allocation2] sm:$0xff] %v738
        $region92: #{stock_encoder_forward.1} parent=59 // pred_fallthru
          _
        %v744 = vld [vmem:[#allocation2] sm:$0xff]
        %v745 = vld [vmem:[%s556] sm:$0xff]
        %v746 = vpack.c.bf16 %v744, %v744
        %v747 = vld [vmem:[%s502] sm:$0xff]
        %v748 = vld [vmem:[%s502 + $0x8] sm:$0xf]
        %v749 = vld [vmem:[%s502 + $0xc] sm:$0xff]
        %v750 = vld [vmem:[%s502 + $0x14] sm:$0xf]
        %v751 = vld [vmem:[%s502 + $0x18] sm:$0xff]
        %v752 = vld [vmem:[%s502 + $0x20] sm:$0xf]
        %v753 = vld [vmem:[%s502 + $0x24] sm:$0xff]
        %v754 = vld [vmem:[%s502 + $0x2c] sm:$0xf]
        %v755 = vld [vmem:[%s502 + $0x30] sm:$0xff]
        %v756 = vld [vmem:[%s502 + $0x38] sm:$0xf]
        %v757 = vld [vmem:[%s502 + $0x3c] sm:$0xff]
        %v758 = vld [vmem:[%s502 + $0x44] sm:$0xf]
        %v759 = vld [vmem:[%s502 + $0x48] sm:$0xff]
        %v760 = vld [vmem:[%s502 + $0x50] sm:$0xf]
        %v761 = vld [vmem:[%s502 + $0x54] sm:$0xff]
        %v762 = vld [vmem:[%s502 + $0x5c] sm:$0xf]
        %v763 = vld [vmem:[%s502 + $0x60] sm:$0xff]
        %v764 = vld [vmem:[%s502 + $0x68] sm:$0xf]
        %v765 = vld [vmem:[%s502 + $0x6c] sm:$0xff]
        %v766 = vld [vmem:[%s502 + $0x74] sm:$0xf]
        %v767 = vld [vmem:[%s502 + $0x78] sm:$0xff]
        %v768 = vld [vmem:[%s502 + $0x80] sm:$0xf]
        %v769 = vld [vmem:[%s502 + $0x84] sm:$0xff]
        %v770 = vld [vmem:[%s502 + $0x8c] sm:$0xf]
        %v771 = vld [vmem:[%s502 + $0x90] sm:$0xff]
        %v772 = vld [vmem:[%s502 + $0x98] sm:$0xf]
        %v773 = vld [vmem:[%s502 + $0x9c] sm:$0xff]
        %v774 = vld [vmem:[%s502 + $0xa4] sm:$0xf]
        %v775 = vld [vmem:[%s502 + $0xa8] sm:$0xff]
        %v776 = vld [vmem:[%s502 + $0xb0] sm:$0xf]
        %v777 = vld [vmem:[%s502 + $0xb4] sm:$0xff]
        %v778 = vld [vmem:[%s502 + $0xbc] sm:$0xf]
        %v779 = vld [vmem:[%s511] sm:$0x7]
        %v781 = vlaneseq
        %v782 = vshrl.u32 %v781, 7
        %v783 = vsub.s32 0, %v782
        %v784 = vrot.slane %v779, %v783
        %v785 = vlaneseq
        %v786 = vshrl.u32 %v785, 7
        %v787 = vsub.s32 1, %v786
        %v788 = vrot.slane %v779, %v787
        %v789 = vlaneseq
        %v790 = vshrl.u32 %v789, 7
        %v791 = vsub.s32 2, %v790
        %v792 = vrot.slane %v779, %v791
        %v828 = vunpack.c.l.b16 %v747
        %v829 = vunpack.c.h.b16 %v747
        %v830 = vunpack.c.l.b16 %v748
        %v831 = vunpack.c.l.b16 %v749
        %v832 = vunpack.c.h.b16 %v749
        %v833 = vunpack.c.l.b16 %v750
        %v834 = vunpack.c.l.b16 %v751
        %v835 = vunpack.c.h.b16 %v751
        %v836 = vunpack.c.l.b16 %v752
        %v837 = vunpack.c.l.b16 %v753
        %v838 = vunpack.c.h.b16 %v753
        %v839 = vunpack.c.l.b16 %v754
        %v840 = vunpack.c.l.b16 %v755
        %v841 = vunpack.c.h.b16 %v755
        %v842 = vunpack.c.l.b16 %v756
        %v843 = vunpack.c.l.b16 %v757
        %v844 = vunpack.c.h.b16 %v757
        %v845 = vunpack.c.l.b16 %v758
        %v846 = vunpack.c.l.b16 %v759
        %v847 = vunpack.c.h.b16 %v759
        %v848 = vunpack.c.l.b16 %v760
        %v849 = vunpack.c.l.b16 %v761
        %v850 = vunpack.c.h.b16 %v761
        %v851 = vunpack.c.l.b16 %v762
        %v852 = vunpack.c.l.b16 %v763
        %v853 = vunpack.c.h.b16 %v763
        %v854 = vunpack.c.l.b16 %v764
        %v855 = vunpack.c.l.b16 %v765
        %v856 = vunpack.c.h.b16 %v765
        %v857 = vunpack.c.l.b16 %v766
        %v858 = vunpack.c.l.b16 %v767
        %v859 = vunpack.c.h.b16 %v767
        %v860 = vunpack.c.l.b16 %v768
        %v861 = vunpack.c.l.b16 %v769
        %v862 = vunpack.c.h.b16 %v769
        %v863 = vunpack.c.l.b16 %v770
        %v864 = vunpack.c.l.b16 %v771
        %v865 = vunpack.c.h.b16 %v771
        %v866 = vunpack.c.l.b16 %v772
        %v867 = vunpack.c.l.b16 %v773
        %v868 = vunpack.c.h.b16 %v773
        %v869 = vunpack.c.l.b16 %v774
        %v870 = vunpack.c.l.b16 %v775
        %v871 = vunpack.c.h.b16 %v775
        %v872 = vunpack.c.l.b16 %v776
        %v873 = vunpack.c.l.b16 %v777
        %v874 = vunpack.c.h.b16 %v777
        %v875 = vunpack.c.l.b16 %v778
        %v876 = vpack.c.b16 %v831, %v828
        %v877 = vpack.c.b16 %v832, %v829
        %v878 = vpack.c.b16 %v833, %v830
        %v879 = vpack.c.b16 %v837, %v834
        %v880 = vpack.c.b16 %v838, %v835
        %v881 = vpack.c.b16 %v839, %v836
        %v882 = vpack.c.b16 %v843, %v840
        %v883 = vpack.c.b16 %v844, %v841
        %v884 = vpack.c.b16 %v845, %v842
        %v885 = vpack.c.b16 %v849, %v846
        %v886 = vpack.c.b16 %v850, %v847
        %v887 = vpack.c.b16 %v851, %v848
        %v888 = vpack.c.b16 %v855, %v852
        %v889 = vpack.c.b16 %v856, %v853
        %v890 = vpack.c.b16 %v857, %v854
        %v891 = vpack.c.b16 %v861, %v858
        %v892 = vpack.c.b16 %v862, %v859
        %v893 = vpack.c.b16 %v863, %v860
        %v894 = vpack.c.b16 %v867, %v864
        %v895 = vpack.c.b16 %v868, %v865
        %v896 = vpack.c.b16 %v869, %v866
        %v897 = vpack.c.b16 %v873, %v870
        %v898 = vpack.c.b16 %v874, %v871
        %v899 = vpack.c.b16 %v875, %v872
        %924 = vmatprep.subr.bf16.mxu0 %v877
        %925 = vmatpush1.bf16.msra.mxu0 %v876
        %926 = vmatprep.subr.bf16.mxu0 %v880
        %927 = vmatpush1.bf16.msra.mxu0 %v879
        %928 = vmatprep.subr.bf16.mxu0 %v883
        %929 = vmatpush1.bf16.msra.mxu0 %v882
        %930 = vmatprep.subr.bf16.mxu0 %v886
        %931 = vmatpush1.bf16.msra.mxu0 %v885
        %932 = vmatprep.subr.bf16.mxu0 %v889
        %933 = vmatpush1.bf16.msra.mxu0 %v888
        %934 = vmatprep.subr.bf16.mxu0 %v892
        %935 = vmatpush1.bf16.msra.mxu0 %v891
        %936 = vmatprep.subr.bf16.mxu0 %v895
        %937 = vmatpush1.bf16.msra.mxu0 %v894
        %938 = vmatprep.subr.bf16.mxu0 %v898
        %939 = vmatpush1.bf16.msra.mxu0 %v897
        %940 = vmatprep.subr.bf16.mxu0 0
        %941 = vmatpush1.bf16.msra.mxu0 0
        %942 = vmatprep.subr.bf16.mxu0 0
        %943 = vmatpush1.bf16.msra.mxu0 0
        %944 = vmatprep.subr.bf16.mxu0 0
        %945 = vmatpush1.bf16.msra.mxu0 0
        %946 = vmatprep.subr.bf16.mxu0 0
        %947 = vmatpush1.bf16.msra.mxu0 0
        %948 = vmatprep.subr.bf16.mxu0 0
        %949 = vmatpush1.bf16.msra.mxu0 0
        %950 = vmatprep.subr.bf16.mxu0 0
        %951 = vmatpush1.bf16.msra.mxu0 0
        %952 = vmatprep.subr.bf16.mxu0 0
        %953 = vmatpush1.bf16.msra.mxu0 0
        %954 = vmatprep.subr.bf16.mxu0 0
        %955 = vmatpush1.bf16.msra.mxu0 0
        %956 = vmatprep.mubr.bf16.mxu0 0
        %957 = vmatmul.mubr.bf16.gmra.mrb[0].mxu0 %v746
        %v958 = vpop.f32.mrb[0].mxu0
        %v959 = vadd.f32 %v784, %v958
        %v960 = vpop.f32.mrb[0].mxu0
        %v961 = vadd.f32 %v788, %v960
        %v962 = vpop.f32.mrb[0].mxu0
        %v963 = vpop.f32.mrb[0].mxu0
        %964 = vdwg.mxu0
        %965 = vmatprep.subr.bf16.mxu0 0
        %966 = vmatpush1.bf16.msra.mxu0 %v878
        %967 = vmatprep.subr.bf16.mxu0 0
        %968 = vmatpush1.bf16.msra.mxu0 %v881
        %969 = vmatprep.subr.bf16.mxu0 0
        %970 = vmatpush1.bf16.msra.mxu0 %v884
        %971 = vmatprep.subr.bf16.mxu0 0
        %972 = vmatpush1.bf16.msra.mxu0 %v887
        %973 = vmatprep.subr.bf16.mxu0 0
        %974 = vmatpush1.bf16.msra.mxu0 %v890
        %975 = vmatprep.subr.bf16.mxu0 0
        %976 = vmatpush1.bf16.msra.mxu0 %v893
        %977 = vmatprep.subr.bf16.mxu0 0
        %978 = vmatpush1.bf16.msra.mxu0 %v896
        %979 = vmatprep.subr.bf16.mxu0 0
        %980 = vmatpush1.bf16.msra.mxu0 %v899
        %981 = vmatprep.subr.bf16.mxu0 0
        %982 = vmatpush1.bf16.msra.mxu0 0
        %983 = vmatprep.subr.bf16.mxu0 0
        %984 = vmatpush1.bf16.msra.mxu0 0
        %985 = vmatprep.subr.bf16.mxu0 0
        %986 = vmatpush1.bf16.msra.mxu0 0
        %987 = vmatprep.subr.bf16.mxu0 0
        %988 = vmatpush1.bf16.msra.mxu0 0
        %989 = vmatprep.subr.bf16.mxu0 0
        %990 = vmatpush1.bf16.msra.mxu0 0
        %991 = vmatprep.subr.bf16.mxu0 0
        %992 = vmatpush1.bf16.msra.mxu0 0
        %993 = vmatprep.subr.bf16.mxu0 0
        %994 = vmatpush1.bf16.msra.mxu0 0
        %995 = vmatprep.subr.bf16.mxu0 0
        %996 = vmatpush1.bf16.msra.mxu0 0
        %997 = vmatprep.mubr.bf16.mxu0 0
        %998 = vmatmul.mubr.bf16.gmra.mrb[0].mxu0 %v746
        %v999 = vpop.f32.mrb[0].mxu0
        %v1000 = vadd.f32 %v792, %v999
        %v1001 = vpop.f32.mrb[0].mxu0
        %v1002 = vpop.f32.mrb[0].mxu0
        %v1003 = vpop.f32.mrb[0].mxu0
        %1004 = vdwg.mxu0
        %1006 = vrot.lane.b32.xlu0 %v959, 112
        %v1007 = vpop.permute.xlu0 %1006
        %1009 = vrot.lane.b32.xlu0 %v959, 96
        %v1010 = vpop.permute.xlu0 %1009
        %1012 = vrot.lane.b32.xlu0 %v959, 80
        %v1013 = vpop.permute.xlu0 %1012
        %1015 = vrot.lane.b32.xlu0 %v959, 64
        %v1016 = vpop.permute.xlu0 %1015
        %1018 = vrot.lane.b32.xlu0 %v959, 48
        %v1019 = vpop.permute.xlu0 %1018
        %1021 = vrot.lane.b32.xlu0 %v959, 32
        %v1022 = vpop.permute.xlu0 %1021
        %1024 = vrot.lane.b32.xlu0 %v959, 16
        %v1025 = vpop.permute.xlu0 %1024
        %v1027 = vcombine.low %v959, %v1010
        %v1028 = vcombine.high %v959, %v1010
        %v1030 = vunpack.c.l.s4 1983009808
        %v1031 = vunpack.c.0.s8 %v1030
        %v1032 = vlaneseq
        %v1033 = vshrl.u32 %v1032, 7
        %v1034 = vsub.s32 %v1031, %v1033
        %v1035 = vrot.slane %v1027, %v1034
        %v1037 = vunpack.c.l.s4 1983009808
        %v1038 = vunpack.c.0.s8 %v1037
        %v1039 = vlaneseq
        %v1040 = vshrl.u32 %v1039, 7
        %v1041 = vsub.s32 %v1038, %v1040
        %v1042 = vrot.slane %v1028, %v1041
        %v1043 = vcombine.low %v1007, %v1013
        %v1044 = vcombine.high %v1007, %v1013
        %v1046 = vunpack.c.l.s4 1983009808
        %v1047 = vunpack.c.0.s8 %v1046
        %v1048 = vlaneseq
        %v1049 = vshrl.u32 %v1048, 7
        %v1050 = vsub.s32 %v1047, %v1049
        %v1051 = vrot.slane %v1043, %v1050
        %v1053 = vunpack.c.l.s4 1983009808
        %v1054 = vunpack.c.0.s8 %v1053
        %v1055 = vlaneseq
        %v1056 = vshrl.u32 %v1055, 7
        %v1057 = vsub.s32 %v1054, %v1056
        %v1058 = vrot.slane %v1044, %v1057
        %v1059 = vcombine.low %v1016, %v1022
        %v1060 = vcombine.high %v1016, %v1022
        %v1062 = vunpack.c.l.s4 1983009808
        %v1063 = vunpack.c.0.s8 %v1062
        %v1064 = vlaneseq
        %v1065 = vshrl.u32 %v1064, 7
        %v1066 = vsub.s32 %v1063, %v1065
        %v1067 = vrot.slane %v1059, %v1066
        %v1069 = vunpack.c.l.s4 1983009808
        %v1070 = vunpack.c.0.s8 %v1069
        %v1071 = vlaneseq
        %v1072 = vshrl.u32 %v1071, 7
        %v1073 = vsub.s32 %v1070, %v1072
        %v1074 = vrot.slane %v1060, %v1073
        %v1075 = vcombine.low %v1019, %v1025
        %v1076 = vcombine.high %v1019, %v1025
        %v1078 = vunpack.c.l.s4 1983009808
        %v1079 = vunpack.c.0.s8 %v1078
        %v1080 = vlaneseq
        %v1081 = vshrl.u32 %v1080, 7
        %v1082 = vsub.s32 %v1079, %v1081
        %v1083 = vrot.slane %v1075, %v1082
        %v1085 = vunpack.c.l.s4 1983009808
        %v1086 = vunpack.c.0.s8 %v1085
        %v1087 = vlaneseq
        %v1088 = vshrl.u32 %v1087, 7
        %v1089 = vsub.s32 %v1086, %v1088
        %v1090 = vrot.slane %v1076, %v1089
        %v1091 = vcombine.low %v1035, %v1051
        %v1092 = vcombine.high %v1035, %v1051
        %v1094 = vunpack.c.l.s4 1934713408
        %v1095 = vunpack.c.0.s8 %v1094
        %v1096 = vlaneseq
        %v1097 = vshrl.u32 %v1096, 7
        %v1098 = vsub.s32 %v1095, %v1097
        %v1099 = vrot.slane %v1091, %v1098
        %v1101 = vunpack.c.l.s4 1934713408
        %v1102 = vunpack.c.0.s8 %v1101
        %v1103 = vlaneseq
        %v1104 = vshrl.u32 %v1103, 7
        %v1105 = vsub.s32 %v1102, %v1104
        %v1106 = vrot.slane %v1092, %v1105
        %v1107 = vcombine.low %v1042, %v1058
        %v1108 = vcombine.high %v1042, %v1058
        %v1110 = vunpack.c.l.s4 1934713408
        %v1111 = vunpack.c.0.s8 %v1110
        %v1112 = vlaneseq
        %v1113 = vshrl.u32 %v1112, 7
        %v1114 = vsub.s32 %v1111, %v1113
        %v1115 = vrot.slane %v1107, %v1114
        %v1117 = vunpack.c.l.s4 1934713408
        %v1118 = vunpack.c.0.s8 %v1117
        %v1119 = vlaneseq
        %v1120 = vshrl.u32 %v1119, 7
        %v1121 = vsub.s32 %v1118, %v1120
        %v1122 = vrot.slane %v1108, %v1121
        %v1123 = vcombine.low %v1067, %v1083
        %v1124 = vcombine.high %v1067, %v1083
        %v1126 = vunpack.c.l.s4 1934713408
        %v1127 = vunpack.c.0.s8 %v1126
        %v1128 = vlaneseq
        %v1129 = vshrl.u32 %v1128, 7
        %v1130 = vsub.s32 %v1127, %v1129
        %v1131 = vrot.slane %v1123, %v1130
        %v1133 = vunpack.c.l.s4 1934713408
        %v1134 = vunpack.c.0.s8 %v1133
        %v1135 = vlaneseq
        %v1136 = vshrl.u32 %v1135, 7
        %v1137 = vsub.s32 %v1134, %v1136
        %v1138 = vrot.slane %v1124, %v1137
        %v1139 = vcombine.low %v1074, %v1090
        %v1140 = vcombine.high %v1074, %v1090
        %v1142 = vunpack.c.l.s4 1934713408
        %v1143 = vunpack.c.0.s8 %v1142
        %v1144 = vlaneseq
        %v1145 = vshrl.u32 %v1144, 7
        %v1146 = vsub.s32 %v1143, %v1145
        %v1147 = vrot.slane %v1139, %v1146
        %v1149 = vunpack.c.l.s4 1934713408
        %v1150 = vunpack.c.0.s8 %v1149
        %v1151 = vlaneseq
        %v1152 = vshrl.u32 %v1151, 7
        %v1153 = vsub.s32 %v1150, %v1152
        %v1154 = vrot.slane %v1140, %v1153
        %v1155 = vcombine.low %v1099, %v1131
        %v1156 = vcombine.high %v1099, %v1131
        %v1157 = vcombine.low %v1106, %v1138
        %v1158 = vcombine.high %v1106, %v1138
        %v1159 = vcombine.low %v1115, %v1147
        %v1160 = vcombine.high %v1115, %v1147
        %v1161 = vcombine.low %v1122, %v1154
        %v1162 = vcombine.high %v1122, %v1154
        %v1163 = vcombine.low %v1155, %v1157
        %v1164 = vcombine.high %v1155, %v1157
        %v1166 = vunpack.c.l.s4 1983009808
        %v1167 = vunpack.c.0.s8 %v1166
        %v1168 = vlaneseq
        %v1169 = vshrl.u32 %v1168, 7
        %v1170 = vsub.s32 %v1167, %v1169
        %v1171 = vrot.slane %v1163, %v1170
        %v1173 = vunpack.c.l.s4 1983009808
        %v1174 = vunpack.c.0.s8 %v1173
        %v1175 = vlaneseq
        %v1176 = vshrl.u32 %v1175, 7
        %v1177 = vsub.s32 %v1174, %v1176
        %v1178 = vrot.slane %v1164, %v1177
        %v1179 = vcombine.low %v1156, %v1158
        %v1180 = vcombine.high %v1156, %v1158
        %v1182 = vunpack.c.l.s4 1983009808
        %v1183 = vunpack.c.0.s8 %v1182
        %v1184 = vlaneseq
        %v1185 = vshrl.u32 %v1184, 7
        %v1186 = vsub.s32 %v1183, %v1185
        %v1187 = vrot.slane %v1179, %v1186
        %v1189 = vunpack.c.l.s4 1983009808
        %v1190 = vunpack.c.0.s8 %v1189
        %v1191 = vlaneseq
        %v1192 = vshrl.u32 %v1191, 7
        %v1193 = vsub.s32 %v1190, %v1192
        %v1194 = vrot.slane %v1180, %v1193
        %v1195 = vcombine.low %v1159, %v1161
        %v1196 = vcombine.high %v1159, %v1161
        %v1198 = vunpack.c.l.s4 1983009808
        %v1199 = vunpack.c.0.s8 %v1198
        %v1200 = vlaneseq
        %v1201 = vshrl.u32 %v1200, 7
        %v1202 = vsub.s32 %v1199, %v1201
        %v1203 = vrot.slane %v1195, %v1202
        %v1205 = vunpack.c.l.s4 1983009808
        %v1206 = vunpack.c.0.s8 %v1205
        %v1207 = vlaneseq
        %v1208 = vshrl.u32 %v1207, 7
        %v1209 = vsub.s32 %v1206, %v1208
        %v1210 = vrot.slane %v1196, %v1209
        %v1211 = vcombine.low %v1160, %v1162
        %v1212 = vcombine.high %v1160, %v1162
        %v1214 = vunpack.c.l.s4 1983009808
        %v1215 = vunpack.c.0.s8 %v1214
        %v1216 = vlaneseq
        %v1217 = vshrl.u32 %v1216, 7
        %v1218 = vsub.s32 %v1215, %v1217
        %v1219 = vrot.slane %v1211, %v1218
        %v1221 = vunpack.c.l.s4 1983009808
        %v1222 = vunpack.c.0.s8 %v1221
        %v1223 = vlaneseq
        %v1224 = vshrl.u32 %v1223, 7
        %v1225 = vsub.s32 %v1222, %v1224
        %v1226 = vrot.slane %v1212, %v1225
        %v1227 = vcombine.low %v1171, %v1187
        %v1228 = vcombine.high %v1171, %v1187
        %v1230 = vunpack.c.l.s4 1934713408
        %v1231 = vunpack.c.0.s8 %v1230
        %v1232 = vlaneseq
        %v1233 = vshrl.u32 %v1232, 7
        %v1234 = vsub.s32 %v1231, %v1233
        %v1235 = vrot.slane %v1227, %v1234
        %v1237 = vunpack.c.l.s4 1934713408
        %v1238 = vunpack.c.0.s8 %v1237
        %v1239 = vlaneseq
        %v1240 = vshrl.u32 %v1239, 7
        %v1241 = vsub.s32 %v1238, %v1240
        %v1242 = vrot.slane %v1228, %v1241
        %v1243 = vcombine.low %v1178, %v1194
        %v1244 = vcombine.high %v1178, %v1194
        %v1246 = vunpack.c.l.s4 1934713408
        %v1247 = vunpack.c.0.s8 %v1246
        %v1248 = vlaneseq
        %v1249 = vshrl.u32 %v1248, 7
        %v1250 = vsub.s32 %v1247, %v1249
        %v1251 = vrot.slane %v1243, %v1250
        %v1253 = vunpack.c.l.s4 1934713408
        %v1254 = vunpack.c.0.s8 %v1253
        %v1255 = vlaneseq
        %v1256 = vshrl.u32 %v1255, 7
        %v1257 = vsub.s32 %v1254, %v1256
        %v1258 = vrot.slane %v1244, %v1257
        %v1259 = vcombine.low %v1203, %v1219
        %v1260 = vcombine.high %v1203, %v1219
        %v1262 = vunpack.c.l.s4 1934713408
        %v1263 = vunpack.c.0.s8 %v1262
        %v1264 = vlaneseq
        %v1265 = vshrl.u32 %v1264, 7
        %v1266 = vsub.s32 %v1263, %v1265
        %v1267 = vrot.slane %v1259, %v1266
        %v1269 = vunpack.c.l.s4 1934713408
        %v1270 = vunpack.c.0.s8 %v1269
        %v1271 = vlaneseq
        %v1272 = vshrl.u32 %v1271, 7
        %v1273 = vsub.s32 %v1270, %v1272
        %v1274 = vrot.slane %v1260, %v1273
        %v1275 = vcombine.low %v1210, %v1226
        %v1276 = vcombine.high %v1210, %v1226
        %v1278 = vunpack.c.l.s4 1934713408
        %v1279 = vunpack.c.0.s8 %v1278
        %v1280 = vlaneseq
        %v1281 = vshrl.u32 %v1280, 7
        %v1282 = vsub.s32 %v1279, %v1281
        %v1283 = vrot.slane %v1275, %v1282
        %v1285 = vunpack.c.l.s4 1934713408
        %v1286 = vunpack.c.0.s8 %v1285
        %v1287 = vlaneseq
        %v1288 = vshrl.u32 %v1287, 7
        %v1289 = vsub.s32 %v1286, %v1288
        %v1290 = vrot.slane %v1276, %v1289
        %v1291 = vcombine.low %v1235, %v1267
        %v1292 = vcombine.high %v1235, %v1267
        %v1293 = vcombine.low %v1242, %v1274
        %v1294 = vcombine.high %v1242, %v1274
        %v1295 = vcombine.low %v1251, %v1283
        %v1296 = vcombine.high %v1251, %v1283
        %v1297 = vcombine.low %v1258, %v1290
        %v1298 = vcombine.high %v1258, %v1290
        %1300 = vrot.lane.b32.xlu0 %v961, 112
        %v1301 = vpop.permute.xlu0 %1300
        %1303 = vrot.lane.b32.xlu0 %v961, 96
        %v1304 = vpop.permute.xlu0 %1303
        %1306 = vrot.lane.b32.xlu0 %v961, 80
        %v1307 = vpop.permute.xlu0 %1306
        %1309 = vrot.lane.b32.xlu0 %v961, 64
        %v1310 = vpop.permute.xlu0 %1309
        %1312 = vrot.lane.b32.xlu0 %v961, 48
        %v1313 = vpop.permute.xlu0 %1312
        %1315 = vrot.lane.b32.xlu0 %v961, 32
        %v1316 = vpop.permute.xlu0 %1315
        %1318 = vrot.lane.b32.xlu0 %v961, 16
        %v1319 = vpop.permute.xlu0 %1318
        %v1321 = vcombine.low %v961, %v1304
        %v1322 = vcombine.high %v961, %v1304
        %v1324 = vunpack.c.l.s4 1983009808
        %v1325 = vunpack.c.0.s8 %v1324
        %v1326 = vlaneseq
        %v1327 = vshrl.u32 %v1326, 7
        %v1328 = vsub.s32 %v1325, %v1327
        %v1329 = vrot.slane %v1321, %v1328
        %v1331 = vunpack.c.l.s4 1983009808
        %v1332 = vunpack.c.0.s8 %v1331
        %v1333 = vlaneseq
        %v1334 = vshrl.u32 %v1333, 7
        %v1335 = vsub.s32 %v1332, %v1334
        %v1336 = vrot.slane %v1322, %v1335
        %v1337 = vcombine.low %v1301, %v1307
        %v1338 = vcombine.high %v1301, %v1307
        %v1340 = vunpack.c.l.s4 1983009808
        %v1341 = vunpack.c.0.s8 %v1340
        %v1342 = vlaneseq
        %v1343 = vshrl.u32 %v1342, 7
        %v1344 = vsub.s32 %v1341, %v1343
        %v1345 = vrot.slane %v1337, %v1344
        %v1347 = vunpack.c.l.s4 1983009808
        %v1348 = vunpack.c.0.s8 %v1347
        %v1349 = vlaneseq
        %v1350 = vshrl.u32 %v1349, 7
        %v1351 = vsub.s32 %v1348, %v1350
        %v1352 = vrot.slane %v1338, %v1351
        %v1353 = vcombine.low %v1310, %v1316
        %v1354 = vcombine.high %v1310, %v1316
        %v1356 = vunpack.c.l.s4 1983009808
        %v1357 = vunpack.c.0.s8 %v1356
        %v1358 = vlaneseq
        %v1359 = vshrl.u32 %v1358, 7
        %v1360 = vsub.s32 %v1357, %v1359
        %v1361 = vrot.slane %v1353, %v1360
        %v1363 = vunpack.c.l.s4 1983009808
        %v1364 = vunpack.c.0.s8 %v1363
        %v1365 = vlaneseq
        %v1366 = vshrl.u32 %v1365, 7
        %v1367 = vsub.s32 %v1364, %v1366
        %v1368 = vrot.slane %v1354, %v1367
        %v1369 = vcombine.low %v1313, %v1319
        %v1370 = vcombine.high %v1313, %v1319
        %v1372 = vunpack.c.l.s4 1983009808
        %v1373 = vunpack.c.0.s8 %v1372
        %v1374 = vlaneseq
        %v1375 = vshrl.u32 %v1374, 7
        %v1376 = vsub.s32 %v1373, %v1375
        %v1377 = vrot.slane %v1369, %v1376
        %v1379 = vunpack.c.l.s4 1983009808
        %v1380 = vunpack.c.0.s8 %v1379
        %v1381 = vlaneseq
        %v1382 = vshrl.u32 %v1381, 7
        %v1383 = vsub.s32 %v1380, %v1382
        %v1384 = vrot.slane %v1370, %v1383
        %v1385 = vcombine.low %v1329, %v1345
        %v1386 = vcombine.high %v1329, %v1345
        %v1388 = vunpack.c.l.s4 1934713408
        %v1389 = vunpack.c.0.s8 %v1388
        %v1390 = vlaneseq
        %v1391 = vshrl.u32 %v1390, 7
        %v1392 = vsub.s32 %v1389, %v1391
        %v1393 = vrot.slane %v1385, %v1392
        %v1395 = vunpack.c.l.s4 1934713408
        %v1396 = vunpack.c.0.s8 %v1395
        %v1397 = vlaneseq
        %v1398 = vshrl.u32 %v1397, 7
        %v1399 = vsub.s32 %v1396, %v1398
        %v1400 = vrot.slane %v1386, %v1399
        %v1401 = vcombine.low %v1336, %v1352
        %v1402 = vcombine.high %v1336, %v1352
        %v1404 = vunpack.c.l.s4 1934713408
        %v1405 = vunpack.c.0.s8 %v1404
        %v1406 = vlaneseq
        %v1407 = vshrl.u32 %v1406, 7
        %v1408 = vsub.s32 %v1405, %v1407
        %v1409 = vrot.slane %v1401, %v1408
        %v1411 = vunpack.c.l.s4 1934713408
        %v1412 = vunpack.c.0.s8 %v1411
        %v1413 = vlaneseq
        %v1414 = vshrl.u32 %v1413, 7
        %v1415 = vsub.s32 %v1412, %v1414
        %v1416 = vrot.slane %v1402, %v1415
        %v1417 = vcombine.low %v1361, %v1377
        %v1418 = vcombine.high %v1361, %v1377
        %v1420 = vunpack.c.l.s4 1934713408
        %v1421 = vunpack.c.0.s8 %v1420
        %v1422 = vlaneseq
        %v1423 = vshrl.u32 %v1422, 7
        %v1424 = vsub.s32 %v1421, %v1423
        %v1425 = vrot.slane %v1417, %v1424
        %v1427 = vunpack.c.l.s4 1934713408
        %v1428 = vunpack.c.0.s8 %v1427
        %v1429 = vlaneseq
        %v1430 = vshrl.u32 %v1429, 7
        %v1431 = vsub.s32 %v1428, %v1430
        %v1432 = vrot.slane %v1418, %v1431
        %v1433 = vcombine.low %v1368, %v1384
        %v1434 = vcombine.high %v1368, %v1384
        %v1436 = vunpack.c.l.s4 1934713408
        %v1437 = vunpack.c.0.s8 %v1436
        %v1438 = vlaneseq
        %v1439 = vshrl.u32 %v1438, 7
        %v1440 = vsub.s32 %v1437, %v1439
        %v1441 = vrot.slane %v1433, %v1440
        %v1443 = vunpack.c.l.s4 1934713408
        %v1444 = vunpack.c.0.s8 %v1443
        %v1445 = vlaneseq
        %v1446 = vshrl.u32 %v1445, 7
        %v1447 = vsub.s32 %v1444, %v1446
        %v1448 = vrot.slane %v1434, %v1447
        %v1449 = vcombine.low %v1393, %v1425
        %v1450 = vcombine.high %v1393, %v1425
        %v1451 = vcombine.low %v1400, %v1432
        %v1452 = vcombine.high %v1400, %v1432
        %v1453 = vcombine.low %v1409, %v1441
        %v1454 = vcombine.high %v1409, %v1441
        %v1455 = vcombine.low %v1416, %v1448
        %v1456 = vcombine.high %v1416, %v1448
        %v1457 = vcombine.low %v1449, %v1451
        %v1458 = vcombine.high %v1449, %v1451
        %v1460 = vunpack.c.l.s4 1983009808
        %v1461 = vunpack.c.0.s8 %v1460
        %v1462 = vlaneseq
        %v1463 = vshrl.u32 %v1462, 7
        %v1464 = vsub.s32 %v1461, %v1463
        %v1465 = vrot.slane %v1457, %v1464
        %v1467 = vunpack.c.l.s4 1983009808
        %v1468 = vunpack.c.0.s8 %v1467
        %v1469 = vlaneseq
        %v1470 = vshrl.u32 %v1469, 7
        %v1471 = vsub.s32 %v1468, %v1470
        %v1472 = vrot.slane %v1458, %v1471
        %v1473 = vcombine.low %v1450, %v1452
        %v1474 = vcombine.high %v1450, %v1452
        %v1476 = vunpack.c.l.s4 1983009808
        %v1477 = vunpack.c.0.s8 %v1476
        %v1478 = vlaneseq
        %v1479 = vshrl.u32 %v1478, 7
        %v1480 = vsub.s32 %v1477, %v1479
        %v1481 = vrot.slane %v1473, %v1480
        %v1483 = vunpack.c.l.s4 1983009808
        %v1484 = vunpack.c.0.s8 %v1483
        %v1485 = vlaneseq
        %v1486 = vshrl.u32 %v1485, 7
        %v1487 = vsub.s32 %v1484, %v1486
        %v1488 = vrot.slane %v1474, %v1487
        %v1489 = vcombine.low %v1453, %v1455
        %v1490 = vcombine.high %v1453, %v1455
        %v1492 = vunpack.c.l.s4 1983009808
        %v1493 = vunpack.c.0.s8 %v1492
        %v1494 = vlaneseq
        %v1495 = vshrl.u32 %v1494, 7
        %v1496 = vsub.s32 %v1493, %v1495
        %v1497 = vrot.slane %v1489, %v1496
        %v1499 = vunpack.c.l.s4 1983009808
        %v1500 = vunpack.c.0.s8 %v1499
        %v1501 = vlaneseq
        %v1502 = vshrl.u32 %v1501, 7
        %v1503 = vsub.s32 %v1500, %v1502
        %v1504 = vrot.slane %v1490, %v1503
        %v1505 = vcombine.low %v1454, %v1456
        %v1506 = vcombine.high %v1454, %v1456
        %v1508 = vunpack.c.l.s4 1983009808
        %v1509 = vunpack.c.0.s8 %v1508
        %v1510 = vlaneseq
        %v1511 = vshrl.u32 %v1510, 7
        %v1512 = vsub.s32 %v1509, %v1511
        %v1513 = vrot.slane %v1505, %v1512
        %v1515 = vunpack.c.l.s4 1983009808
        %v1516 = vunpack.c.0.s8 %v1515
        %v1517 = vlaneseq
        %v1518 = vshrl.u32 %v1517, 7
        %v1519 = vsub.s32 %v1516, %v1518
        %v1520 = vrot.slane %v1506, %v1519
        %v1521 = vcombine.low %v1465, %v1481
        %v1522 = vcombine.high %v1465, %v1481
        %v1524 = vunpack.c.l.s4 1934713408
        %v1525 = vunpack.c.0.s8 %v1524
        %v1526 = vlaneseq
        %v1527 = vshrl.u32 %v1526, 7
        %v1528 = vsub.s32 %v1525, %v1527
        %v1529 = vrot.slane %v1521, %v1528
        %v1531 = vunpack.c.l.s4 1934713408
        %v1532 = vunpack.c.0.s8 %v1531
        %v1533 = vlaneseq
        %v1534 = vshrl.u32 %v1533, 7
        %v1535 = vsub.s32 %v1532, %v1534
        %v1536 = vrot.slane %v1522, %v1535
        %v1537 = vcombine.low %v1472, %v1488
        %v1538 = vcombine.high %v1472, %v1488
        %v1540 = vunpack.c.l.s4 1934713408
        %v1541 = vunpack.c.0.s8 %v1540
        %v1542 = vlaneseq
        %v1543 = vshrl.u32 %v1542, 7
        %v1544 = vsub.s32 %v1541, %v1543
        %v1545 = vrot.slane %v1537, %v1544
        %v1547 = vunpack.c.l.s4 1934713408
        %v1548 = vunpack.c.0.s8 %v1547
        %v1549 = vlaneseq
        %v1550 = vshrl.u32 %v1549, 7
        %v1551 = vsub.s32 %v1548, %v1550
        %v1552 = vrot.slane %v1538, %v1551
        %v1553 = vcombine.low %v1497, %v1513
        %v1554 = vcombine.high %v1497, %v1513
        %v1556 = vunpack.c.l.s4 1934713408
        %v1557 = vunpack.c.0.s8 %v1556
        %v1558 = vlaneseq
        %v1559 = vshrl.u32 %v1558, 7
        %v1560 = vsub.s32 %v1557, %v1559
        %v1561 = vrot.slane %v1553, %v1560
        %v1563 = vunpack.c.l.s4 1934713408
        %v1564 = vunpack.c.0.s8 %v1563
        %v1565 = vlaneseq
        %v1566 = vshrl.u32 %v1565, 7
        %v1567 = vsub.s32 %v1564, %v1566
        %v1568 = vrot.slane %v1554, %v1567
        %v1569 = vcombine.low %v1504, %v1520
        %v1570 = vcombine.high %v1504, %v1520
        %v1572 = vunpack.c.l.s4 1934713408
        %v1573 = vunpack.c.0.s8 %v1572
        %v1574 = vlaneseq
        %v1575 = vshrl.u32 %v1574, 7
        %v1576 = vsub.s32 %v1573, %v1575
        %v1577 = vrot.slane %v1569, %v1576
        %v1579 = vunpack.c.l.s4 1934713408
        %v1580 = vunpack.c.0.s8 %v1579
        %v1581 = vlaneseq
        %v1582 = vshrl.u32 %v1581, 7
        %v1583 = vsub.s32 %v1580, %v1582
        %v1584 = vrot.slane %v1570, %v1583
        %v1585 = vcombine.low %v1529, %v1561
        %v1586 = vcombine.high %v1529, %v1561
        %v1587 = vcombine.low %v1536, %v1568
        %v1588 = vcombine.high %v1536, %v1568
        %v1589 = vcombine.low %v1545, %v1577
        %v1590 = vcombine.high %v1545, %v1577
        %v1591 = vcombine.low %v1552, %v1584
        %v1592 = vcombine.high %v1552, %v1584
        %1594 = vrot.lane.b32.xlu0 %v1000, 112
        %v1595 = vpop.permute.xlu0 %1594
        %1597 = vrot.lane.b32.xlu0 %v1000, 96
        %v1598 = vpop.permute.xlu0 %1597
        %1600 = vrot.lane.b32.xlu0 %v1000, 80
        %v1601 = vpop.permute.xlu0 %1600
        %1603 = vrot.lane.b32.xlu0 %v1000, 64
        %v1604 = vpop.permute.xlu0 %1603
        %1606 = vrot.lane.b32.xlu0 %v1000, 48
        %v1607 = vpop.permute.xlu0 %1606
        %1609 = vrot.lane.b32.xlu0 %v1000, 32
        %v1610 = vpop.permute.xlu0 %1609
        %1612 = vrot.lane.b32.xlu0 %v1000, 16
        %v1613 = vpop.permute.xlu0 %1612
        %v1615 = vcombine.low %v1000, %v1598
        %v1616 = vcombine.high %v1000, %v1598
        %v1618 = vunpack.c.l.s4 1983009808
        %v1619 = vunpack.c.0.s8 %v1618
        %v1620 = vlaneseq
        %v1621 = vshrl.u32 %v1620, 7
        %v1622 = vsub.s32 %v1619, %v1621
        %v1623 = vrot.slane %v1615, %v1622
        %v1625 = vunpack.c.l.s4 1983009808
        %v1626 = vunpack.c.0.s8 %v1625
        %v1627 = vlaneseq
        %v1628 = vshrl.u32 %v1627, 7
        %v1629 = vsub.s32 %v1626, %v1628
        %v1630 = vrot.slane %v1616, %v1629
        %v1631 = vcombine.low %v1595, %v1601
        %v1632 = vcombine.high %v1595, %v1601
        %v1634 = vunpack.c.l.s4 1983009808
        %v1635 = vunpack.c.0.s8 %v1634
        %v1636 = vlaneseq
        %v1637 = vshrl.u32 %v1636, 7
        %v1638 = vsub.s32 %v1635, %v1637
        %v1639 = vrot.slane %v1631, %v1638
        %v1641 = vunpack.c.l.s4 1983009808
        %v1642 = vunpack.c.0.s8 %v1641
        %v1643 = vlaneseq
        %v1644 = vshrl.u32 %v1643, 7
        %v1645 = vsub.s32 %v1642, %v1644
        %v1646 = vrot.slane %v1632, %v1645
        %v1647 = vcombine.low %v1604, %v1610
        %v1648 = vcombine.high %v1604, %v1610
        %v1650 = vunpack.c.l.s4 1983009808
        %v1651 = vunpack.c.0.s8 %v1650
        %v1652 = vlaneseq
        %v1653 = vshrl.u32 %v1652, 7
        %v1654 = vsub.s32 %v1651, %v1653
        %v1655 = vrot.slane %v1647, %v1654
        %v1657 = vunpack.c.l.s4 1983009808
        %v1658 = vunpack.c.0.s8 %v1657
        %v1659 = vlaneseq
        %v1660 = vshrl.u32 %v1659, 7
        %v1661 = vsub.s32 %v1658, %v1660
        %v1662 = vrot.slane %v1648, %v1661
        %v1663 = vcombine.low %v1607, %v1613
        %v1664 = vcombine.high %v1607, %v1613
        %v1666 = vunpack.c.l.s4 1983009808
        %v1667 = vunpack.c.0.s8 %v1666
        %v1668 = vlaneseq
        %v1669 = vshrl.u32 %v1668, 7
        %v1670 = vsub.s32 %v1667, %v1669
        %v1671 = vrot.slane %v1663, %v1670
        %v1673 = vunpack.c.l.s4 1983009808
        %v1674 = vunpack.c.0.s8 %v1673
        %v1675 = vlaneseq
        %v1676 = vshrl.u32 %v1675, 7
        %v1677 = vsub.s32 %v1674, %v1676
        %v1678 = vrot.slane %v1664, %v1677
        %v1679 = vcombine.low %v1623, %v1639
        %v1680 = vcombine.high %v1623, %v1639
        %v1682 = vunpack.c.l.s4 1934713408
        %v1683 = vunpack.c.0.s8 %v1682
        %v1684 = vlaneseq
        %v1685 = vshrl.u32 %v1684, 7
        %v1686 = vsub.s32 %v1683, %v1685
        %v1687 = vrot.slane %v1679, %v1686
        %v1689 = vunpack.c.l.s4 1934713408
        %v1690 = vunpack.c.0.s8 %v1689
        %v1691 = vlaneseq
        %v1692 = vshrl.u32 %v1691, 7
        %v1693 = vsub.s32 %v1690, %v1692
        %v1694 = vrot.slane %v1680, %v1693
        %v1695 = vcombine.low %v1630, %v1646
        %v1696 = vcombine.high %v1630, %v1646
        %v1698 = vunpack.c.l.s4 1934713408
        %v1699 = vunpack.c.0.s8 %v1698
        %v1700 = vlaneseq
        %v1701 = vshrl.u32 %v1700, 7
        %v1702 = vsub.s32 %v1699, %v1701
        %v1703 = vrot.slane %v1695, %v1702
        %v1705 = vunpack.c.l.s4 1934713408
        %v1706 = vunpack.c.0.s8 %v1705
        %v1707 = vlaneseq
        %v1708 = vshrl.u32 %v1707, 7
        %v1709 = vsub.s32 %v1706, %v1708
        %v1710 = vrot.slane %v1696, %v1709
        %v1711 = vcombine.low %v1655, %v1671
        %v1712 = vcombine.high %v1655, %v1671
        %v1714 = vunpack.c.l.s4 1934713408
        %v1715 = vunpack.c.0.s8 %v1714
        %v1716 = vlaneseq
        %v1717 = vshrl.u32 %v1716, 7
        %v1718 = vsub.s32 %v1715, %v1717
        %v1719 = vrot.slane %v1711, %v1718
        %v1721 = vunpack.c.l.s4 1934713408
        %v1722 = vunpack.c.0.s8 %v1721
        %v1723 = vlaneseq
        %v1724 = vshrl.u32 %v1723, 7
        %v1725 = vsub.s32 %v1722, %v1724
        %v1726 = vrot.slane %v1712, %v1725
        %v1727 = vcombine.low %v1662, %v1678
        %v1728 = vcombine.high %v1662, %v1678
        %v1730 = vunpack.c.l.s4 1934713408
        %v1731 = vunpack.c.0.s8 %v1730
        %v1732 = vlaneseq
        %v1733 = vshrl.u32 %v1732, 7
        %v1734 = vsub.s32 %v1731, %v1733
        %v1735 = vrot.slane %v1727, %v1734
        %v1737 = vunpack.c.l.s4 1934713408
        %v1738 = vunpack.c.0.s8 %v1737
        %v1739 = vlaneseq
        %v1740 = vshrl.u32 %v1739, 7
        %v1741 = vsub.s32 %v1738, %v1740
        %v1742 = vrot.slane %v1728, %v1741
        %v1743 = vcombine.low %v1687, %v1719
        %v1744 = vcombine.high %v1687, %v1719
        %v1745 = vcombine.low %v1694, %v1726
        %v1746 = vcombine.high %v1694, %v1726
        %v1747 = vcombine.low %v1703, %v1735
        %v1748 = vcombine.high %v1703, %v1735
        %v1749 = vcombine.low %v1710, %v1742
        %v1750 = vcombine.high %v1710, %v1742
        %v1751 = vcombine.low %v1743, %v1745
        %v1752 = vcombine.high %v1743, %v1745
        %v1754 = vunpack.c.l.s4 1983009808
        %v1755 = vunpack.c.0.s8 %v1754
        %v1756 = vlaneseq
        %v1757 = vshrl.u32 %v1756, 7
        %v1758 = vsub.s32 %v1755, %v1757
        %v1759 = vrot.slane %v1751, %v1758
        %v1761 = vunpack.c.l.s4 1983009808
        %v1762 = vunpack.c.0.s8 %v1761
        %v1763 = vlaneseq
        %v1764 = vshrl.u32 %v1763, 7
        %v1765 = vsub.s32 %v1762, %v1764
        %v1766 = vrot.slane %v1752, %v1765
        %v1767 = vcombine.low %v1744, %v1746
        %v1768 = vcombine.high %v1744, %v1746
        %v1770 = vunpack.c.l.s4 1983009808
        %v1771 = vunpack.c.0.s8 %v1770
        %v1772 = vlaneseq
        %v1773 = vshrl.u32 %v1772, 7
        %v1774 = vsub.s32 %v1771, %v1773
        %v1775 = vrot.slane %v1767, %v1774
        %v1777 = vunpack.c.l.s4 1983009808
        %v1778 = vunpack.c.0.s8 %v1777
        %v1779 = vlaneseq
        %v1780 = vshrl.u32 %v1779, 7
        %v1781 = vsub.s32 %v1778, %v1780
        %v1782 = vrot.slane %v1768, %v1781
        %v1783 = vcombine.low %v1747, %v1749
        %v1784 = vcombine.high %v1747, %v1749
        %v1786 = vunpack.c.l.s4 1983009808
        %v1787 = vunpack.c.0.s8 %v1786
        %v1788 = vlaneseq
        %v1789 = vshrl.u32 %v1788, 7
        %v1790 = vsub.s32 %v1787, %v1789
        %v1791 = vrot.slane %v1783, %v1790
        %v1793 = vunpack.c.l.s4 1983009808
        %v1794 = vunpack.c.0.s8 %v1793
        %v1795 = vlaneseq
        %v1796 = vshrl.u32 %v1795, 7
        %v1797 = vsub.s32 %v1794, %v1796
        %v1798 = vrot.slane %v1784, %v1797
        %v1799 = vcombine.low %v1748, %v1750
        %v1800 = vcombine.high %v1748, %v1750
        %v1802 = vunpack.c.l.s4 1983009808
        %v1803 = vunpack.c.0.s8 %v1802
        %v1804 = vlaneseq
        %v1805 = vshrl.u32 %v1804, 7
        %v1806 = vsub.s32 %v1803, %v1805
        %v1807 = vrot.slane %v1799, %v1806
        %v1809 = vunpack.c.l.s4 1983009808
        %v1810 = vunpack.c.0.s8 %v1809
        %v1811 = vlaneseq
        %v1812 = vshrl.u32 %v1811, 7
        %v1813 = vsub.s32 %v1810, %v1812
        %v1814 = vrot.slane %v1800, %v1813
        %v1815 = vcombine.low %v1759, %v1775
        %v1816 = vcombine.high %v1759, %v1775
        %v1818 = vunpack.c.l.s4 1934713408
        %v1819 = vunpack.c.0.s8 %v1818
        %v1820 = vlaneseq
        %v1821 = vshrl.u32 %v1820, 7
        %v1822 = vsub.s32 %v1819, %v1821
        %v1823 = vrot.slane %v1815, %v1822
        %v1825 = vunpack.c.l.s4 1934713408
        %v1826 = vunpack.c.0.s8 %v1825
        %v1827 = vlaneseq
        %v1828 = vshrl.u32 %v1827, 7
        %v1829 = vsub.s32 %v1826, %v1828
        %v1830 = vrot.slane %v1816, %v1829
        %v1831 = vcombine.low %v1766, %v1782
        %v1832 = vcombine.high %v1766, %v1782
        %v1834 = vunpack.c.l.s4 1934713408
        %v1835 = vunpack.c.0.s8 %v1834
        %v1836 = vlaneseq
        %v1837 = vshrl.u32 %v1836, 7
        %v1838 = vsub.s32 %v1835, %v1837
        %v1839 = vrot.slane %v1831, %v1838
        %v1841 = vunpack.c.l.s4 1934713408
        %v1842 = vunpack.c.0.s8 %v1841
        %v1843 = vlaneseq
        %v1844 = vshrl.u32 %v1843, 7
        %v1845 = vsub.s32 %v1842, %v1844
        %v1846 = vrot.slane %v1832, %v1845
        %v1847 = vcombine.low %v1791, %v1807
        %v1848 = vcombine.high %v1791, %v1807
        %v1850 = vunpack.c.l.s4 1934713408
        %v1851 = vunpack.c.0.s8 %v1850
        %v1852 = vlaneseq
        %v1853 = vshrl.u32 %v1852, 7
        %v1854 = vsub.s32 %v1851, %v1853
        %v1855 = vrot.slane %v1847, %v1854
        %v1857 = vunpack.c.l.s4 1934713408
        %v1858 = vunpack.c.0.s8 %v1857
        %v1859 = vlaneseq
        %v1860 = vshrl.u32 %v1859, 7
        %v1861 = vsub.s32 %v1858, %v1860
        %v1862 = vrot.slane %v1848, %v1861
        %v1863 = vcombine.low %v1798, %v1814
        %v1864 = vcombine.high %v1798, %v1814
        %v1866 = vunpack.c.l.s4 1934713408
        %v1867 = vunpack.c.0.s8 %v1866
        %v1868 = vlaneseq
        %v1869 = vshrl.u32 %v1868, 7
        %v1870 = vsub.s32 %v1867, %v1869
        %v1871 = vrot.slane %v1863, %v1870
        %v1873 = vunpack.c.l.s4 1934713408
        %v1874 = vunpack.c.0.s8 %v1873
        %v1875 = vlaneseq
        %v1876 = vshrl.u32 %v1875, 7
        %v1877 = vsub.s32 %v1874, %v1876
        %v1878 = vrot.slane %v1864, %v1877
        %v1879 = vcombine.low %v1823, %v1855
        %v1880 = vcombine.high %v1823, %v1855
        %v1881 = vcombine.low %v1830, %v1862
        %v1882 = vcombine.high %v1830, %v1862
        %v1883 = vcombine.low %v1839, %v1871
        %v1884 = vcombine.high %v1839, %v1871
        %v1885 = vcombine.low %v1846, %v1878
        %v1886 = vcombine.high %v1846, %v1878
        %v1887 = vpack.c.bf16 %v1291, %v1291
        %v1888 = vpack.c.bf16 %v1292, %v1292
        %v1889 = vpack.c.bf16 %v1293, %v1293
        %v1890 = vpack.c.bf16 %v1294, %v1294
        %v1891 = vpack.c.bf16 %v1295, %v1295
        %v1892 = vpack.c.bf16 %v1296, %v1296
        %v1893 = vpack.c.bf16 %v1297, %v1297
        %v1894 = vpack.c.bf16 %v1298, %v1298
        %v1895 = vpack.c.bf16 %v1585, %v1585
        %v1896 = vpack.c.bf16 %v1586, %v1586
        %v1897 = vpack.c.bf16 %v1587, %v1587
        %v1898 = vpack.c.bf16 %v1588, %v1588
        %v1899 = vpack.c.bf16 %v1589, %v1589
        %v1900 = vpack.c.bf16 %v1590, %v1590
        %v1901 = vpack.c.bf16 %v1591, %v1591
        %v1902 = vpack.c.bf16 %v1592, %v1592
        %vm1903 = vcmask 130048
        %v1905 = vsel %vm1903, %v1887, 0
        %v1908 = vsel %vm1903, %v1895, 0
        %1910 = vmatprep.subr.bf16.mxu0 0
        %1911 = vmatpush1.bf16.xpose.msra.mxu0 %v1908
        %1912 = vmatprep.subr.bf16.mxu0 0
        %1913 = vmatpush1.bf16.xpose.msra.mxu0 0
        %1914 = vmatprep.subr.bf16.mxu0 0
        %1915 = vmatpush1.bf16.xpose.msra.mxu0 0
        %1916 = vmatprep.subr.bf16.mxu0 0
        %1917 = vmatpush1.bf16.xpose.msra.mxu0 0
        %1918 = vmatprep.subr.bf16.mxu0 0
        %1919 = vmatpush1.bf16.xpose.msra.mxu0 0
        %1920 = vmatprep.subr.bf16.mxu0 0
        %1921 = vmatpush1.bf16.xpose.msra.mxu0 0
        %1922 = vmatprep.subr.bf16.mxu0 0
        %1923 = vmatpush1.bf16.xpose.msra.mxu0 0
        %1924 = vmatprep.subr.bf16.mxu0 0
        %1925 = vmatpush1.bf16.xpose.msra.mxu0 0
        %1926 = vmatprep.subr.bf16.mxu0 0
        %1927 = vmatpush1.bf16.xpose.msra.mxu0 0
        %1928 = vmatprep.subr.bf16.mxu0 0
        %1929 = vmatpush1.bf16.xpose.msra.mxu0 0
        %1930 = vmatprep.subr.bf16.mxu0 0
        %1931 = vmatpush1.bf16.xpose.msra.mxu0 0
        %1932 = vmatprep.subr.bf16.mxu0 0
        %1933 = vmatpush1.bf16.xpose.msra.mxu0 0
        %1934 = vmatprep.subr.bf16.mxu0 0
        %1935 = vmatpush1.bf16.xpose.msra.mxu0 0
        %1936 = vmatprep.subr.bf16.mxu0 0
        %1937 = vmatpush1.bf16.xpose.msra.mxu0 0
        %1938 = vmatprep.subr.bf16.mxu0 0
        %1939 = vmatpush1.bf16.xpose.msra.mxu0 0
        %1940 = vmatprep.subr.bf16.mxu0 0
        %1941 = vmatpush1.bf16.xpose.msra.mxu0 0
        %1942 = vmatprep.mubr.bf16.mxu0 0
        %1943 = vmatmul.mubr.bf16.gmra.mrb[0].mxu0 %v1905
        %v1944 = vpop.f32.mrb[0].mxu0
        %v1945 = vadd.f32 0.0, %v1944
        %v1946 = vpop.f32.mrb[0].mxu0
        %v1947 = vpop.f32.mrb[0].mxu0
        %v1948 = vpop.f32.mrb[0].mxu0
        %1949 = vdwg.mxu0
        %v1951 = vsel %vm1903, %v1888, 0
        %v1954 = vsel %vm1903, %v1896, 0
        %1956 = vmatprep.subr.bf16.mxu0 0
        %1957 = vmatpush1.bf16.xpose.msra.mxu0 %v1954
        %1958 = vmatprep.subr.bf16.mxu0 0
        %1959 = vmatpush1.bf16.xpose.msra.mxu0 0
        %1960 = vmatprep.subr.bf16.mxu0 0
        %1961 = vmatpush1.bf16.xpose.msra.mxu0 0
        %1962 = vmatprep.subr.bf16.mxu0 0
        %1963 = vmatpush1.bf16.xpose.msra.mxu0 0
        %1964 = vmatprep.subr.bf16.mxu0 0
        %1965 = vmatpush1.bf16.xpose.msra.mxu0 0
        %1966 = vmatprep.subr.bf16.mxu0 0
        %1967 = vmatpush1.bf16.xpose.msra.mxu0 0
        %1968 = vmatprep.subr.bf16.mxu0 0
        %1969 = vmatpush1.bf16.xpose.msra.mxu0 0
        %1970 = vmatprep.subr.bf16.mxu0 0
        %1971 = vmatpush1.bf16.xpose.msra.mxu0 0
        %1972 = vmatprep.subr.bf16.mxu0 0
        %1973 = vmatpush1.bf16.xpose.msra.mxu0 0
        %1974 = vmatprep.subr.bf16.mxu0 0
        %1975 = vmatpush1.bf16.xpose.msra.mxu0 0
        %1976 = vmatprep.subr.bf16.mxu0 0
        %1977 = vmatpush1.bf16.xpose.msra.mxu0 0
        %1978 = vmatprep.subr.bf16.mxu0 0
        %1979 = vmatpush1.bf16.xpose.msra.mxu0 0
        %1980 = vmatprep.subr.bf16.mxu0 0
        %1981 = vmatpush1.bf16.xpose.msra.mxu0 0
        %1982 = vmatprep.subr.bf16.mxu0 0
        %1983 = vmatpush1.bf16.xpose.msra.mxu0 0
        %1984 = vmatprep.subr.bf16.mxu0 0
        %1985 = vmatpush1.bf16.xpose.msra.mxu0 0
        %1986 = vmatprep.subr.bf16.mxu0 0
        %1987 = vmatpush1.bf16.xpose.msra.mxu0 0
        %1988 = vmatprep.mubr.bf16.mxu0 0
        %1989 = vmatmul.mubr.bf16.gmra.mrb[0].mxu0 %v1951
        %v1990 = vpop.f32.mrb[0].mxu0
        %v1991 = vadd.f32 0.0, %v1990
        %v1992 = vpop.f32.mrb[0].mxu0
        %v1993 = vpop.f32.mrb[0].mxu0
        %v1994 = vpop.f32.mrb[0].mxu0
        %1995 = vdwg.mxu0
        %v1997 = vsel %vm1903, %v1889, 0
        %v2000 = vsel %vm1903, %v1897, 0
        %2002 = vmatprep.subr.bf16.mxu0 0
        %2003 = vmatpush1.bf16.xpose.msra.mxu0 %v2000
        %2004 = vmatprep.subr.bf16.mxu0 0
        %2005 = vmatpush1.bf16.xpose.msra.mxu0 0
        %2006 = vmatprep.subr.bf16.mxu0 0
        %2007 = vmatpush1.bf16.xpose.msra.mxu0 0
        %2008 = vmatprep.subr.bf16.mxu0 0
        %2009 = vmatpush1.bf16.xpose.msra.mxu0 0
        %2010 = vmatprep.subr.bf16.mxu0 0
        %2011 = vmatpush1.bf16.xpose.msra.mxu0 0
        %2012 = vmatprep.subr.bf16.mxu0 0
        %2013 = vmatpush1.bf16.xpose.msra.mxu0 0
        %2014 = vmatprep.subr.bf16.mxu0 0
        %2015 = vmatpush1.bf16.xpose.msra.mxu0 0
        %2016 = vmatprep.subr.bf16.mxu0 0
        %2017 = vmatpush1.bf16.xpose.msra.mxu0 0
        %2018 = vmatprep.subr.bf16.mxu0 0
        %2019 = vmatpush1.bf16.xpose.msra.mxu0 0
        %2020 = vmatprep.subr.bf16.mxu0 0
        %2021 = vmatpush1.bf16.xpose.msra.mxu0 0
        %2022 = vmatprep.subr.bf16.mxu0 0
        %2023 = vmatpush1.bf16.xpose.msra.mxu0 0
        %2024 = vmatprep.subr.bf16.mxu0 0
        %2025 = vmatpush1.bf16.xpose.msra.mxu0 0
        %2026 = vmatprep.subr.bf16.mxu0 0
        %2027 = vmatpush1.bf16.xpose.msra.mxu0 0
        %2028 = vmatprep.subr.bf16.mxu0 0
        %2029 = vmatpush1.bf16.xpose.msra.mxu0 0
        %2030 = vmatprep.subr.bf16.mxu0 0
        %2031 = vmatpush1.bf16.xpose.msra.mxu0 0
        %2032 = vmatprep.subr.bf16.mxu0 0
        %2033 = vmatpush1.bf16.xpose.msra.mxu0 0
        %2034 = vmatprep.mubr.bf16.mxu0 0
        %2035 = vmatmul.mubr.bf16.gmra.mrb[0].mxu0 %v1997
        %v2036 = vpop.f32.mrb[0].mxu0
        %v2037 = vadd.f32 0.0, %v2036
        %v2038 = vpop.f32.mrb[0].mxu0
        %v2039 = vpop.f32.mrb[0].mxu0
        %v2040 = vpop.f32.mrb[0].mxu0
        %2041 = vdwg.mxu0
        %v2043 = vsel %vm1903, %v1890, 0
        %v2046 = vsel %vm1903, %v1898, 0
        %2048 = vmatprep.subr.bf16.mxu0 0
        %2049 = vmatpush1.bf16.xpose.msra.mxu0 %v2046
        %2050 = vmatprep.subr.bf16.mxu0 0
        %2051 = vmatpush1.bf16.xpose.msra.mxu0 0
        %2052 = vmatprep.subr.bf16.mxu0 0
        %2053 = vmatpush1.bf16.xpose.msra.mxu0 0
        %2054 = vmatprep.subr.bf16.mxu0 0
        %2055 = vmatpush1.bf16.xpose.msra.mxu0 0
        %2056 = vmatprep.subr.bf16.mxu0 0
        %2057 = vmatpush1.bf16.xpose.msra.mxu0 0
        %2058 = vmatprep.subr.bf16.mxu0 0
        %2059 = vmatpush1.bf16.xpose.msra.mxu0 0
        %2060 = vmatprep.subr.bf16.mxu0 0
        %2061 = vmatpush1.bf16.xpose.msra.mxu0 0
        %2062 = vmatprep.subr.bf16.mxu0 0
        %2063 = vmatpush1.bf16.xpose.msra.mxu0 0
        %2064 = vmatprep.subr.bf16.mxu0 0
        %2065 = vmatpush1.bf16.xpose.msra.mxu0 0
        %2066 = vmatprep.subr.bf16.mxu0 0
        %2067 = vmatpush1.bf16.xpose.msra.mxu0 0
        %2068 = vmatprep.subr.bf16.mxu0 0
        %2069 = vmatpush1.bf16.xpose.msra.mxu0 0
        %2070 = vmatprep.subr.bf16.mxu0 0
        %2071 = vmatpush1.bf16.xpose.msra.mxu0 0
        %2072 = vmatprep.subr.bf16.mxu0 0
        %2073 = vmatpush1.bf16.xpose.msra.mxu0 0
        %2074 = vmatprep.subr.bf16.mxu0 0
        %2075 = vmatpush1.bf16.xpose.msra.mxu0 0
        %2076 = vmatprep.subr.bf16.mxu0 0
        %2077 = vmatpush1.bf16.xpose.msra.mxu0 0
        %2078 = vmatprep.subr.bf16.mxu0 0
        %2079 = vmatpush1.bf16.xpose.msra.mxu0 0
        %2080 = vmatprep.mubr.bf16.mxu0 0
        %2081 = vmatmul.mubr.bf16.gmra.mrb[0].mxu0 %v2043
        %v2082 = vpop.f32.mrb[0].mxu0
        %v2083 = vadd.f32 0.0, %v2082
        %v2084 = vpop.f32.mrb[0].mxu0
        %v2085 = vpop.f32.mrb[0].mxu0
        %v2086 = vpop.f32.mrb[0].mxu0
        %2087 = vdwg.mxu0
        %v2089 = vsel %vm1903, %v1891, 0
        %v2092 = vsel %vm1903, %v1899, 0
        %2094 = vmatprep.subr.bf16.mxu0 0
        %2095 = vmatpush1.bf16.xpose.msra.mxu0 %v2092
        %2096 = vmatprep.subr.bf16.mxu0 0
        %2097 = vmatpush1.bf16.xpose.msra.mxu0 0
        %2098 = vmatprep.subr.bf16.mxu0 0
        %2099 = vmatpush1.bf16.xpose.msra.mxu0 0
        %2100 = vmatprep.subr.bf16.mxu0 0
        %2101 = vmatpush1.bf16.xpose.msra.mxu0 0
        %2102 = vmatprep.subr.bf16.mxu0 0
        %2103 = vmatpush1.bf16.xpose.msra.mxu0 0
        %2104 = vmatprep.subr.bf16.mxu0 0
        %2105 = vmatpush1.bf16.xpose.msra.mxu0 0
        %2106 = vmatprep.subr.bf16.mxu0 0
        %2107 = vmatpush1.bf16.xpose.msra.mxu0 0
        %2108 = vmatprep.subr.bf16.mxu0 0
        %2109 = vmatpush1.bf16.xpose.msra.mxu0 0
        %2110 = vmatprep.subr.bf16.mxu0 0
        %2111 = vmatpush1.bf16.xpose.msra.mxu0 0
        %2112 = vmatprep.subr.bf16.mxu0 0
        %2113 = vmatpush1.bf16.xpose.msra.mxu0 0
        %2114 = vmatprep.subr.bf16.mxu0 0
        %2115 = vmatpush1.bf16.xpose.msra.mxu0 0
        %2116 = vmatprep.subr.bf16.mxu0 0
        %2117 = vmatpush1.bf16.xpose.msra.mxu0 0
        %2118 = vmatprep.subr.bf16.mxu0 0
        %2119 = vmatpush1.bf16.xpose.msra.mxu0 0
        %2120 = vmatprep.subr.bf16.mxu0 0
        %2121 = vmatpush1.bf16.xpose.msra.mxu0 0
        %2122 = vmatprep.subr.bf16.mxu0 0
        %2123 = vmatpush1.bf16.xpose.msra.mxu0 0
        %2124 = vmatprep.subr.bf16.mxu0 0
        %2125 = vmatpush1.bf16.xpose.msra.mxu0 0
        %2126 = vmatprep.mubr.bf16.mxu0 0
        %2127 = vmatmul.mubr.bf16.gmra.mrb[0].mxu0 %v2089
        %v2128 = vpop.f32.mrb[0].mxu0
        %v2129 = vadd.f32 0.0, %v2128
        %v2130 = vpop.f32.mrb[0].mxu0
        %v2131 = vpop.f32.mrb[0].mxu0
        %v2132 = vpop.f32.mrb[0].mxu0
        %2133 = vdwg.mxu0
        %v2135 = vsel %vm1903, %v1892, 0
        %v2138 = vsel %vm1903, %v1900, 0
        %2140 = vmatprep.subr.bf16.mxu0 0
        %2141 = vmatpush1.bf16.xpose.msra.mxu0 %v2138
        %2142 = vmatprep.subr.bf16.mxu0 0
        %2143 = vmatpush1.bf16.xpose.msra.mxu0 0
        %2144 = vmatprep.subr.bf16.mxu0 0
        %2145 = vmatpush1.bf16.xpose.msra.mxu0 0
        %2146 = vmatprep.subr.bf16.mxu0 0
        %2147 = vmatpush1.bf16.xpose.msra.mxu0 0
        %2148 = vmatprep.subr.bf16.mxu0 0
        %2149 = vmatpush1.bf16.xpose.msra.mxu0 0
        %2150 = vmatprep.subr.bf16.mxu0 0
        %2151 = vmatpush1.bf16.xpose.msra.mxu0 0
        %2152 = vmatprep.subr.bf16.mxu0 0
        %2153 = vmatpush1.bf16.xpose.msra.mxu0 0
        %2154 = vmatprep.subr.bf16.mxu0 0
        %2155 = vmatpush1.bf16.xpose.msra.mxu0 0
        %2156 = vmatprep.subr.bf16.mxu0 0
        %2157 = vmatpush1.bf16.xpose.msra.mxu0 0
        %2158 = vmatprep.subr.bf16.mxu0 0
        %2159 = vmatpush1.bf16.xpose.msra.mxu0 0
        %2160 = vmatprep.subr.bf16.mxu0 0
        %2161 = vmatpush1.bf16.xpose.msra.mxu0 0
        %2162 = vmatprep.subr.bf16.mxu0 0
        %2163 = vmatpush1.bf16.xpose.msra.mxu0 0
        %2164 = vmatprep.subr.bf16.mxu0 0
        %2165 = vmatpush1.bf16.xpose.msra.mxu0 0
        %2166 = vmatprep.subr.bf16.mxu0 0
        %2167 = vmatpush1.bf16.xpose.msra.mxu0 0
        %2168 = vmatprep.subr.bf16.mxu0 0
        %2169 = vmatpush1.bf16.xpose.msra.mxu0 0
        %2170 = vmatprep.subr.bf16.mxu0 0
        %2171 = vmatpush1.bf16.xpose.msra.mxu0 0
        %2172 = vmatprep.mubr.bf16.mxu0 0
        %2173 = vmatmul.mubr.bf16.gmra.mrb[0].mxu0 %v2135
        %v2174 = vpop.f32.mrb[0].mxu0
        %v2175 = vadd.f32 0.0, %v2174
        %v2176 = vpop.f32.mrb[0].mxu0
        %v2177 = vpop.f32.mrb[0].mxu0
        %v2178 = vpop.f32.mrb[0].mxu0
        %2179 = vdwg.mxu0
        %v2181 = vsel %vm1903, %v1893, 0
        %v2184 = vsel %vm1903, %v1901, 0
        %2186 = vmatprep.subr.bf16.mxu0 0
        %2187 = vmatpush1.bf16.xpose.msra.mxu0 %v2184
        %2188 = vmatprep.subr.bf16.mxu0 0
        %2189 = vmatpush1.bf16.xpose.msra.mxu0 0
        %2190 = vmatprep.subr.bf16.mxu0 0
        %2191 = vmatpush1.bf16.xpose.msra.mxu0 0
        %2192 = vmatprep.subr.bf16.mxu0 0
        %2193 = vmatpush1.bf16.xpose.msra.mxu0 0
        %2194 = vmatprep.subr.bf16.mxu0 0
        %2195 = vmatpush1.bf16.xpose.msra.mxu0 0
        %2196 = vmatprep.subr.bf16.mxu0 0
        %2197 = vmatpush1.bf16.xpose.msra.mxu0 0
        %2198 = vmatprep.subr.bf16.mxu0 0
        %2199 = vmatpush1.bf16.xpose.msra.mxu0 0
        %2200 = vmatprep.subr.bf16.mxu0 0
        %2201 = vmatpush1.bf16.xpose.msra.mxu0 0
        %2202 = vmatprep.subr.bf16.mxu0 0
        %2203 = vmatpush1.bf16.xpose.msra.mxu0 0
        %2204 = vmatprep.subr.bf16.mxu0 0
        %2205 = vmatpush1.bf16.xpose.msra.mxu0 0
        %2206 = vmatprep.subr.bf16.mxu0 0
        %2207 = vmatpush1.bf16.xpose.msra.mxu0 0
        %2208 = vmatprep.subr.bf16.mxu0 0
        %2209 = vmatpush1.bf16.xpose.msra.mxu0 0
        %2210 = vmatprep.subr.bf16.mxu0 0
        %2211 = vmatpush1.bf16.xpose.msra.mxu0 0
        %2212 = vmatprep.subr.bf16.mxu0 0
        %2213 = vmatpush1.bf16.xpose.msra.mxu0 0
        %2214 = vmatprep.subr.bf16.mxu0 0
        %2215 = vmatpush1.bf16.xpose.msra.mxu0 0
        %2216 = vmatprep.subr.bf16.mxu0 0
        %2217 = vmatpush1.bf16.xpose.msra.mxu0 0
        %2218 = vmatprep.mubr.bf16.mxu0 0
        %2219 = vmatmul.mubr.bf16.gmra.mrb[0].mxu0 %v2181
        %v2220 = vpop.f32.mrb[0].mxu0
        %v2221 = vadd.f32 0.0, %v2220
        %v2222 = vpop.f32.mrb[0].mxu0
        %v2223 = vpop.f32.mrb[0].mxu0
        %v2224 = vpop.f32.mrb[0].mxu0
        %2225 = vdwg.mxu0
        %v2227 = vsel %vm1903, %v1894, 0
        %v2230 = vsel %vm1903, %v1902, 0
        %2232 = vmatprep.subr.bf16.mxu0 0
        %2233 = vmatpush1.bf16.xpose.msra.mxu0 %v2230
        %2234 = vmatprep.subr.bf16.mxu0 0
        %2235 = vmatpush1.bf16.xpose.msra.mxu0 0
        %2236 = vmatprep.subr.bf16.mxu0 0
        %2237 = vmatpush1.bf16.xpose.msra.mxu0 0
        %2238 = vmatprep.subr.bf16.mxu0 0
        %2239 = vmatpush1.bf16.xpose.msra.mxu0 0
        %2240 = vmatprep.subr.bf16.mxu0 0
        %2241 = vmatpush1.bf16.xpose.msra.mxu0 0
        %2242 = vmatprep.subr.bf16.mxu0 0
        %2243 = vmatpush1.bf16.xpose.msra.mxu0 0
        %2244 = vmatprep.subr.bf16.mxu0 0
        %2245 = vmatpush1.bf16.xpose.msra.mxu0 0
        %2246 = vmatprep.subr.bf16.mxu0 0
        %2247 = vmatpush1.bf16.xpose.msra.mxu0 0
        %2248 = vmatprep.subr.bf16.mxu0 0
        %2249 = vmatpush1.bf16.xpose.msra.mxu0 0
        %2250 = vmatprep.subr.bf16.mxu0 0
        %2251 = vmatpush1.bf16.xpose.msra.mxu0 0
        %2252 = vmatprep.subr.bf16.mxu0 0
        %2253 = vmatpush1.bf16.xpose.msra.mxu0 0
        %2254 = vmatprep.subr.bf16.mxu0 0
        %2255 = vmatpush1.bf16.xpose.msra.mxu0 0
        %2256 = vmatprep.subr.bf16.mxu0 0
        %2257 = vmatpush1.bf16.xpose.msra.mxu0 0
        %2258 = vmatprep.subr.bf16.mxu0 0
        %2259 = vmatpush1.bf16.xpose.msra.mxu0 0
        %2260 = vmatprep.subr.bf16.mxu0 0
        %2261 = vmatpush1.bf16.xpose.msra.mxu0 0
        %2262 = vmatprep.subr.bf16.mxu0 0
        %2263 = vmatpush1.bf16.xpose.msra.mxu0 0
        %2264 = vmatprep.mubr.bf16.mxu0 0
        %2265 = vmatmul.mubr.bf16.gmra.mrb[0].mxu0 %v2227
        %v2266 = vpop.f32.mrb[0].mxu0
        %v2267 = vadd.f32 0.0, %v2266
        %v2268 = vpop.f32.mrb[0].mxu0
        %v2269 = vpop.f32.mrb[0].mxu0
        %v2270 = vpop.f32.mrb[0].mxu0
        %2271 = vdwg.mxu0
        %vm2272 = vcmask 64512
        %v2273 = vsel %vm2272, %v1945, -inf
        %2274 = vmax.xlane.f32.xlu0 %v2273
        %v2275 = vpop.xlane.xlu0 %2274
        %v2276 = vsel %vm2272, %v1991, -inf
        %2277 = vmax.xlane.f32.xlu0 %v2276
        %v2278 = vpop.xlane.xlu0 %2277
        %v2279 = vsel %vm2272, %v2037, -inf
        %2280 = vmax.xlane.f32.xlu0 %v2279
        %v2281 = vpop.xlane.xlu0 %2280
        %v2282 = vsel %vm2272, %v2083, -inf
        %2283 = vmax.xlane.f32.xlu0 %v2282
        %v2284 = vpop.xlane.xlu0 %2283
        %v2285 = vsel %vm2272, %v2129, -inf
        %2286 = vmax.xlane.f32.xlu0 %v2285
        %v2287 = vpop.xlane.xlu0 %2286
        %v2288 = vsel %vm2272, %v2175, -inf
        %2289 = vmax.xlane.f32.xlu0 %v2288
        %v2290 = vpop.xlane.xlu0 %2289
        %v2291 = vsel %vm2272, %v2221, -inf
        %2292 = vmax.xlane.f32.xlu0 %v2291
        %v2293 = vpop.xlane.xlu0 %2292
        %v2294 = vsel %vm2272, %v2267, -inf
        %2295 = vmax.xlane.f32.xlu0 %v2294
        %v2296 = vpop.xlane.xlu0 %2295
        %v2297 = vsub.f32 %v1945, %v2275
        %v2298 = vsub.f32 %v1991, %v2278
        %v2299 = vsub.f32 %v2037, %v2281
        %v2300 = vsub.f32 %v2083, %v2284
        %v2301 = vsub.f32 %v2129, %v2287
        %v2302 = vsub.f32 %v2175, %v2290
        %v2303 = vsub.f32 %v2221, %v2293
        %v2304 = vsub.f32 %v2267, %v2296
        %v2305 = vmul.f32 %v2297, 1.442695
        %v2306 = vpow.pop %v2305
        %v2307 = vmul.f32 %v2298, 1.442695
        %v2308 = vpow.pop %v2307
        %v2309 = vmul.f32 %v2299, 1.442695
        %v2310 = vpow.pop %v2309
        %v2311 = vmul.f32 %v2300, 1.442695
        %v2312 = vpow.pop %v2311
        %v2313 = vmul.f32 %v2301, 1.442695
        %v2314 = vpow.pop %v2313
        %v2315 = vmul.f32 %v2302, 1.442695
        %v2316 = vpow.pop %v2315
        %v2317 = vmul.f32 %v2303, 1.442695
        %v2318 = vpow.pop %v2317
        %v2319 = vmul.f32 %v2304, 1.442695
        %v2320 = vpow.pop %v2319
        %v2321 = vsel %vm2272, %v2306, 0.0
        %2322 = vadd.xlane.f32.xlu0 %v2321
        %v2323 = vpop.xlane.xlu0 %2322
        %v2324 = vsel %vm2272, %v2308, 0.0
        %2325 = vadd.xlane.f32.xlu0 %v2324
        %v2326 = vpop.xlane.xlu0 %2325
        %v2327 = vsel %vm2272, %v2310, 0.0
        %2328 = vadd.xlane.f32.xlu0 %v2327
        %v2329 = vpop.xlane.xlu0 %2328
        %v2330 = vsel %vm2272, %v2312, 0.0
        %2331 = vadd.xlane.f32.xlu0 %v2330
        %v2332 = vpop.xlane.xlu0 %2331
        %v2333 = vsel %vm2272, %v2314, 0.0
        %2334 = vadd.xlane.f32.xlu0 %v2333
        %v2335 = vpop.xlane.xlu0 %2334
        %v2336 = vsel %vm2272, %v2316, 0.0
        %2337 = vadd.xlane.f32.xlu0 %v2336
        %v2338 = vpop.xlane.xlu0 %2337
        %v2339 = vsel %vm2272, %v2318, 0.0
        %2340 = vadd.xlane.f32.xlu0 %v2339
        %v2341 = vpop.xlane.xlu0 %2340
        %v2342 = vsel %vm2272, %v2320, 0.0
        %2343 = vadd.xlane.f32.xlu0 %v2342
        %v2344 = vpop.xlane.xlu0 %2343
        %v2345 = vrcp.pop %v2323
        %v2346 = vrcp.pop %v2326
        %v2347 = vrcp.pop %v2329
        %v2348 = vrcp.pop %v2332
        %v2349 = vrcp.pop %v2335
        %v2350 = vrcp.pop %v2338
        %v2351 = vrcp.pop %v2341
        %v2352 = vrcp.pop %v2344
        %v2353 = vmul.f32 %v2306, %v2345
        %v2354 = vmul.f32 %v2308, %v2346
        %v2355 = vmul.f32 %v2310, %v2347
        %v2356 = vmul.f32 %v2312, %v2348
        %v2357 = vmul.f32 %v2314, %v2349
        %v2358 = vmul.f32 %v2316, %v2350
        %v2359 = vmul.f32 %v2318, %v2351
        %v2360 = vmul.f32 %v2320, %v2352
        %v2361 = vpack.c.bf16 %v2353, %v2353
        %v2362 = vpack.c.bf16 %v2354, %v2354
        %v2363 = vpack.c.bf16 %v2355, %v2355
        %v2364 = vpack.c.bf16 %v2356, %v2356
        %v2365 = vpack.c.bf16 %v2357, %v2357
        %v2366 = vpack.c.bf16 %v2358, %v2358
        %v2367 = vpack.c.bf16 %v2359, %v2359
        %v2368 = vpack.c.bf16 %v2360, %v2360
        %v2369 = vpack.c.bf16 %v1879, %v1879
        %v2370 = vpack.c.bf16 %v1880, %v1880
        %v2371 = vpack.c.bf16 %v1881, %v1881
        %v2372 = vpack.c.bf16 %v1882, %v1882
        %v2373 = vpack.c.bf16 %v1883, %v1883
        %v2374 = vpack.c.bf16 %v1884, %v1884
        %v2375 = vpack.c.bf16 %v1885, %v1885
        %v2376 = vpack.c.bf16 %v1886, %v1886
        %v2378 = vsel %vm2272, %v2361, 0
        %vm2380 = vcmask 1043456
        %v2382 = vsel %vm2380, %v2369, 0
        %2384 = vmatprep.subr.bf16.mxu0 0
        %2385 = vmatpush1.bf16.msra.mxu0 %v2382
        %2386 = vmatprep.subr.bf16.mxu0 0
        %2387 = vmatpush1.bf16.msra.mxu0 0
        %2388 = vmatprep.subr.bf16.mxu0 0
        %2389 = vmatpush1.bf16.msra.mxu0 0
        %2390 = vmatprep.subr.bf16.mxu0 0
        %2391 = vmatpush1.bf16.msra.mxu0 0
        %2392 = vmatprep.subr.bf16.mxu0 0
        %2393 = vmatpush1.bf16.msra.mxu0 0
        %2394 = vmatprep.subr.bf16.mxu0 0
        %2395 = vmatpush1.bf16.msra.mxu0 0
        %2396 = vmatprep.subr.bf16.mxu0 0
        %2397 = vmatpush1.bf16.msra.mxu0 0
        %2398 = vmatprep.subr.bf16.mxu0 0
        %2399 = vmatpush1.bf16.msra.mxu0 0
        %2400 = vmatprep.subr.bf16.mxu0 0
        %2401 = vmatpush1.bf16.msra.mxu0 0
        %2402 = vmatprep.subr.bf16.mxu0 0
        %2403 = vmatpush1.bf16.msra.mxu0 0
        %2404 = vmatprep.subr.bf16.mxu0 0
        %2405 = vmatpush1.bf16.msra.mxu0 0
        %2406 = vmatprep.subr.bf16.mxu0 0
        %2407 = vmatpush1.bf16.msra.mxu0 0
        %2408 = vmatprep.subr.bf16.mxu0 0
        %2409 = vmatpush1.bf16.msra.mxu0 0
        %2410 = vmatprep.subr.bf16.mxu0 0
        %2411 = vmatpush1.bf16.msra.mxu0 0
        %2412 = vmatprep.subr.bf16.mxu0 0
        %2413 = vmatpush1.bf16.msra.mxu0 0
        %2414 = vmatprep.subr.bf16.mxu0 0
        %2415 = vmatpush1.bf16.msra.mxu0 0
        %2416 = vmatprep.mubr.bf16.mxu0 0
        %2417 = vmatmul.mubr.bf16.gmra.mrb[0].mxu0 %v2378
        %v2418 = vpop.f32.mrb[0].mxu0
        %v2419 = vadd.f32 0.0, %v2418
        %v2420 = vpop.f32.mrb[0].mxu0
        %v2421 = vpop.f32.mrb[0].mxu0
        %v2422 = vpop.f32.mrb[0].mxu0
        %2423 = vdwg.mxu0
        %v2425 = vsel %vm2272, %v2362, 0
        %v2428 = vsel %vm2380, %v2370, 0
        %2430 = vmatprep.subr.bf16.mxu0 0
        %2431 = vmatpush1.bf16.msra.mxu0 %v2428
        %2432 = vmatprep.subr.bf16.mxu0 0
        %2433 = vmatpush1.bf16.msra.mxu0 0
        %2434 = vmatprep.subr.bf16.mxu0 0
        %2435 = vmatpush1.bf16.msra.mxu0 0
        %2436 = vmatprep.subr.bf16.mxu0 0
        %2437 = vmatpush1.bf16.msra.mxu0 0
        %2438 = vmatprep.subr.bf16.mxu0 0
        %2439 = vmatpush1.bf16.msra.mxu0 0
        %2440 = vmatprep.subr.bf16.mxu0 0
        %2441 = vmatpush1.bf16.msra.mxu0 0
        %2442 = vmatprep.subr.bf16.mxu0 0
        %2443 = vmatpush1.bf16.msra.mxu0 0
        %2444 = vmatprep.subr.bf16.mxu0 0
        %2445 = vmatpush1.bf16.msra.mxu0 0
        %2446 = vmatprep.subr.bf16.mxu0 0
        %2447 = vmatpush1.bf16.msra.mxu0 0
        %2448 = vmatprep.subr.bf16.mxu0 0
        %2449 = vmatpush1.bf16.msra.mxu0 0
        %2450 = vmatprep.subr.bf16.mxu0 0
        %2451 = vmatpush1.bf16.msra.mxu0 0
        %2452 = vmatprep.subr.bf16.mxu0 0
        %2453 = vmatpush1.bf16.msra.mxu0 0
        %2454 = vmatprep.subr.bf16.mxu0 0
        %2455 = vmatpush1.bf16.msra.mxu0 0
        %2456 = vmatprep.subr.bf16.mxu0 0
        %2457 = vmatpush1.bf16.msra.mxu0 0
        %2458 = vmatprep.subr.bf16.mxu0 0
        %2459 = vmatpush1.bf16.msra.mxu0 0
        %2460 = vmatprep.subr.bf16.mxu0 0
        %2461 = vmatpush1.bf16.msra.mxu0 0
        %2462 = vmatprep.mubr.bf16.mxu0 0
        %2463 = vmatmul.mubr.bf16.gmra.mrb[0].mxu0 %v2425
        %v2464 = vpop.f32.mrb[0].mxu0
        %v2465 = vadd.f32 0.0, %v2464
        %v2466 = vpop.f32.mrb[0].mxu0
        %v2467 = vpop.f32.mrb[0].mxu0
        %v2468 = vpop.f32.mrb[0].mxu0
        %2469 = vdwg.mxu0
        %v2471 = vsel %vm2272, %v2363, 0
        %v2474 = vsel %vm2380, %v2371, 0
        %2476 = vmatprep.subr.bf16.mxu0 0
        %2477 = vmatpush1.bf16.msra.mxu0 %v2474
        %2478 = vmatprep.subr.bf16.mxu0 0
        %2479 = vmatpush1.bf16.msra.mxu0 0
        %2480 = vmatprep.subr.bf16.mxu0 0
        %2481 = vmatpush1.bf16.msra.mxu0 0
        %2482 = vmatprep.subr.bf16.mxu0 0
        %2483 = vmatpush1.bf16.msra.mxu0 0
        %2484 = vmatprep.subr.bf16.mxu0 0
        %2485 = vmatpush1.bf16.msra.mxu0 0
        %2486 = vmatprep.subr.bf16.mxu0 0
        %2487 = vmatpush1.bf16.msra.mxu0 0
        %2488 = vmatprep.subr.bf16.mxu0 0
        %2489 = vmatpush1.bf16.msra.mxu0 0
        %2490 = vmatprep.subr.bf16.mxu0 0
        %2491 = vmatpush1.bf16.msra.mxu0 0
        %2492 = vmatprep.subr.bf16.mxu0 0
        %2493 = vmatpush1.bf16.msra.mxu0 0
        %2494 = vmatprep.subr.bf16.mxu0 0
        %2495 = vmatpush1.bf16.msra.mxu0 0
        %2496 = vmatprep.subr.bf16.mxu0 0
        %2497 = vmatpush1.bf16.msra.mxu0 0
        %2498 = vmatprep.subr.bf16.mxu0 0
        %2499 = vmatpush1.bf16.msra.mxu0 0
        %2500 = vmatprep.subr.bf16.mxu0 0
        %2501 = vmatpush1.bf16.msra.mxu0 0
        %2502 = vmatprep.subr.bf16.mxu0 0
        %2503 = vmatpush1.bf16.msra.mxu0 0
        %2504 = vmatprep.subr.bf16.mxu0 0
        %2505 = vmatpush1.bf16.msra.mxu0 0
        %2506 = vmatprep.subr.bf16.mxu0 0
        %2507 = vmatpush1.bf16.msra.mxu0 0
        %2508 = vmatprep.mubr.bf16.mxu0 0
        %2509 = vmatmul.mubr.bf16.gmra.mrb[0].mxu0 %v2471
        %v2510 = vpop.f32.mrb[0].mxu0
        %v2511 = vadd.f32 0.0, %v2510
        %v2512 = vpop.f32.mrb[0].mxu0
        %v2513 = vpop.f32.mrb[0].mxu0
        %v2514 = vpop.f32.mrb[0].mxu0
        %2515 = vdwg.mxu0
        %v2517 = vsel %vm2272, %v2364, 0
        %v2520 = vsel %vm2380, %v2372, 0
        %2522 = vmatprep.subr.bf16.mxu0 0
        %2523 = vmatpush1.bf16.msra.mxu0 %v2520
        %2524 = vmatprep.subr.bf16.mxu0 0
        %2525 = vmatpush1.bf16.msra.mxu0 0
        %2526 = vmatprep.subr.bf16.mxu0 0
        %2527 = vmatpush1.bf16.msra.mxu0 0
        %2528 = vmatprep.subr.bf16.mxu0 0
        %2529 = vmatpush1.bf16.msra.mxu0 0
        %2530 = vmatprep.subr.bf16.mxu0 0
        %2531 = vmatpush1.bf16.msra.mxu0 0
        %2532 = vmatprep.subr.bf16.mxu0 0
        %2533 = vmatpush1.bf16.msra.mxu0 0
        %2534 = vmatprep.subr.bf16.mxu0 0
        %2535 = vmatpush1.bf16.msra.mxu0 0
        %2536 = vmatprep.subr.bf16.mxu0 0
        %2537 = vmatpush1.bf16.msra.mxu0 0
        %2538 = vmatprep.subr.bf16.mxu0 0
        %2539 = vmatpush1.bf16.msra.mxu0 0
        %2540 = vmatprep.subr.bf16.mxu0 0
        %2541 = vmatpush1.bf16.msra.mxu0 0
        %2542 = vmatprep.subr.bf16.mxu0 0
        %2543 = vmatpush1.bf16.msra.mxu0 0
        %2544 = vmatprep.subr.bf16.mxu0 0
        %2545 = vmatpush1.bf16.msra.mxu0 0
        %2546 = vmatprep.subr.bf16.mxu0 0
        %2547 = vmatpush1.bf16.msra.mxu0 0
        %2548 = vmatprep.subr.bf16.mxu0 0
        %2549 = vmatpush1.bf16.msra.mxu0 0
        %2550 = vmatprep.subr.bf16.mxu0 0
        %2551 = vmatpush1.bf16.msra.mxu0 0
        %2552 = vmatprep.subr.bf16.mxu0 0
        %2553 = vmatpush1.bf16.msra.mxu0 0
        %2554 = vmatprep.mubr.bf16.mxu0 0
        %2555 = vmatmul.mubr.bf16.gmra.mrb[0].mxu0 %v2517
        %v2556 = vpop.f32.mrb[0].mxu0
        %v2557 = vadd.f32 0.0, %v2556
        %v2558 = vpop.f32.mrb[0].mxu0
        %v2559 = vpop.f32.mrb[0].mxu0
        %v2560 = vpop.f32.mrb[0].mxu0
        %2561 = vdwg.mxu0
        %v2563 = vsel %vm2272, %v2365, 0
        %v2566 = vsel %vm2380, %v2373, 0
        %2568 = vmatprep.subr.bf16.mxu0 0
        %2569 = vmatpush1.bf16.msra.mxu0 %v2566
        %2570 = vmatprep.subr.bf16.mxu0 0
        %2571 = vmatpush1.bf16.msra.mxu0 0
        %2572 = vmatprep.subr.bf16.mxu0 0
        %2573 = vmatpush1.bf16.msra.mxu0 0
        %2574 = vmatprep.subr.bf16.mxu0 0
        %2575 = vmatpush1.bf16.msra.mxu0 0
        %2576 = vmatprep.subr.bf16.mxu0 0
        %2577 = vmatpush1.bf16.msra.mxu0 0
        %2578 = vmatprep.subr.bf16.mxu0 0
        %2579 = vmatpush1.bf16.msra.mxu0 0
        %2580 = vmatprep.subr.bf16.mxu0 0
        %2581 = vmatpush1.bf16.msra.mxu0 0
        %2582 = vmatprep.subr.bf16.mxu0 0
        %2583 = vmatpush1.bf16.msra.mxu0 0
        %2584 = vmatprep.subr.bf16.mxu0 0
        %2585 = vmatpush1.bf16.msra.mxu0 0
        %2586 = vmatprep.subr.bf16.mxu0 0
        %2587 = vmatpush1.bf16.msra.mxu0 0
        %2588 = vmatprep.subr.bf16.mxu0 0
        %2589 = vmatpush1.bf16.msra.mxu0 0
        %2590 = vmatprep.subr.bf16.mxu0 0
        %2591 = vmatpush1.bf16.msra.mxu0 0
        %2592 = vmatprep.subr.bf16.mxu0 0
        %2593 = vmatpush1.bf16.msra.mxu0 0
        %2594 = vmatprep.subr.bf16.mxu0 0
        %2595 = vmatpush1.bf16.msra.mxu0 0
        %2596 = vmatprep.subr.bf16.mxu0 0
        %2597 = vmatpush1.bf16.msra.mxu0 0
        %2598 = vmatprep.subr.bf16.mxu0 0
        %2599 = vmatpush1.bf16.msra.mxu0 0
        %2600 = vmatprep.mubr.bf16.mxu0 0
        %2601 = vmatmul.mubr.bf16.gmra.mrb[0].mxu0 %v2563
        %v2602 = vpop.f32.mrb[0].mxu0
        %v2603 = vadd.f32 0.0, %v2602
        %v2604 = vpop.f32.mrb[0].mxu0
        %v2605 = vpop.f32.mrb[0].mxu0
        %v2606 = vpop.f32.mrb[0].mxu0
        %2607 = vdwg.mxu0
        %v2609 = vsel %vm2272, %v2366, 0
        %v2612 = vsel %vm2380, %v2374, 0
        %2614 = vmatprep.subr.bf16.mxu0 0
        %2615 = vmatpush1.bf16.msra.mxu0 %v2612
        %2616 = vmatprep.subr.bf16.mxu0 0
        %2617 = vmatpush1.bf16.msra.mxu0 0
        %2618 = vmatprep.subr.bf16.mxu0 0
        %2619 = vmatpush1.bf16.msra.mxu0 0
        %2620 = vmatprep.subr.bf16.mxu0 0
        %2621 = vmatpush1.bf16.msra.mxu0 0
        %2622 = vmatprep.subr.bf16.mxu0 0
        %2623 = vmatpush1.bf16.msra.mxu0 0
        %2624 = vmatprep.subr.bf16.mxu0 0
        %2625 = vmatpush1.bf16.msra.mxu0 0
        %2626 = vmatprep.subr.bf16.mxu0 0
        %2627 = vmatpush1.bf16.msra.mxu0 0
        %2628 = vmatprep.subr.bf16.mxu0 0
        %2629 = vmatpush1.bf16.msra.mxu0 0
        %2630 = vmatprep.subr.bf16.mxu0 0
        %2631 = vmatpush1.bf16.msra.mxu0 0
        %2632 = vmatprep.subr.bf16.mxu0 0
        %2633 = vmatpush1.bf16.msra.mxu0 0
        %2634 = vmatprep.subr.bf16.mxu0 0
        %2635 = vmatpush1.bf16.msra.mxu0 0
        %2636 = vmatprep.subr.bf16.mxu0 0
        %2637 = vmatpush1.bf16.msra.mxu0 0
        %2638 = vmatprep.subr.bf16.mxu0 0
        %2639 = vmatpush1.bf16.msra.mxu0 0
        %2640 = vmatprep.subr.bf16.mxu0 0
        %2641 = vmatpush1.bf16.msra.mxu0 0
        %2642 = vmatprep.subr.bf16.mxu0 0
        %2643 = vmatpush1.bf16.msra.mxu0 0
        %2644 = vmatprep.subr.bf16.mxu0 0
        %2645 = vmatpush1.bf16.msra.mxu0 0
        %2646 = vmatprep.mubr.bf16.mxu0 0
        %2647 = vmatmul.mubr.bf16.gmra.mrb[0].mxu0 %v2609
        %v2648 = vpop.f32.mrb[0].mxu0
        %v2649 = vadd.f32 0.0, %v2648
        %v2650 = vpop.f32.mrb[0].mxu0
        %v2651 = vpop.f32.mrb[0].mxu0
        %v2652 = vpop.f32.mrb[0].mxu0
        %2653 = vdwg.mxu0
        %v2655 = vsel %vm2272, %v2367, 0
        %v2658 = vsel %vm2380, %v2375, 0
        %2660 = vmatprep.subr.bf16.mxu0 0
        %2661 = vmatpush1.bf16.msra.mxu0 %v2658
        %2662 = vmatprep.subr.bf16.mxu0 0
        %2663 = vmatpush1.bf16.msra.mxu0 0
        %2664 = vmatprep.subr.bf16.mxu0 0
        %2665 = vmatpush1.bf16.msra.mxu0 0
        %2666 = vmatprep.subr.bf16.mxu0 0
        %2667 = vmatpush1.bf16.msra.mxu0 0
        %2668 = vmatprep.subr.bf16.mxu0 0
        %2669 = vmatpush1.bf16.msra.mxu0 0
        %2670 = vmatprep.subr.bf16.mxu0 0
        %2671 = vmatpush1.bf16.msra.mxu0 0
        %2672 = vmatprep.subr.bf16.mxu0 0
        %2673 = vmatpush1.bf16.msra.mxu0 0
        %2674 = vmatprep.subr.bf16.mxu0 0
        %2675 = vmatpush1.bf16.msra.mxu0 0
        %2676 = vmatprep.subr.bf16.mxu0 0
        %2677 = vmatpush1.bf16.msra.mxu0 0
        %2678 = vmatprep.subr.bf16.mxu0 0
        %2679 = vmatpush1.bf16.msra.mxu0 0
        %2680 = vmatprep.subr.bf16.mxu0 0
        %2681 = vmatpush1.bf16.msra.mxu0 0
        %2682 = vmatprep.subr.bf16.mxu0 0
        %2683 = vmatpush1.bf16.msra.mxu0 0
        %2684 = vmatprep.subr.bf16.mxu0 0
        %2685 = vmatpush1.bf16.msra.mxu0 0
        %2686 = vmatprep.subr.bf16.mxu0 0
        %2687 = vmatpush1.bf16.msra.mxu0 0
        %2688 = vmatprep.subr.bf16.mxu0 0
        %2689 = vmatpush1.bf16.msra.mxu0 0
        %2690 = vmatprep.subr.bf16.mxu0 0
        %2691 = vmatpush1.bf16.msra.mxu0 0
        %2692 = vmatprep.mubr.bf16.mxu0 0
        %2693 = vmatmul.mubr.bf16.gmra.mrb[0].mxu0 %v2655
        %v2694 = vpop.f32.mrb[0].mxu0
        %v2695 = vadd.f32 0.0, %v2694
        %v2696 = vpop.f32.mrb[0].mxu0
        %v2697 = vpop.f32.mrb[0].mxu0
        %v2698 = vpop.f32.mrb[0].mxu0
        %2699 = vdwg.mxu0
        %v2701 = vsel %vm2272, %v2368, 0
        %v2704 = vsel %vm2380, %v2376, 0
        %2706 = vmatprep.subr.bf16.mxu0 0
        %2707 = vmatpush1.bf16.msra.mxu0 %v2704
        %2708 = vmatprep.subr.bf16.mxu0 0
        %2709 = vmatpush1.bf16.msra.mxu0 0
        %2710 = vmatprep.subr.bf16.mxu0 0
        %2711 = vmatpush1.bf16.msra.mxu0 0
        %2712 = vmatprep.subr.bf16.mxu0 0
        %2713 = vmatpush1.bf16.msra.mxu0 0
        %2714 = vmatprep.subr.bf16.mxu0 0
        %2715 = vmatpush1.bf16.msra.mxu0 0
        %2716 = vmatprep.subr.bf16.mxu0 0
        %2717 = vmatpush1.bf16.msra.mxu0 0
        %2718 = vmatprep.subr.bf16.mxu0 0
        %2719 = vmatpush1.bf16.msra.mxu0 0
        %2720 = vmatprep.subr.bf16.mxu0 0
        %2721 = vmatpush1.bf16.msra.mxu0 0
        %2722 = vmatprep.subr.bf16.mxu0 0
        %2723 = vmatpush1.bf16.msra.mxu0 0
        %2724 = vmatprep.subr.bf16.mxu0 0
        %2725 = vmatpush1.bf16.msra.mxu0 0
        %2726 = vmatprep.subr.bf16.mxu0 0
        %2727 = vmatpush1.bf16.msra.mxu0 0
        %2728 = vmatprep.subr.bf16.mxu0 0
        %2729 = vmatpush1.bf16.msra.mxu0 0
        %2730 = vmatprep.subr.bf16.mxu0 0
        %2731 = vmatpush1.bf16.msra.mxu0 0
        %2732 = vmatprep.subr.bf16.mxu0 0
        %2733 = vmatpush1.bf16.msra.mxu0 0
        %2734 = vmatprep.subr.bf16.mxu0 0
        %2735 = vmatpush1.bf16.msra.mxu0 0
        %2736 = vmatprep.subr.bf16.mxu0 0
        %2737 = vmatpush1.bf16.msra.mxu0 0
        %2738 = vmatprep.mubr.bf16.mxu0 0
        %2739 = vmatmul.mubr.bf16.gmra.mrb[0].mxu0 %v2701
        %v2740 = vpop.f32.mrb[0].mxu0
        %v2741 = vadd.f32 0.0, %v2740
        %v2742 = vpop.f32.mrb[0].mxu0
        %v2743 = vpop.f32.mrb[0].mxu0
        %v2744 = vpop.f32.mrb[0].mxu0
        %2745 = vdwg.mxu0
        %v2746 = vcombine.low %v2419, %v2511
        %v2747 = vcombine.high %v2419, %v2511
        %v2749 = vunpack.c.l.s4 1983009808
        %v2750 = vunpack.c.0.s8 %v2749
        %v2751 = vlaneseq
        %v2752 = vshrl.u32 %v2751, 7
        %v2753 = vsub.s32 %v2750, %v2752
        %v2754 = vrot.slane %v2746, %v2753
        %v2756 = vunpack.c.l.s4 1983009808
        %v2757 = vunpack.c.0.s8 %v2756
        %v2758 = vlaneseq
        %v2759 = vshrl.u32 %v2758, 7
        %v2760 = vsub.s32 %v2757, %v2759
        %v2761 = vrot.slane %v2747, %v2760
        %v2762 = vcombine.low %v2465, %v2557
        %v2763 = vcombine.high %v2465, %v2557
        %v2765 = vunpack.c.l.s4 1983009808
        %v2766 = vunpack.c.0.s8 %v2765
        %v2767 = vlaneseq
        %v2768 = vshrl.u32 %v2767, 7
        %v2769 = vsub.s32 %v2766, %v2768
        %v2770 = vrot.slane %v2762, %v2769
        %v2772 = vunpack.c.l.s4 1983009808
        %v2773 = vunpack.c.0.s8 %v2772
        %v2774 = vlaneseq
        %v2775 = vshrl.u32 %v2774, 7
        %v2776 = vsub.s32 %v2773, %v2775
        %v2777 = vrot.slane %v2763, %v2776
        %v2778 = vcombine.low %v2603, %v2695
        %v2779 = vcombine.high %v2603, %v2695
        %v2781 = vunpack.c.l.s4 1983009808
        %v2782 = vunpack.c.0.s8 %v2781
        %v2783 = vlaneseq
        %v2784 = vshrl.u32 %v2783, 7
        %v2785 = vsub.s32 %v2782, %v2784
        %v2786 = vrot.slane %v2778, %v2785
        %v2788 = vunpack.c.l.s4 1983009808
        %v2789 = vunpack.c.0.s8 %v2788
        %v2790 = vlaneseq
        %v2791 = vshrl.u32 %v2790, 7
        %v2792 = vsub.s32 %v2789, %v2791
        %v2793 = vrot.slane %v2779, %v2792
        %v2794 = vcombine.low %v2649, %v2741
        %v2795 = vcombine.high %v2649, %v2741
        %v2797 = vunpack.c.l.s4 1983009808
        %v2798 = vunpack.c.0.s8 %v2797
        %v2799 = vlaneseq
        %v2800 = vshrl.u32 %v2799, 7
        %v2801 = vsub.s32 %v2798, %v2800
        %v2802 = vrot.slane %v2794, %v2801
        %v2804 = vunpack.c.l.s4 1983009808
        %v2805 = vunpack.c.0.s8 %v2804
        %v2806 = vlaneseq
        %v2807 = vshrl.u32 %v2806, 7
        %v2808 = vsub.s32 %v2805, %v2807
        %v2809 = vrot.slane %v2795, %v2808
        %v2810 = vcombine.low %v2754, %v2770
        %v2811 = vcombine.high %v2754, %v2770
        %v2813 = vunpack.c.l.s4 1934713408
        %v2814 = vunpack.c.0.s8 %v2813
        %v2815 = vlaneseq
        %v2816 = vshrl.u32 %v2815, 7
        %v2817 = vsub.s32 %v2814, %v2816
        %v2818 = vrot.slane %v2810, %v2817
        %v2820 = vunpack.c.l.s4 1934713408
        %v2821 = vunpack.c.0.s8 %v2820
        %v2822 = vlaneseq
        %v2823 = vshrl.u32 %v2822, 7
        %v2824 = vsub.s32 %v2821, %v2823
        %v2825 = vrot.slane %v2811, %v2824
        %v2826 = vcombine.low %v2761, %v2777
        %v2827 = vcombine.high %v2761, %v2777
        %v2829 = vunpack.c.l.s4 1934713408
        %v2830 = vunpack.c.0.s8 %v2829
        %v2831 = vlaneseq
        %v2832 = vshrl.u32 %v2831, 7
        %v2833 = vsub.s32 %v2830, %v2832
        %v2834 = vrot.slane %v2826, %v2833
        %v2836 = vunpack.c.l.s4 1934713408
        %v2837 = vunpack.c.0.s8 %v2836
        %v2838 = vlaneseq
        %v2839 = vshrl.u32 %v2838, 7
        %v2840 = vsub.s32 %v2837, %v2839
        %v2841 = vrot.slane %v2827, %v2840
        %v2842 = vcombine.low %v2786, %v2802
        %v2843 = vcombine.high %v2786, %v2802
        %v2845 = vunpack.c.l.s4 1934713408
        %v2846 = vunpack.c.0.s8 %v2845
        %v2847 = vlaneseq
        %v2848 = vshrl.u32 %v2847, 7
        %v2849 = vsub.s32 %v2846, %v2848
        %v2850 = vrot.slane %v2842, %v2849
        %v2852 = vunpack.c.l.s4 1934713408
        %v2853 = vunpack.c.0.s8 %v2852
        %v2854 = vlaneseq
        %v2855 = vshrl.u32 %v2854, 7
        %v2856 = vsub.s32 %v2853, %v2855
        %v2857 = vrot.slane %v2843, %v2856
        %v2858 = vcombine.low %v2793, %v2809
        %v2859 = vcombine.high %v2793, %v2809
        %v2861 = vunpack.c.l.s4 1934713408
        %v2862 = vunpack.c.0.s8 %v2861
        %v2863 = vlaneseq
        %v2864 = vshrl.u32 %v2863, 7
        %v2865 = vsub.s32 %v2862, %v2864
        %v2866 = vrot.slane %v2858, %v2865
        %v2868 = vunpack.c.l.s4 1934713408
        %v2869 = vunpack.c.0.s8 %v2868
        %v2870 = vlaneseq
        %v2871 = vshrl.u32 %v2870, 7
        %v2872 = vsub.s32 %v2869, %v2871
        %v2873 = vrot.slane %v2859, %v2872
        %v2874 = vcombine.low %v2818, %v2850
        %v2875 = vcombine.high %v2818, %v2850
        %v2876 = vcombine.low %v2825, %v2857
        %v2877 = vcombine.high %v2825, %v2857
        %v2878 = vcombine.low %v2834, %v2866
        %v2879 = vcombine.high %v2834, %v2866
        %v2880 = vcombine.low %v2841, %v2873
        %v2881 = vcombine.high %v2841, %v2873
        %v2882 = vcombine.low %v2874, %v2876
        %v2883 = vcombine.high %v2874, %v2876
        %v2885 = vunpack.c.l.s4 1983009808
        %v2886 = vunpack.c.0.s8 %v2885
        %v2887 = vlaneseq
        %v2888 = vshrl.u32 %v2887, 7
        %v2889 = vsub.s32 %v2886, %v2888
        %v2890 = vrot.slane %v2882, %v2889
        %v2892 = vunpack.c.l.s4 1983009808
        %v2893 = vunpack.c.0.s8 %v2892
        %v2894 = vlaneseq
        %v2895 = vshrl.u32 %v2894, 7
        %v2896 = vsub.s32 %v2893, %v2895
        %v2897 = vrot.slane %v2883, %v2896
        %v2898 = vcombine.low %v2875, %v2877
        %v2899 = vcombine.high %v2875, %v2877
        %v2901 = vunpack.c.l.s4 1983009808
        %v2902 = vunpack.c.0.s8 %v2901
        %v2903 = vlaneseq
        %v2904 = vshrl.u32 %v2903, 7
        %v2905 = vsub.s32 %v2902, %v2904
        %v2906 = vrot.slane %v2898, %v2905
        %v2908 = vunpack.c.l.s4 1983009808
        %v2909 = vunpack.c.0.s8 %v2908
        %v2910 = vlaneseq
        %v2911 = vshrl.u32 %v2910, 7
        %v2912 = vsub.s32 %v2909, %v2911
        %v2913 = vrot.slane %v2899, %v2912
        %v2914 = vcombine.low %v2878, %v2880
        %v2915 = vcombine.high %v2878, %v2880
        %v2917 = vunpack.c.l.s4 1983009808
        %v2918 = vunpack.c.0.s8 %v2917
        %v2919 = vlaneseq
        %v2920 = vshrl.u32 %v2919, 7
        %v2921 = vsub.s32 %v2918, %v2920
        %v2922 = vrot.slane %v2914, %v2921
        %v2924 = vunpack.c.l.s4 1983009808
        %v2925 = vunpack.c.0.s8 %v2924
        %v2926 = vlaneseq
        %v2927 = vshrl.u32 %v2926, 7
        %v2928 = vsub.s32 %v2925, %v2927
        %v2929 = vrot.slane %v2915, %v2928
        %v2930 = vcombine.low %v2879, %v2881
        %v2931 = vcombine.high %v2879, %v2881
        %v2933 = vunpack.c.l.s4 1983009808
        %v2934 = vunpack.c.0.s8 %v2933
        %v2935 = vlaneseq
        %v2936 = vshrl.u32 %v2935, 7
        %v2937 = vsub.s32 %v2934, %v2936
        %v2938 = vrot.slane %v2930, %v2937
        %v2940 = vunpack.c.l.s4 1983009808
        %v2941 = vunpack.c.0.s8 %v2940
        %v2942 = vlaneseq
        %v2943 = vshrl.u32 %v2942, 7
        %v2944 = vsub.s32 %v2941, %v2943
        %v2945 = vrot.slane %v2931, %v2944
        %v2946 = vcombine.low %v2890, %v2906
        %v2947 = vcombine.high %v2890, %v2906
        %v2949 = vunpack.c.l.s4 1934713408
        %v2950 = vunpack.c.0.s8 %v2949
        %v2951 = vlaneseq
        %v2952 = vshrl.u32 %v2951, 7
        %v2953 = vsub.s32 %v2950, %v2952
        %v2954 = vrot.slane %v2946, %v2953
        %v2956 = vunpack.c.l.s4 1934713408
        %v2957 = vunpack.c.0.s8 %v2956
        %v2958 = vlaneseq
        %v2959 = vshrl.u32 %v2958, 7
        %v2960 = vsub.s32 %v2957, %v2959
        %v2961 = vrot.slane %v2947, %v2960
        %v2962 = vcombine.low %v2897, %v2913
        %v2963 = vcombine.high %v2897, %v2913
        %v2965 = vunpack.c.l.s4 1934713408
        %v2966 = vunpack.c.0.s8 %v2965
        %v2967 = vlaneseq
        %v2968 = vshrl.u32 %v2967, 7
        %v2969 = vsub.s32 %v2966, %v2968
        %v2970 = vrot.slane %v2962, %v2969
        %v2972 = vunpack.c.l.s4 1934713408
        %v2973 = vunpack.c.0.s8 %v2972
        %v2974 = vlaneseq
        %v2975 = vshrl.u32 %v2974, 7
        %v2976 = vsub.s32 %v2973, %v2975
        %v2977 = vrot.slane %v2963, %v2976
        %v2978 = vcombine.low %v2922, %v2938
        %v2979 = vcombine.high %v2922, %v2938
        %v2981 = vunpack.c.l.s4 1934713408
        %v2982 = vunpack.c.0.s8 %v2981
        %v2983 = vlaneseq
        %v2984 = vshrl.u32 %v2983, 7
        %v2985 = vsub.s32 %v2982, %v2984
        %v2986 = vrot.slane %v2978, %v2985
        %v2988 = vunpack.c.l.s4 1934713408
        %v2989 = vunpack.c.0.s8 %v2988
        %v2990 = vlaneseq
        %v2991 = vshrl.u32 %v2990, 7
        %v2992 = vsub.s32 %v2989, %v2991
        %v2993 = vrot.slane %v2979, %v2992
        %v2994 = vcombine.low %v2929, %v2945
        %v2995 = vcombine.high %v2929, %v2945
        %v2997 = vunpack.c.l.s4 1934713408
        %v2998 = vunpack.c.0.s8 %v2997
        %v2999 = vlaneseq
        %v3000 = vshrl.u32 %v2999, 7
        %v3001 = vsub.s32 %v2998, %v3000
        %v3002 = vrot.slane %v2994, %v3001
        %v3004 = vunpack.c.l.s4 1934713408
        %v3005 = vunpack.c.0.s8 %v3004
        %v3006 = vlaneseq
        %v3007 = vshrl.u32 %v3006, 7
        %v3008 = vsub.s32 %v3005, %v3007
        %v3009 = vrot.slane %v2995, %v3008
        %v3010 = vcombine.low %v2954, %v2986
        %v3011 = vcombine.high %v2954, %v2986
        %v3012 = vcombine.low %v2961, %v2993
        %v3013 = vcombine.high %v2961, %v2993
        %v3014 = vcombine.low %v2970, %v3002
        %v3015 = vcombine.high %v2970, %v3002
        %v3016 = vcombine.low %v2977, %v3009
        %v3017 = vcombine.high %v2977, %v3009
        %3019 = vrot.lane.b32.xlu0 %v3011, 16
        %v3020 = vpop.permute.xlu0 %3019
        %3023 = vrot.lane.b32.xlu0 %v3012, 32
        %v3024 = vpop.permute.xlu0 %3023
        %3027 = vrot.lane.b32.xlu0 %v3013, 48
        %v3028 = vpop.permute.xlu0 %3027
        %3031 = vrot.lane.b32.xlu0 %v3014, 64
        %v3032 = vpop.permute.xlu0 %3031
        %3035 = vrot.lane.b32.xlu0 %v3015, 80
        %v3036 = vpop.permute.xlu0 %3035
        %3039 = vrot.lane.b32.xlu0 %v3016, 96
        %v3040 = vpop.permute.xlu0 %3039
        %3043 = vrot.lane.b32.xlu0 %v3017, 112
        %v3044 = vpop.permute.xlu0 %3043
        %v3046 = vsel %vm1903, %v3010, %v3020
        %vm3047 = vcmask 261120
        %v3048 = vsel %vm3047, %v3046, %v3024
        %vm3049 = vcmask 392192
        %v3050 = vsel %vm3049, %v3048, %v3028
        %vm3051 = vcmask 523264
        %v3052 = vsel %vm3051, %v3050, %v3032
        %vm3053 = vcmask 654336
        %v3054 = vsel %vm3053, %v3052, %v3036
        %vm3055 = vcmask 785408
        %v3056 = vsel %vm3055, %v3054, %v3040
        %vm3057 = vcmask 916480
        %v3058 = vsel %vm3057, %v3056, %v3044
        %v3059 = vpack.c.bf16 %v3058, %v3058
        %v3060 = vld [vmem:[%s520] sm:$0xf]
        %v3061 = vld [vmem:[%s520 + $0x4] sm:$0xf]
        %v3062 = vld [vmem:[%s520 + $0x8] sm:$0xf]
        %v3063 = vld [vmem:[%s520 + $0xc] sm:$0xf]
        %v3064 = vld [vmem:[%s520 + $0x10] sm:$0xf]
        %v3065 = vld [vmem:[%s520 + $0x14] sm:$0xf]
        %v3066 = vld [vmem:[%s520 + $0x18] sm:$0xf]
        %v3067 = vld [vmem:[%s520 + $0x1c] sm:$0xf]
        %v3068 = vld [vmem:[%s520 + $0x20] sm:$0xf]
        %v3069 = vld [vmem:[%s520 + $0x24] sm:$0xf]
        %v3070 = vld [vmem:[%s520 + $0x28] sm:$0xf]
        %v3071 = vld [vmem:[%s520 + $0x2c] sm:$0xf]
        %v3072 = vld [vmem:[%s520 + $0x30] sm:$0xf]
        %v3073 = vld [vmem:[%s520 + $0x34] sm:$0xf]
        %v3074 = vld [vmem:[%s520 + $0x38] sm:$0xf]
        %v3075 = vld [vmem:[%s520 + $0x3c] sm:$0xf]
        %v3076 = vlaneseq
        %v3077 = vshrl.u32 %v3076, 7
        %v3078 = vsub.s32 0, %v3077
        %v3079 = vrot.slane %v745, %v3078
        %v3096 = vunpack.c.l.b16 %v3060
        %v3097 = vunpack.c.l.b16 %v3061
        %v3098 = vunpack.c.l.b16 %v3062
        %v3099 = vunpack.c.l.b16 %v3063
        %v3100 = vunpack.c.l.b16 %v3064
        %v3101 = vunpack.c.l.b16 %v3065
        %v3102 = vunpack.c.l.b16 %v3066
        %v3103 = vunpack.c.l.b16 %v3067
        %v3104 = vunpack.c.l.b16 %v3068
        %v3105 = vunpack.c.l.b16 %v3069
        %v3106 = vunpack.c.l.b16 %v3070
        %v3107 = vunpack.c.l.b16 %v3071
        %v3108 = vunpack.c.l.b16 %v3072
        %v3109 = vunpack.c.l.b16 %v3073
        %v3110 = vunpack.c.l.b16 %v3074
        %v3111 = vunpack.c.l.b16 %v3075
        %v3112 = vpack.c.b16 %v3097, %v3096
        %v3113 = vpack.c.b16 %v3099, %v3098
        %v3114 = vpack.c.b16 %v3101, %v3100
        %v3115 = vpack.c.b16 %v3103, %v3102
        %v3116 = vpack.c.b16 %v3105, %v3104
        %v3117 = vpack.c.b16 %v3107, %v3106
        %v3118 = vpack.c.b16 %v3109, %v3108
        %v3119 = vpack.c.b16 %v3111, %v3110
        %3128 = vmatprep.subr.bf16.mxu0 0
        %3129 = vmatpush1.bf16.msra.mxu0 %v3112
        %3130 = vmatprep.subr.bf16.mxu0 0
        %3131 = vmatpush1.bf16.msra.mxu0 %v3113
        %3132 = vmatprep.subr.bf16.mxu0 0
        %3133 = vmatpush1.bf16.msra.mxu0 %v3114
        %3134 = vmatprep.subr.bf16.mxu0 0
        %3135 = vmatpush1.bf16.msra.mxu0 %v3115
        %3136 = vmatprep.subr.bf16.mxu0 0
        %3137 = vmatpush1.bf16.msra.mxu0 %v3116
        %3138 = vmatprep.subr.bf16.mxu0 0
        %3139 = vmatpush1.bf16.msra.mxu0 %v3117
        %3140 = vmatprep.subr.bf16.mxu0 0
        %3141 = vmatpush1.bf16.msra.mxu0 %v3118
        %3142 = vmatprep.subr.bf16.mxu0 0
        %3143 = vmatpush1.bf16.msra.mxu0 %v3119
        %3144 = vmatprep.subr.bf16.mxu0 0
        %3145 = vmatpush1.bf16.msra.mxu0 0
        %3146 = vmatprep.subr.bf16.mxu0 0
        %3147 = vmatpush1.bf16.msra.mxu0 0
        %3148 = vmatprep.subr.bf16.mxu0 0
        %3149 = vmatpush1.bf16.msra.mxu0 0
        %3150 = vmatprep.subr.bf16.mxu0 0
        %3151 = vmatpush1.bf16.msra.mxu0 0
        %3152 = vmatprep.subr.bf16.mxu0 0
        %3153 = vmatpush1.bf16.msra.mxu0 0
        %3154 = vmatprep.subr.bf16.mxu0 0
        %3155 = vmatpush1.bf16.msra.mxu0 0
        %3156 = vmatprep.subr.bf16.mxu0 0
        %3157 = vmatpush1.bf16.msra.mxu0 0
        %3158 = vmatprep.subr.bf16.mxu0 0
        %3159 = vmatpush1.bf16.msra.mxu0 0
        %3160 = vmatprep.mubr.bf16.mxu0 0
        %3161 = vmatmul.mubr.bf16.gmra.mrb[0].mxu0 %v3059
        %v3162 = vpop.f32.mrb[0].mxu0
        %v3163 = vadd.f32 %v3079, %v3162
        %v3164 = vpop.f32.mrb[0].mxu0
        %v3165 = vpop.f32.mrb[0].mxu0
        %v3166 = vpop.f32.mrb[0].mxu0
        %3167 = vdwg.mxu0
        %v3168 = vadd.f32 %v744, %v3163
        %3169 = vadd.xlane.f32.xlu0 %v3168
        %v3170 = vpop.xlane.xlu0 %3169
        %v3171 = vrcp.pop 128.0
        %v3172 = vmul.f32 %v3170, %v3171
        %v3173 = vsub.f32 %v3168, %v3172
        %v3174 = vmul.f32 %v3173, %v3173
        %3175 = vadd.xlane.f32.xlu0 %v3174
        %v3176 = vpop.xlane.xlu0 %3175
        %v3177 = vmul.f32 %v3176, %v3171
        %v3178 = vadd.f32 %v3177, 1e-05
        %v3179 = vrsqrt.pop %v3178
        %v3180 = vmul.f32 %v3173, %v3179
        %v3181 = vlaneseq
        %v3182 = vshrl.u32 %v3181, 7
        %v3183 = vsub.s32 1, %v3182
        %v3184 = vrot.slane %v745, %v3183
        %v3185 = vmul.f32 %v3180, %v3184
        %v3186 = vlaneseq
        %v3187 = vshrl.u32 %v3186, 7
        %v3188 = vsub.s32 2, %v3187
        %v3189 = vrot.slane %v745, %v3188
        %v3190 = vadd.f32 %v3185, %v3189
        %v3191 = vpack.c.bf16 %v3190, %v3190
        %v3192 = vld [vmem:[%s529] sm:$0xff]
        %v3193 = vld [vmem:[%s529 + $0x8] sm:$0xff]
        %v3194 = vld [vmem:[%s529 + $0x10] sm:$0xff]
        %v3195 = vld [vmem:[%s529 + $0x18] sm:$0xff]
        %v3196 = vld [vmem:[%s529 + $0x20] sm:$0xff]
        %v3197 = vld [vmem:[%s529 + $0x28] sm:$0xff]
        %v3198 = vld [vmem:[%s529 + $0x30] sm:$0xff]
        %v3199 = vld [vmem:[%s529 + $0x38] sm:$0xff]
        %v3200 = vld [vmem:[%s529 + $0x40] sm:$0xff]
        %v3201 = vld [vmem:[%s529 + $0x48] sm:$0xff]
        %v3202 = vld [vmem:[%s529 + $0x50] sm:$0xff]
        %v3203 = vld [vmem:[%s529 + $0x58] sm:$0xff]
        %v3204 = vld [vmem:[%s529 + $0x60] sm:$0xff]
        %v3205 = vld [vmem:[%s529 + $0x68] sm:$0xff]
        %v3206 = vld [vmem:[%s529 + $0x70] sm:$0xff]
        %v3207 = vld [vmem:[%s529 + $0x78] sm:$0xff]
        %v3208 = vld [vmem:[%s538] sm:$0x3]
        %v3210 = vlaneseq
        %v3211 = vshrl.u32 %v3210, 7
        %v3212 = vsub.s32 0, %v3211
        %v3213 = vrot.slane %v3208, %v3212
        %v3214 = vlaneseq
        %v3215 = vshrl.u32 %v3214, 7
        %v3216 = vsub.s32 1, %v3215
        %v3217 = vrot.slane %v3208, %v3216
        %v3236 = vunpack.c.l.b16 %v3192
        %v3237 = vunpack.c.h.b16 %v3192
        %v3238 = vunpack.c.l.b16 %v3193
        %v3239 = vunpack.c.h.b16 %v3193
        %v3240 = vunpack.c.l.b16 %v3194
        %v3241 = vunpack.c.h.b16 %v3194
        %v3242 = vunpack.c.l.b16 %v3195
        %v3243 = vunpack.c.h.b16 %v3195
        %v3244 = vunpack.c.l.b16 %v3196
        %v3245 = vunpack.c.h.b16 %v3196
        %v3246 = vunpack.c.l.b16 %v3197
        %v3247 = vunpack.c.h.b16 %v3197
        %v3248 = vunpack.c.l.b16 %v3198
        %v3249 = vunpack.c.h.b16 %v3198
        %v3250 = vunpack.c.l.b16 %v3199
        %v3251 = vunpack.c.h.b16 %v3199
        %v3252 = vunpack.c.l.b16 %v3200
        %v3253 = vunpack.c.h.b16 %v3200
        %v3254 = vunpack.c.l.b16 %v3201
        %v3255 = vunpack.c.h.b16 %v3201
        %v3256 = vunpack.c.l.b16 %v3202
        %v3257 = vunpack.c.h.b16 %v3202
        %v3258 = vunpack.c.l.b16 %v3203
        %v3259 = vunpack.c.h.b16 %v3203
        %v3260 = vunpack.c.l.b16 %v3204
        %v3261 = vunpack.c.h.b16 %v3204
        %v3262 = vunpack.c.l.b16 %v3205
        %v3263 = vunpack.c.h.b16 %v3205
        %v3264 = vunpack.c.l.b16 %v3206
        %v3265 = vunpack.c.h.b16 %v3206
        %v3266 = vunpack.c.l.b16 %v3207
        %v3267 = vunpack.c.h.b16 %v3207
        %v3268 = vpack.c.b16 %v3238, %v3236
        %v3269 = vpack.c.b16 %v3239, %v3237
        %v3270 = vpack.c.b16 %v3242, %v3240
        %v3271 = vpack.c.b16 %v3243, %v3241
        %v3272 = vpack.c.b16 %v3246, %v3244
        %v3273 = vpack.c.b16 %v3247, %v3245
        %v3274 = vpack.c.b16 %v3250, %v3248
        %v3275 = vpack.c.b16 %v3251, %v3249
        %v3276 = vpack.c.b16 %v3254, %v3252
        %v3277 = vpack.c.b16 %v3255, %v3253
        %v3278 = vpack.c.b16 %v3258, %v3256
        %v3279 = vpack.c.b16 %v3259, %v3257
        %v3280 = vpack.c.b16 %v3262, %v3260
        %v3281 = vpack.c.b16 %v3263, %v3261
        %v3282 = vpack.c.b16 %v3266, %v3264
        %v3283 = vpack.c.b16 %v3267, %v3265
        %3300 = vmatprep.subr.bf16.mxu0 %v3269
        %3301 = vmatpush1.bf16.msra.mxu0 %v3268
        %3302 = vmatprep.subr.bf16.mxu0 %v3271
        %3303 = vmatpush1.bf16.msra.mxu0 %v3270
        %3304 = vmatprep.subr.bf16.mxu0 %v3273
        %3305 = vmatpush1.bf16.msra.mxu0 %v3272
        %3306 = vmatprep.subr.bf16.mxu0 %v3275
        %3307 = vmatpush1.bf16.msra.mxu0 %v3274
        %3308 = vmatprep.subr.bf16.mxu0 %v3277
        %3309 = vmatpush1.bf16.msra.mxu0 %v3276
        %3310 = vmatprep.subr.bf16.mxu0 %v3279
        %3311 = vmatpush1.bf16.msra.mxu0 %v3278
        %3312 = vmatprep.subr.bf16.mxu0 %v3281
        %3313 = vmatpush1.bf16.msra.mxu0 %v3280
        %3314 = vmatprep.subr.bf16.mxu0 %v3283
        %3315 = vmatpush1.bf16.msra.mxu0 %v3282
        %3316 = vmatprep.subr.bf16.mxu0 0
        %3317 = vmatpush1.bf16.msra.mxu0 0
        %3318 = vmatprep.subr.bf16.mxu0 0
        %3319 = vmatpush1.bf16.msra.mxu0 0
        %3320 = vmatprep.subr.bf16.mxu0 0
        %3321 = vmatpush1.bf16.msra.mxu0 0
        %3322 = vmatprep.subr.bf16.mxu0 0
        %3323 = vmatpush1.bf16.msra.mxu0 0
        %3324 = vmatprep.subr.bf16.mxu0 0
        %3325 = vmatpush1.bf16.msra.mxu0 0
        %3326 = vmatprep.subr.bf16.mxu0 0
        %3327 = vmatpush1.bf16.msra.mxu0 0
        %3328 = vmatprep.subr.bf16.mxu0 0
        %3329 = vmatpush1.bf16.msra.mxu0 0
        %3330 = vmatprep.subr.bf16.mxu0 0
        %3331 = vmatpush1.bf16.msra.mxu0 0
        %3332 = vmatprep.mubr.bf16.mxu0 0
        %3333 = vmatmul.mubr.bf16.gmra.mrb[0].mxu0 %v3191
        %v3334 = vpop.f32.mrb[0].mxu0
        %v3335 = vadd.f32 %v3213, %v3334
        %v3336 = vpop.f32.mrb[0].mxu0
        %v3337 = vadd.f32 %v3217, %v3336
        %v3338 = vpop.f32.mrb[0].mxu0
        %v3339 = vpop.f32.mrb[0].mxu0
        %3340 = vdwg.mxu0
        %v3341 = vmax.f32 %v3335, 0.0
        %v3342 = vmax.f32 %v3337, 0.0
        %v3343 = vpack.c.bf16 %v3341, %v3341
        %v3344 = vpack.c.bf16 %v3342, %v3342
        %v3345 = vld [vmem:[%s547] sm:$0xf]
        %v3346 = vld [vmem:[%s547 + $0x4] sm:$0xf]
        %v3347 = vld [vmem:[%s547 + $0x8] sm:$0xf]
        %v3348 = vld [vmem:[%s547 + $0xc] sm:$0xf]
        %v3349 = vld [vmem:[%s547 + $0x10] sm:$0xf]
        %v3350 = vld [vmem:[%s547 + $0x14] sm:$0xf]
        %v3351 = vld [vmem:[%s547 + $0x18] sm:$0xf]
        %v3352 = vld [vmem:[%s547 + $0x1c] sm:$0xf]
        %v3353 = vld [vmem:[%s547 + $0x20] sm:$0xf]
        %v3354 = vld [vmem:[%s547 + $0x24] sm:$0xf]
        %v3355 = vld [vmem:[%s547 + $0x28] sm:$0xf]
        %v3356 = vld [vmem:[%s547 + $0x2c] sm:$0xf]
        %v3357 = vld [vmem:[%s547 + $0x30] sm:$0xf]
        %v3358 = vld [vmem:[%s547 + $0x34] sm:$0xf]
        %v3359 = vld [vmem:[%s547 + $0x38] sm:$0xf]
        %v3360 = vld [vmem:[%s547 + $0x3c] sm:$0xf]
        %v3361 = vld [vmem:[%s547 + $0x40] sm:$0xf]
        %v3362 = vld [vmem:[%s547 + $0x44] sm:$0xf]
        %v3363 = vld [vmem:[%s547 + $0x48] sm:$0xf]
        %v3364 = vld [vmem:[%s547 + $0x4c] sm:$0xf]
        %v3365 = vld [vmem:[%s547 + $0x50] sm:$0xf]
        %v3366 = vld [vmem:[%s547 + $0x54] sm:$0xf]
        %v3367 = vld [vmem:[%s547 + $0x58] sm:$0xf]
        %v3368 = vld [vmem:[%s547 + $0x5c] sm:$0xf]
        %v3369 = vld [vmem:[%s547 + $0x60] sm:$0xf]
        %v3370 = vld [vmem:[%s547 + $0x64] sm:$0xf]
        %v3371 = vld [vmem:[%s547 + $0x68] sm:$0xf]
        %v3372 = vld [vmem:[%s547 + $0x6c] sm:$0xf]
        %v3373 = vld [vmem:[%s547 + $0x70] sm:$0xf]
        %v3374 = vld [vmem:[%s547 + $0x74] sm:$0xf]
        %v3375 = vld [vmem:[%s547 + $0x78] sm:$0xf]
        %v3376 = vld [vmem:[%s547 + $0x7c] sm:$0xf]
        %v3377 = vlaneseq
        %v3378 = vshrl.u32 %v3377, 7
        %v3379 = vsub.s32 3, %v3378
        %v3380 = vrot.slane %v745, %v3379
        %v3413 = vunpack.c.l.b16 %v3345
        %v3414 = vunpack.c.l.b16 %v3346
        %v3415 = vunpack.c.l.b16 %v3347
        %v3416 = vunpack.c.l.b16 %v3348
        %v3417 = vunpack.c.l.b16 %v3349
        %v3418 = vunpack.c.l.b16 %v3350
        %v3419 = vunpack.c.l.b16 %v3351
        %v3420 = vunpack.c.l.b16 %v3352
        %v3421 = vunpack.c.l.b16 %v3353
        %v3422 = vunpack.c.l.b16 %v3354
        %v3423 = vunpack.c.l.b16 %v3355
        %v3424 = vunpack.c.l.b16 %v3356
        %v3425 = vunpack.c.l.b16 %v3357
        %v3426 = vunpack.c.l.b16 %v3358
        %v3427 = vunpack.c.l.b16 %v3359
        %v3428 = vunpack.c.l.b16 %v3360
        %v3429 = vunpack.c.l.b16 %v3361
        %v3430 = vunpack.c.l.b16 %v3362
        %v3431 = vunpack.c.l.b16 %v3363
        %v3432 = vunpack.c.l.b16 %v3364
        %v3433 = vunpack.c.l.b16 %v3365
        %v3434 = vunpack.c.l.b16 %v3366
        %v3435 = vunpack.c.l.b16 %v3367
        %v3436 = vunpack.c.l.b16 %v3368
        %v3437 = vunpack.c.l.b16 %v3369
        %v3438 = vunpack.c.l.b16 %v3370
        %v3439 = vunpack.c.l.b16 %v3371
        %v3440 = vunpack.c.l.b16 %v3372
        %v3441 = vunpack.c.l.b16 %v3373
        %v3442 = vunpack.c.l.b16 %v3374
        %v3443 = vunpack.c.l.b16 %v3375
        %v3444 = vunpack.c.l.b16 %v3376
        %v3445 = vpack.c.b16 %v3414, %v3413
        %v3446 = vpack.c.b16 %v3416, %v3415
        %v3447 = vpack.c.b16 %v3418, %v3417
        %v3448 = vpack.c.b16 %v3420, %v3419
        %v3449 = vpack.c.b16 %v3422, %v3421
        %v3450 = vpack.c.b16 %v3424, %v3423
        %v3451 = vpack.c.b16 %v3426, %v3425
        %v3452 = vpack.c.b16 %v3428, %v3427
        %v3453 = vpack.c.b16 %v3430, %v3429
        %v3454 = vpack.c.b16 %v3432, %v3431
        %v3455 = vpack.c.b16 %v3434, %v3433
        %v3456 = vpack.c.b16 %v3436, %v3435
        %v3457 = vpack.c.b16 %v3438, %v3437
        %v3458 = vpack.c.b16 %v3440, %v3439
        %v3459 = vpack.c.b16 %v3442, %v3441
        %v3460 = vpack.c.b16 %v3444, %v3443
        %3477 = vmatprep.subr.bf16.mxu0 0
        %3478 = vmatpush1.bf16.msra.mxu0 %v3445
        %3479 = vmatprep.subr.bf16.mxu0 0
        %3480 = vmatpush1.bf16.msra.mxu0 %v3446
        %3481 = vmatprep.subr.bf16.mxu0 0
        %3482 = vmatpush1.bf16.msra.mxu0 %v3447
        %3483 = vmatprep.subr.bf16.mxu0 0
        %3484 = vmatpush1.bf16.msra.mxu0 %v3448
        %3485 = vmatprep.subr.bf16.mxu0 0
        %3486 = vmatpush1.bf16.msra.mxu0 %v3449
        %3487 = vmatprep.subr.bf16.mxu0 0
        %3488 = vmatpush1.bf16.msra.mxu0 %v3450
        %3489 = vmatprep.subr.bf16.mxu0 0
        %3490 = vmatpush1.bf16.msra.mxu0 %v3451
        %3491 = vmatprep.subr.bf16.mxu0 0
        %3492 = vmatpush1.bf16.msra.mxu0 %v3452
        %3493 = vmatprep.subr.bf16.mxu0 0
        %3494 = vmatpush1.bf16.msra.mxu0 %v3453
        %3495 = vmatprep.subr.bf16.mxu0 0
        %3496 = vmatpush1.bf16.msra.mxu0 %v3454
        %3497 = vmatprep.subr.bf16.mxu0 0
        %3498 = vmatpush1.bf16.msra.mxu0 %v3455
        %3499 = vmatprep.subr.bf16.mxu0 0
        %3500 = vmatpush1.bf16.msra.mxu0 %v3456
        %3501 = vmatprep.subr.bf16.mxu0 0
        %3502 = vmatpush1.bf16.msra.mxu0 %v3457
        %3503 = vmatprep.subr.bf16.mxu0 0
        %3504 = vmatpush1.bf16.msra.mxu0 %v3458
        %3505 = vmatprep.subr.bf16.mxu0 0
        %3506 = vmatpush1.bf16.msra.mxu0 %v3459
        %3507 = vmatprep.subr.bf16.mxu0 0
        %3508 = vmatpush1.bf16.msra.mxu0 %v3460
        %3509 = vmatprep.mubr.bf16.mxu0 %v3344
        %3510 = vmatmul.mubr.bf16.gmra.mrb[0].mxu0 %v3343
        %v3511 = vpop.f32.mrb[0].mxu0
        %v3512 = vadd.f32 %v3380, %v3511
        %v3513 = vpop.f32.mrb[0].mxu0
        %v3514 = vpop.f32.mrb[0].mxu0
        %v3515 = vpop.f32.mrb[0].mxu0
        %3516 = vdwg.mxu0
        %v3517 = vadd.f32 %v3190, %v3512
        %3518 = vadd.xlane.f32.xlu0 %v3517
        %v3519 = vpop.xlane.xlu0 %3518
        %v3520 = vmul.f32 %v3519, %v3171
        %v3521 = vsub.f32 %v3517, %v3520
        %v3522 = vmul.f32 %v3521, %v3521
        %3523 = vadd.xlane.f32.xlu0 %v3522
        %v3524 = vpop.xlane.xlu0 %3523
        %v3525 = vmul.f32 %v3524, %v3171
        %v3526 = vadd.f32 %v3525, 1e-05
        %v3527 = vrsqrt.pop %v3526
        %v3528 = vmul.f32 %v3521, %v3527
        %v3529 = vlaneseq
        %v3530 = vshrl.u32 %v3529, 7
        %v3531 = vsub.s32 4, %v3530
        %v3532 = vrot.slane %v745, %v3531
        %v3533 = vmul.f32 %v3528, %v3532
        %v3534 = vlaneseq
        %v3535 = vshrl.u32 %v3534, 7
        %v3536 = vsub.s32 5, %v3535
        %v3537 = vrot.slane %v745, %v3536
        %v3538 = vadd.f32 %v3533, %v3537
        %3539 = vst [vmem:[#allocation2] sm:$0xff] %v3538
        %p3540 = scmp.eq.s32.totalorder %s41, 2
        // Predicated region
        $region93: #{stock_encoder_forward.1} parent=59 // pred_check
          %p3541 = pneg %p3540
        $region94: #{stock_encoder_forward.1} parent=59 // pred_check_branch
          %3543 = sbr.rel (%p3541) target = $region96
        $region95: #{stock_encoder_forward.1} parent=59 // pred_region
          %3544 = vst [vmem:[%s626] sm:$0xff] %v3538
        $region96: #{stock_encoder_forward.1} parent=59 // pred_fallthru
          _
        %s3545 = sand.u32 %s306, 1
        %s3546 = scalar_lea.sflag [#allocation5], %s3545
        %s3547 = sand.u32 %s306, 1
        %s3548 = smul.addr %s3547, 8
        %s3549 = scalar_lea.vmem [#allocation15], %s3548
        // Predicated region
        $region97: #{stock_encoder_forward.1} parent=59 // pred_check
          %p3550 = pneg %p316
        $region98: #{stock_encoder_forward.1} parent=59 // pred_check_branch
          %3552 = sbr.rel (%p3550) target = $region100
        $region99: #{stock_encoder_forward.1} parent=59 // pred_region
          %s3554 = ssub.s32 128, 128
          %3555 = vsyncadd %s3546, %s3554
          %s3556 = smul.addr %s40, 128
          %s3557 = scalar_lea.hbm %s10, %s3556
          %s3559 = sshll.u32 %s3549, 4
          %s3560 = int_to_ptr.vmem [resolvable:$true] %s3559
          %3562 = dma.vmem_to_hbm [thread:$0]  %s3560, 128, %s3557, %s3546
        $region100: #{stock_encoder_forward.1} parent=59 // pred_fallthru
          _
      $region60: #{stock_encoder_forward.1} parent=5 // pred_fallthru
        _
      %p3563 = scmp.le.s32.totalorder 2, %s31
      // Predicated region
      $region101: #{stock_encoder_forward.1} parent=5 // pred_check
        %p3564 = pneg %p3563
      $region102: #{stock_encoder_forward.1} parent=5 // pred_check_branch
        %3566 = sbr.rel (%p3564) target = $region104
      $region103: #{stock_encoder_forward.1} parent=5 // pred_region
        %s3567 = ssub.s32 %s31, 2
        // Predicated region
        $region105: #{stock_encoder_forward.1} parent=103 // pred_check
          %p3568 = pneg %p322
        $region106: #{stock_encoder_forward.1} parent=103 // pred_check_branch
          %3570 = sbr.rel (%p3568) target = $region108
        $region107: #{stock_encoder_forward.1} parent=103 // pred_region
          %s3571 = sand.u32 %s307, 1
          %s3572 = scalar_lea.sflag [#allocation5], %s3571
          %s3573 = sand.u32 %s307, 1
          %s3574 = smul.addr %s3573, 8
          %s3575 = scalar_lea.vmem [#allocation15], %s3574
          %3576 = dma.done %s3572, 128
        $region108: #{stock_encoder_forward.1} parent=103 // pred_fallthru
          _
      $region104: #{stock_encoder_forward.1} parent=5 // pred_fallthru
        _
    $region6: #{stock_encoder_forward.1} parent=1 // loop_footer
      %s35 = sadd.s32 1, %s31
    $region7: #{stock_encoder_forward.1} parent=1 // loop_footer_branch
      %30 = sbr.rel target = $region3
    $region8: #{stock_encoder_forward.1} parent=1 // loop_exit
      _
    %3577 = vsyncpa [#allocation4], 1
    %s3578 = scalar_lea.sflag [#allocation4], 1
    %3579 = vsyncpa %s3578, 1
    %3580 = vsyncpa [#allocation7], 1
    %s3581 = scalar_lea.sflag [#allocation7], 1
    %3582 = vsyncpa %s3581, 1
    %3583 = vsyncpa [#allocation10], 1
    %s3584 = scalar_lea.sflag [#allocation10], 1
    %3585 = vsyncpa %s3584, 1
    %3586 = vsyncpa [#allocation13], 1
    %s3587 = scalar_lea.sflag [#allocation13], 1
    %3588 = vsyncpa %s3587, 1
    %3589 = vsyncpa [#allocation5], 1
    %s3590 = scalar_lea.sflag [#allocation5], 1
    %3591 = vsyncpa %s3590, 1

</llo_original>
